<compile_context>
chip_gen: v7x
topology: tpu7x:2x2x1
jax: 0.10.0
libtpu: 0.0.40
codegen_flags: <defaults>
</compile_context>

<pallas_src>
import functools
import math

import jax
import jax.numpy as jnp
from jax.experimental import pallas as pl
from jax.experimental.pallas import tpu as pltpu

_EPS = 1e-5

_COMPILER_PARAMS_CLS = getattr(pltpu, "CompilerParams", None)
if _COMPILER_PARAMS_CLS is None:  # older JAX spelling, just in case
    _COMPILER_PARAMS_CLS = getattr(pltpu, "TPUCompilerParams")


# ----------------------------- Pallas kernel --------------------------------

def _fused_conv_kernel(mode, cout, groups, true_m, eps, *refs):
    """Fused conv-as-matmul + bias + epilogue for one sample (one grid step).

    refs:
      w_ref : [Co, K]   bf16   (Co = groups * cout; groups>1 only for the
                                sub-pixel ConvTranspose decomposition)
      b_ref : [Co, 1]   f32
      x_ref : [1, K, M] bf16   transposed im2col patches of one sample
      r_ref : [1, Co, M] f32   (only when mode == "in_residual")
      o_ref : [1, Co, M] f32

    mode: "in_relu"     -> InstanceNorm + ReLU
          "in_residual" -> InstanceNorm + residual add (ResnetBlock tail)
          "tanh"        -> tanh only (final layer)
    """
    if mode == "in_residual":
        w_ref, b_ref, x_ref, r_ref, o_ref = refs
    else:
        w_ref, b_ref, x_ref, o_ref = refs

    x = x_ref[0]                      # [K, M]  bf16
    w = w_ref[...]                    # [Co, K] bf16
    # MXU matmul, f32 accumulation; output lane axis = spatial axis (lane-dense).
    acc = jnp.dot(w, x, preferred_element_type=jnp.float32)   # [Co, M] f32
    acc = acc + b_ref[...]                                     # bias broadcast

    if mode == "tanh":
        o_ref[0] = jnp.tanh(acc)
        return

    # InstanceNorm2d (affine=False, biased var) — each channel's pixels live in
    # this block: row-wise lane reduce, optionally combining the `groups`
    # sub-pixel phase rows that belong to the same output channel.
    s1 = jnp.sum(acc, axis=-1, keepdims=True)        # [Co, 1]
    s2 = jnp.sum(acc * acc, axis=-1, keepdims=True)  # [Co, 1]
    if groups > 1:
        cs1 = s1[0:cout]
        cs2 = s2[0:cout]
        for g in range(1, groups):
            cs1 = cs1 + s1[g * cout:(g + 1) * cout]
            cs2 = cs2 + s2[g * cout:(g + 1) * cout]
        cnt = groups * true_m
        mean = cs1 / cnt
        var = cs2 / cnt - mean * mean
        inv = jax.lax.rsqrt(var + eps)
        mean = jnp.concatenate([mean] * groups, axis=0)   # back to [Co, 1]
        inv = jnp.concatenate([inv] * groups, axis=0)
    else:
        mean = s1 / true_m
        var = s2 / true_m - mean * mean
        inv = jax.lax.rsqrt(var + eps)

    y = (acc - mean) * inv
    if mode == "in_relu":
        y = jnp.maximum(y, 0.0)
    elif mode == "in_residual":
        y = y + r_ref[0]
    o_ref[0] = y


# ----------------------------- pallas_call wrapper ---------------------------

def _fused_conv_call(patches, w2d, bias, cout, groups, mode, residual=None):
    """patches: [N, K, M] ; w2d: [Co, K] ; bias: [Co] ; optional residual [N, Co, M].

    Returns [N, Co, M] f32 where Co = groups * cout."""
    N, K, M = patches.shape
    Co = w2d.shape[0]
    assert Co == groups * cout and w2d.shape[1] == K

    patches_bf = patches.astype(jnp.bfloat16)
    w_bf = w2d.astype(jnp.bfloat16)
    bias2 = bias.astype(jnp.float32).reshape(Co, 1)

    kern = functools.partial(_fused_conv_kernel, mode, cout, groups,
                             float(M), _EPS)

    in_specs = [
        pl.BlockSpec((Co, K), lambda n: (0, 0)),        # weight (constant block)
        pl.BlockSpec((Co, 1), lambda n: (0, 0)),        # bias   (constant block)
        pl.BlockSpec((1, K, M), lambda n: (n, 0, 0)),   # per-sample patches
    ]
    args = [w_bf, bias2, patches_bf]
    if mode == "in_residual":
        assert residual is not None
        in_specs.append(pl.BlockSpec((1, Co, M), lambda n: (n, 0, 0)))
        args.append(residual.astype(jnp.float32))

    out = pl.pallas_call(
        kern,
        out_shape=jax.ShapeDtypeStruct((N, Co, M), jnp.float32),
        grid=(N,),
        in_specs=in_specs,
        out_specs=pl.BlockSpec((1, Co, M), lambda n: (n, 0, 0)),
        compiler_params=_COMPILER_PARAMS_CLS(
            dimension_semantics=("parallel",),        # batch shards across TCs
            vmem_limit_bytes=48 * 1024 * 1024,
        ),
    )(*args)
    return out


# --------------------------- conv glue (im2col, transposed) ------------------

def _im2col_t(x, k, stride):
    """x: NCHW (already padded). Returns patches [N, C*k*k, Ho*Wo] with
    patch-vector order (Cin, kh, kw) to match PyTorch weight flattening."""
    N, C, H, W = x.shape
    Ho = (H - k) // stride + 1
    Wo = (W - k) // stride + 1
    cols = []
    for kh in range(k):
        for kw in range(k):
            cols.append(x[:, :, kh:kh + Ho * stride:stride,
                            kw:kw + Wo * stride:stride])
    p = jnp.stack(cols, axis=2)                 # [N, C, k*k, Ho, Wo]
    p = p.reshape(N, C * k * k, Ho * Wo)        # (C, kh, kw) flattened
    return p, Ho, Wo


def conv2d_fused(x, w, b, stride=1, mode="in_relu", residual=None):
    """x: NCHW (padding already applied), w: [Cout, Cin, k, k], b: [Cout].
    Fused Conv2d + bias + {InstanceNorm+ReLU | InstanceNorm+residual | tanh}."""
    N = x.shape[0]
    cout, cin, k, _ = w.shape
    patches, Ho, Wo = _im2col_t(x, k, stride)   # [N, cin*k*k, Ho*Wo]
    w2d = w.reshape(cout, cin * k * k)
    res = None
    if residual is not None:
        res = residual.reshape(N, cout, Ho * Wo)
    out = _fused_conv_call(patches, w2d, b, cout, 1, mode, res)
    return out.reshape(N, cout, Ho, Wo)


def _subpixel_weight_bias(w_t, b):
    """Build the 4-phase (sub-pixel) weight for ConvTranspose2d(k=3,s=2,p=1,op=1).

    w_t: [Cin, Cout, 3, 3] (PyTorch ConvTranspose2d layout), b: [Cout].
    Returns W_big [4*Cout, Cin*4] (phase-major rows) and b_big [4*Cout]."""
    cin, cout = w_t.shape[0], w_t.shape[1]
    # equivalent stride-1 conv weight (flipped, in/out swapped)
    w_eq = jnp.flip(w_t, axis=(-2, -1)).transpose(1, 0, 2, 3)   # [Cout, Cin, 3, 3]
    # output row parity a=0 uses kernel row 1 on x[i]; a=1 uses rows 0 (x[i])
    # and 2 (x[i+1]); same for columns.  taps[phase] = ((delta, kernel_idx), ...)
    taps = {0: ((0, 1),), 1: ((0, 0), (1, 2))}
    blocks = []
    for a in (0, 1):
        for bp in (0, 1):
            wp = jnp.zeros((cout, cin, 2, 2), w_eq.dtype)
            for dy, kh in taps[a]:
                for dx, kw in taps[bp]:
                    wp = wp.at[:, :, dy, dx].set(w_eq[:, :, kh, kw])
            blocks.append(wp.reshape(cout, cin * 4))
    w_big = jnp.concatenate(blocks, axis=0)        # [4*Cout, Cin*4]
    b_big = jnp.tile(b, 4)                         # [4*Cout]
    return w_big, b_big


def conv_transpose2d_fused(x, w_t, b):
    """ConvTranspose2d(k=3,s=2,p=1,op=1) + InstanceNorm + ReLU via a 4-phase
    sub-pixel decomposition: one matmul over 2x2 patches of the low-res input
    (no structurally-zero zero-inserted input, ~4x fewer MACs)."""
    N, cin, H, W = x.shape
    cout = w_t.shape[1]
    w_big, b_big = _subpixel_weight_bias(w_t, b)               # [4*cout, cin*4]
    xp = jnp.pad(x, ((0, 0), (0, 0), (0, 1), (0, 1)))          # bottom/right halo
    patches, Ho, Wo = _im2col_t(xp, 2, 1)                      # Ho=H, Wo=W
    out = _fused_conv_call(patches, w_big, b_big, cout, 4, "in_relu")
    # phase-major rows -> interleave into the 2x upsampled grid
    out = out.reshape(N, 2, 2, cout, H, W)                     # (a, b, c, i, j)
    out = out.transpose(0, 3, 4, 1, 5, 2).reshape(N, cout, 2 * H, 2 * W)
    return out


def reflect_pad(x, p):
    return jnp.pad(x, ((0, 0), (0, 0), (p, p), (p, p)), mode="reflect")


def zero_pad(x, p):
    return jnp.pad(x, ((0, 0), (0, 0), (p, p), (p, p)))


# --------------------------- parameter init ----------------------------------

def _conv_weight(key, cout, cin, k):
    fan_in = cin * k * k
    kw, kb = jax.random.split(key)
    w = jax.random.normal(kw, (cout, cin, k, k), jnp.float32) / math.sqrt(fan_in)
    b = jax.random.normal(kb, (cout,), jnp.float32) * 0.01
    return w, b


def init_params(key, input_nc=1, output_nc=1, ngf=8, n_blocks=2):
    # use_bias=True everywhere because norm_layer == nn.InstanceNorm2d.
    params = {}
    keys = jax.random.split(key, 8 + 2 * n_blocks)
    ki = iter(keys)
    params["c0_w"], params["c0_b"] = _conv_weight(next(ki), ngf, input_nc, 7)
    for i in range(2):  # downsampling
        mult = 2 ** i
        params[f"down{i}_w"], params[f"down{i}_b"] = _conv_weight(
            next(ki), ngf * mult * 2, ngf * mult, 3)
    dim = ngf * 4
    for i in range(n_blocks):
        params[f"blk{i}_w1"], params[f"blk{i}_b1"] = _conv_weight(next(ki), dim, dim, 3)
        params[f"blk{i}_w2"], params[f"blk{i}_b2"] = _conv_weight(next(ki), dim, dim, 3)
    for i in range(2):  # upsampling: ConvTranspose2d weight is [Cin, Cout, k, k]
        mult = 2 ** (2 - i)
        cin, cout = ngf * mult, ngf * mult // 2
        kw, kb = jax.random.split(next(ki))
        params[f"up{i}_w"] = jax.random.normal(
            kw, (cin, cout, 3, 3), jnp.float32) / math.sqrt(cin * 9)
        params[f"up{i}_b"] = jax.random.normal(kb, (cout,), jnp.float32) * 0.01
    params["cf_w"], params["cf_b"] = _conv_weight(next(ki), output_nc, ngf, 7)
    return params


# --------------------------- forward pass -------------------------------------

def resnet_generator_forward(params, x, n_blocks=2):
    p = params
    # ReflectionPad2d(3) -> Conv2d(k=7) -> InstanceNorm -> ReLU   (one kernel)
    h = conv2d_fused(reflect_pad(x, 3), p["c0_w"], p["c0_b"], stride=1,
                     mode="in_relu")
    # two downsampling blocks: Conv2d(k=3, s=2, p=1) -> IN -> ReLU
    for i in range(2):
        h = conv2d_fused(zero_pad(h, 1), p[f"down{i}_w"], p[f"down{i}_b"],
                         stride=2, mode="in_relu")
    # ResnetBlocks (reflect padding, no dropout): out = x + IN(conv(relu(IN(conv(x)))))
    for i in range(n_blocks):
        res = h
        t = conv2d_fused(reflect_pad(h, 1), p[f"blk{i}_w1"], p[f"blk{i}_b1"],
                         mode="in_relu")
        h = conv2d_fused(reflect_pad(t, 1), p[f"blk{i}_w2"], p[f"blk{i}_b2"],
                         mode="in_residual", residual=res)
    # two upsampling blocks: ConvTranspose2d(k=3,s=2,p=1,op=1) -> IN -> ReLU
    for i in range(2):
        h = conv_transpose2d_fused(h, p[f"up{i}_w"], p[f"up{i}_b"])
    # ReflectionPad2d(3) -> Conv2d(k=7) -> Tanh   (tanh fused into the matmul kernel)
    h = conv2d_fused(reflect_pad(h, 3), p["cf_w"], p["cf_b"], mode="tanh")
    return h


# ------------------------------- main -----------------------------------------

if __name__ == "__main__":
    key = jax.random.PRNGKey(0)
    k_param, k_x = jax.random.split(key)

    INPUT_NC, OUTPUT_NC, NGF, N_BLOCKS = 1, 1, 8, 2
    params = init_params(k_param, INPUT_NC, OUTPUT_NC, NGF, N_BLOCKS)

    x = jax.random.normal(k_x, (2, INPUT_NC, 16, 16), jnp.float32)

    fwd = jax.jit(functools.partial(resnet_generator_forward, n_blocks=N_BLOCKS))
    out = fwd(params, x)
    out = jax.block_until_ready(out)

    assert out.shape == (2, OUTPUT_NC, 16, 16), out.shape
    assert bool(jnp.all(jnp.isfinite(out)))
    assert bool(jnp.all(jnp.abs(out) <= 1.0))  # tanh output range
    print("KERNEL_OK")
</pallas_src>

<mosaic_0001>
module attributes {stable_mosaic.version = 11 : i64} {
  func.func @_fused_conv_kernel(%arg0: i32, %arg1: memref<8x49xbf16, #tpu.memory_space<vmem>>, %arg2: memref<8x1xf32, #tpu.memory_space<vmem>>, %arg3: memref<1x49x256xbf16, #tpu.memory_space<vmem>>, %arg4: memref<1x8x256xf32, #tpu.memory_space<vmem>>) attributes {dimension_semantics = [#tpu.dimension_semantics<parallel>], iteration_bounds = array<i64: 2>, scalar_prefetch = 0 : i64, scratch_operands = 0 : i64, tpu.core_type = #tpu.core_type<tc>, window_params = [{pipeline_mode = #tpu.pipeline_mode<synchronous>, transform_indices = @transform_0, window_bounds = array<i64: 8, 49>}, {pipeline_mode = #tpu.pipeline_mode<synchronous>, transform_indices = @transform_1, window_bounds = array<i64: 8, 1>}, {transform_indices = @transform_2, window_bounds = array<i64: 1, 49, 256>}, {transform_indices = @transform_3, window_bounds = array<i64: 1, 8, 256>}]} {
    %c0 = arith.constant 0 : index
    %c0_0 = arith.constant 0 : index
    %c0_1 = arith.constant 0 : index
    %0 = vector.load %arg3[%c0, %c0_0, %c0_1] : memref<1x49x256xbf16, #tpu.memory_space<vmem>>, vector<1x49x256xbf16>
    %1 = vector.shape_cast %0 : vector<1x49x256xbf16> to vector<49x256xbf16>
    %c0_2 = arith.constant 0 : index
    %c0_3 = arith.constant 0 : index
    %2 = vector.load %arg1[%c0_2, %c0_3] : memref<8x49xbf16, #tpu.memory_space<vmem>>, vector<8x49xbf16>
    %cst = arith.constant dense<0.000000e+00> : vector<8x256xf32>
    %3 = tpu.matmul %2, %1, %cst {dimension_numbers = #tpu.dot_dimension_numbers<[1], [0], [0], [1], [0, 0, 1, 1], [], []>} : vector<8x49xbf16>, vector<49x256xbf16>, vector<8x256xf32> -> vector<8x256xf32>
    %c0_4 = arith.constant 0 : index
    %c0_5 = arith.constant 0 : index
    %4 = vector.load %arg2[%c0_4, %c0_5] : memref<8x1xf32, #tpu.memory_space<vmem>>, vector<8x1xf32>
    %5 = vector.broadcast %4 : vector<8x1xf32> to vector<8x256xf32>
    %6 = arith.addf %3, %5 : vector<8x256xf32>
    %cst_6 = arith.constant dense<0.000000e+00> : vector<8xf32>
    %7 = vector.multi_reduction <add>, %6, %cst_6 [1] : vector<8x256xf32> to vector<8xf32>
    %8 = vector.shape_cast %7 : vector<8xf32> to vector<8x1xf32>
    %9 = arith.mulf %6, %6 : vector<8x256xf32>
    %cst_7 = arith.constant dense<0.000000e+00> : vector<8xf32>
    %10 = vector.multi_reduction <add>, %9, %cst_7 [1] : vector<8x256xf32> to vector<8xf32>
    %11 = vector.shape_cast %10 : vector<8xf32> to vector<8x1xf32>
    %cst_8 = arith.constant 2.560000e+02 : f32
    %12 = vector.broadcast %cst_8 : f32 to vector<8x1xf32>
    %13 = arith.divf %8, %12 : vector<8x1xf32>
    %cst_9 = arith.constant 2.560000e+02 : f32
    %14 = vector.broadcast %cst_9 : f32 to vector<8x1xf32>
    %15 = arith.divf %11, %14 : vector<8x1xf32>
    %16 = arith.mulf %13, %13 : vector<8x1xf32>
    %17 = arith.subf %15, %16 : vector<8x1xf32>
    %cst_10 = arith.constant 9.99999974E-6 : f32
    %18 = vector.broadcast %cst_10 : f32 to vector<8x1xf32>
    %19 = arith.addf %17, %18 : vector<8x1xf32>
    %20 = math.rsqrt %19 : vector<8x1xf32>
    %21 = vector.broadcast %13 : vector<8x1xf32> to vector<8x256xf32>
    %22 = arith.subf %6, %21 : vector<8x256xf32>
    %23 = vector.broadcast %20 : vector<8x1xf32> to vector<8x256xf32>
    %24 = arith.mulf %22, %23 : vector<8x256xf32>
    %cst_11 = arith.constant 0.000000e+00 : f32
    %25 = vector.broadcast %cst_11 : f32 to vector<8x256xf32>
    %26 = arith.maximumf %24, %25 : vector<8x256xf32>
    %c0_12 = arith.constant 0 : index
    %c0_13 = arith.constant 0 : index
    %c0_14 = arith.constant 0 : index
    %27 = vector.load %arg4[%c0_12, %c0_13, %c0_14] : memref<1x8x256xf32, #tpu.memory_space<vmem>>, vector<1x8x256xf32>
    %28 = vector.shape_cast %27 : vector<1x8x256xf32> to vector<8x256xf32>
    %29 = vector.shape_cast %26 : vector<8x256xf32> to vector<1x8x256xf32>
    tpu.vector_store %arg4[%c0_12, %c0_13, %c0_14], %29 {strides = array<i32>} : memref<1x8x256xf32, #tpu.memory_space<vmem>>, vector<1x8x256xf32>,
    return
  }
  func.func @transform_0(%arg0: i32) -> (i32, i32) {
    %c0_i32 = arith.constant 0 : i32
    %c0_i32_0 = arith.constant 0 : i32
    %c0_i32_1 = arith.constant 0 : i32
    return %c0_i32, %c0_i32_0 : i32, i32
  }
  func.func @transform_1(%arg0: i32) -> (i32, i32) {
    %c0_i32 = arith.constant 0 : i32
    %c0_i32_0 = arith.constant 0 : i32
    %c0_i32_1 = arith.constant 0 : i32
    return %c0_i32, %c0_i32_0 : i32, i32
  }
  func.func @transform_2(%arg0: i32) -> (i32, i32, i32) {
    %c0_i32 = arith.constant 0 : i32
    %c0_i32_0 = arith.constant 0 : i32
    %c0_i32_1 = arith.constant 0 : i32
    return %arg0, %c0_i32, %c0_i32_0 : i32, i32, i32
  }
  func.func @transform_3(%arg0: i32) -> (i32, i32, i32) {
    %c0_i32 = arith.constant 0 : i32
    %c0_i32_0 = arith.constant 0 : i32
    %c0_i32_1 = arith.constant 0 : i32
    return %arg0, %c0_i32, %c0_i32_0 : i32, i32, i32
  }
}

module attributes {stable_mosaic.version = 11 : i64} {
  func.func @_fused_conv_kernel(%arg0: i32, %arg1: memref<16x72xbf16, #tpu.memory_space<vmem>>, %arg2: memref<16x1xf32, #tpu.memory_space<vmem>>, %arg3: memref<1x72x64xbf16, #tpu.memory_space<vmem>>, %arg4: memref<1x16x64xf32, #tpu.memory_space<vmem>>) attributes {dimension_semantics = [#tpu.dimension_semantics<parallel>], iteration_bounds = array<i64: 2>, scalar_prefetch = 0 : i64, scratch_operands = 0 : i64, tpu.core_type = #tpu.core_type<tc>, window_params = [{pipeline_mode = #tpu.pipeline_mode<synchronous>, transform_indices = @transform_0, window_bounds = array<i64: 16, 72>}, {pipeline_mode = #tpu.pipeline_mode<synchronous>, transform_indices = @transform_1, window_bounds = array<i64: 16, 1>}, {transform_indices = @transform_2, window_bounds = array<i64: 1, 72, 64>}, {transform_indices = @transform_3, window_bounds = array<i64: 1, 16, 64>}]} {
    %c0 = arith.constant 0 : index
    %c0_0 = arith.constant 0 : index
    %c0_1 = arith.constant 0 : index
    %0 = vector.load %arg3[%c0, %c0_0, %c0_1] : memref<1x72x64xbf16, #tpu.memory_space<vmem>>, vector<1x72x64xbf16>
    %1 = vector.shape_cast %0 : vector<1x72x64xbf16> to vector<72x64xbf16>
    %c0_2 = arith.constant 0 : index
    %c0_3 = arith.constant 0 : index
    %2 = vector.load %arg1[%c0_2, %c0_3] : memref<16x72xbf16, #tpu.memory_space<vmem>>, vector<16x72xbf16>
    %cst = arith.constant dense<0.000000e+00> : vector<16x64xf32>
    %3 = tpu.matmul %2, %1, %cst {dimension_numbers = #tpu.dot_dimension_numbers<[1], [0], [0], [1], [0, 0, 1, 1], [], []>} : vector<16x72xbf16>, vector<72x64xbf16>, vector<16x64xf32> -> vector<16x64xf32>
    %c0_4 = arith.constant 0 : index
    %c0_5 = arith.constant 0 : index
    %4 = vector.load %arg2[%c0_4, %c0_5] : memref<16x1xf32, #tpu.memory_space<vmem>>, vector<16x1xf32>
    %5 = vector.broadcast %4 : vector<16x1xf32> to vector<16x64xf32>
    %6 = arith.addf %3, %5 : vector<16x64xf32>
    %cst_6 = arith.constant dense<0.000000e+00> : vector<16xf32>
    %7 = vector.multi_reduction <add>, %6, %cst_6 [1] : vector<16x64xf32> to vector<16xf32>
    %8 = vector.shape_cast %7 : vector<16xf32> to vector<16x1xf32>
    %9 = arith.mulf %6, %6 : vector<16x64xf32>
    %cst_7 = arith.constant dense<0.000000e+00> : vector<16xf32>
    %10 = vector.multi_reduction <add>, %9, %cst_7 [1] : vector<16x64xf32> to vector<16xf32>
    %11 = vector.shape_cast %10 : vector<16xf32> to vector<16x1xf32>
    %cst_8 = arith.constant 6.400000e+01 : f32
    %12 = vector.broadcast %cst_8 : f32 to vector<16x1xf32>
    %13 = arith.divf %8, %12 : vector<16x1xf32>
    %cst_9 = arith.constant 6.400000e+01 : f32
    %14 = vector.broadcast %cst_9 : f32 to vector<16x1xf32>
    %15 = arith.divf %11, %14 : vector<16x1xf32>
    %16 = arith.mulf %13, %13 : vector<16x1xf32>
    %17 = arith.subf %15, %16 : vector<16x1xf32>
    %cst_10 = arith.constant 9.99999974E-6 : f32
    %18 = vector.broadcast %cst_10 : f32 to vector<16x1xf32>
    %19 = arith.addf %17, %18 : vector<16x1xf32>
    %20 = math.rsqrt %19 : vector<16x1xf32>
    %21 = vector.broadcast %13 : vector<16x1xf32> to vector<16x64xf32>
    %22 = arith.subf %6, %21 : vector<16x64xf32>
    %23 = vector.broadcast %20 : vector<16x1xf32> to vector<16x64xf32>
    %24 = arith.mulf %22, %23 : vector<16x64xf32>
    %cst_11 = arith.constant 0.000000e+00 : f32
    %25 = vector.broadcast %cst_11 : f32 to vector<16x64xf32>
    %26 = arith.maximumf %24, %25 : vector<16x64xf32>
    %c0_12 = arith.constant 0 : index
    %c0_13 = arith.constant 0 : index
    %c0_14 = arith.constant 0 : index
    %27 = vector.load %arg4[%c0_12, %c0_13, %c0_14] : memref<1x16x64xf32, #tpu.memory_space<vmem>>, vector<1x16x64xf32>
    %28 = vector.shape_cast %27 : vector<1x16x64xf32> to vector<16x64xf32>
    %29 = vector.shape_cast %26 : vector<16x64xf32> to vector<1x16x64xf32>
    tpu.vector_store %arg4[%c0_12, %c0_13, %c0_14], %29 {strides = array<i32>} : memref<1x16x64xf32, #tpu.memory_space<vmem>>, vector<1x16x64xf32>,
    return
  }
  func.func @transform_0(%arg0: i32) -> (i32, i32) {
    %c0_i32 = arith.constant 0 : i32
    %c0_i32_0 = arith.constant 0 : i32
    %c0_i32_1 = arith.constant 0 : i32
    return %c0_i32, %c0_i32_0 : i32, i32
  }
  func.func @transform_1(%arg0: i32) -> (i32, i32) {
    %c0_i32 = arith.constant 0 : i32
    %c0_i32_0 = arith.constant 0 : i32
    %c0_i32_1 = arith.constant 0 : i32
    return %c0_i32, %c0_i32_0 : i32, i32
  }
  func.func @transform_2(%arg0: i32) -> (i32, i32, i32) {
    %c0_i32 = arith.constant 0 : i32
    %c0_i32_0 = arith.constant 0 : i32
    %c0_i32_1 = arith.constant 0 : i32
    return %arg0, %c0_i32, %c0_i32_0 : i32, i32, i32
  }
  func.func @transform_3(%arg0: i32) -> (i32, i32, i32) {
    %c0_i32 = arith.constant 0 : i32
    %c0_i32_0 = arith.constant 0 : i32
    %c0_i32_1 = arith.constant 0 : i32
    return %arg0, %c0_i32, %c0_i32_0 : i32, i32, i32
  }
}

module attributes {stable_mosaic.version = 11 : i64} {
  func.func @_fused_conv_kernel(%arg0: i32, %arg1: memref<32x144xbf16, #tpu.memory_space<vmem>>, %arg2: memref<32x1xf32, #tpu.memory_space<vmem>>, %arg3: memref<1x144x16xbf16, #tpu.memory_space<vmem>>, %arg4: memref<1x32x16xf32, #tpu.memory_space<vmem>>) attributes {dimension_semantics = [#tpu.dimension_semantics<parallel>], iteration_bounds = array<i64: 2>, scalar_prefetch = 0 : i64, scratch_operands = 0 : i64, tpu.core_type = #tpu.core_type<tc>, window_params = [{pipeline_mode = #tpu.pipeline_mode<synchronous>, transform_indices = @transform_0, window_bounds = array<i64: 32, 144>}, {pipeline_mode = #tpu.pipeline_mode<synchronous>, transform_indices = @transform_1, window_bounds = array<i64: 32, 1>}, {transform_indices = @transform_2, window_bounds = array<i64: 1, 144, 16>}, {transform_indices = @transform_3, window_bounds = array<i64: 1, 32, 16>}]} {
    %c0 = arith.constant 0 : index
    %c0_0 = arith.constant 0 : index
    %c0_1 = arith.constant 0 : index
    %0 = vector.load %arg3[%c0, %c0_0, %c0_1] : memref<1x144x16xbf16, #tpu.memory_space<vmem>>, vector<1x144x16xbf16>
    %1 = vector.shape_cast %0 : vector<1x144x16xbf16> to vector<144x16xbf16>
    %c0_2 = arith.constant 0 : index
    %c0_3 = arith.constant 0 : index
    %2 = vector.load %arg1[%c0_2, %c0_3] : memref<32x144xbf16, #tpu.memory_space<vmem>>, vector<32x144xbf16>
    %cst = arith.constant dense<0.000000e+00> : vector<32x16xf32>
    %3 = tpu.matmul %2, %1, %cst {dimension_numbers = #tpu.dot_dimension_numbers<[1], [0], [0], [1], [0, 0, 1, 1], [], []>} : vector<32x144xbf16>, vector<144x16xbf16>, vector<32x16xf32> -> vector<32x16xf32>
    %c0_4 = arith.constant 0 : index
    %c0_5 = arith.constant 0 : index
    %4 = vector.load %arg2[%c0_4, %c0_5] : memref<32x1xf32, #tpu.memory_space<vmem>>, vector<32x1xf32>
    %5 = vector.broadcast %4 : vector<32x1xf32> to vector<32x16xf32>
    %6 = arith.addf %3, %5 : vector<32x16xf32>
    %cst_6 = arith.constant dense<0.000000e+00> : vector<32xf32>
    %7 = vector.multi_reduction <add>, %6, %cst_6 [1] : vector<32x16xf32> to vector<32xf32>
    %8 = vector.shape_cast %7 : vector<32xf32> to vector<32x1xf32>
    %9 = arith.mulf %6, %6 : vector<32x16xf32>
    %cst_7 = arith.constant dense<0.000000e+00> : vector<32xf32>
    %10 = vector.multi_reduction <add>, %9, %cst_7 [1] : vector<32x16xf32> to vector<32xf32>
    %11 = vector.shape_cast %10 : vector<32xf32> to vector<32x1xf32>
    %cst_8 = arith.constant 1.600000e+01 : f32
    %12 = vector.broadcast %cst_8 : f32 to vector<32x1xf32>
    %13 = arith.divf %8, %12 : vector<32x1xf32>
    %cst_9 = arith.constant 1.600000e+01 : f32
    %14 = vector.broadcast %cst_9 : f32 to vector<32x1xf32>
    %15 = arith.divf %11, %14 : vector<32x1xf32>
    %16 = arith.mulf %13, %13 : vector<32x1xf32>
    %17 = arith.subf %15, %16 : vector<32x1xf32>
    %cst_10 = arith.constant 9.99999974E-6 : f32
    %18 = vector.broadcast %cst_10 : f32 to vector<32x1xf32>
    %19 = arith.addf %17, %18 : vector<32x1xf32>
    %20 = math.rsqrt %19 : vector<32x1xf32>
    %21 = vector.broadcast %13 : vector<32x1xf32> to vector<32x16xf32>
    %22 = arith.subf %6, %21 : vector<32x16xf32>
    %23 = vector.broadcast %20 : vector<32x1xf32> to vector<32x16xf32>
    %24 = arith.mulf %22, %23 : vector<32x16xf32>
    %cst_11 = arith.constant 0.000000e+00 : f32
    %25 = vector.broadcast %cst_11 : f32 to vector<32x16xf32>
    %26 = arith.maximumf %24, %25 : vector<32x16xf32>
    %c0_12 = arith.constant 0 : index
    %c0_13 = arith.constant 0 : index
    %c0_14 = arith.constant 0 : index
    %27 = vector.load %arg4[%c0_12, %c0_13, %c0_14] : memref<1x32x16xf32, #tpu.memory_space<vmem>>, vector<1x32x16xf32>
    %28 = vector.shape_cast %27 : vector<1x32x16xf32> to vector<32x16xf32>
    %29 = vector.shape_cast %26 : vector<32x16xf32> to vector<1x32x16xf32>
    tpu.vector_store %arg4[%c0_12, %c0_13, %c0_14], %29 {strides = array<i32>} : memref<1x32x16xf32, #tpu.memory_space<vmem>>, vector<1x32x16xf32>,
    return
  }
  func.func @transform_0(%arg0: i32) -> (i32, i32) {
    %c0_i32 = arith.constant 0 : i32
    %c0_i32_0 = arith.constant 0 : i32
    %c0_i32_1 = arith.constant 0 : i32
    return %c0_i32, %c0_i32_0 : i32, i32
  }
  func.func @transform_1(%arg0: i32) -> (i32, i32) {
    %c0_i32 = arith.constant 0 : i32
    %c0_i32_0 = arith.constant 0 : i32
    %c0_i32_1 = arith.constant 0 : i32
    return %c0_i32, %c0_i32_0 : i32, i32
  }
  func.func @transform_2(%arg0: i32) -> (i32, i32, i32) {
    %c0_i32 = arith.constant 0 : i32
    %c0_i32_0 = arith.constant 0 : i32
    %c0_i32_1 = arith.constant 0 : i32
    return %arg0, %c0_i32, %c0_i32_0 : i32, i32, i32
  }
  func.func @transform_3(%arg0: i32) -> (i32, i32, i32) {
    %c0_i32 = arith.constant 0 : i32
    %c0_i32_0 = arith.constant 0 : i32
    %c0_i32_1 = arith.constant 0 : i32
    return %arg0, %c0_i32, %c0_i32_0 : i32, i32, i32
  }
}

module attributes {stable_mosaic.version = 11 : i64} {
  func.func @_fused_conv_kernel(%arg0: i32, %arg1: memref<32x288xbf16, #tpu.memory_space<vmem>>, %arg2: memref<32x1xf32, #tpu.memory_space<vmem>>, %arg3: memref<1x288x16xbf16, #tpu.memory_space<vmem>>, %arg4: memref<1x32x16xf32, #tpu.memory_space<vmem>>) attributes {dimension_semantics = [#tpu.dimension_semantics<parallel>], iteration_bounds = array<i64: 2>, scalar_prefetch = 0 : i64, scratch_operands = 0 : i64, tpu.core_type = #tpu.core_type<tc>, window_params = [{pipeline_mode = #tpu.pipeline_mode<synchronous>, transform_indices = @transform_0, window_bounds = array<i64: 32, 288>}, {pipeline_mode = #tpu.pipeline_mode<synchronous>, transform_indices = @transform_1, window_bounds = array<i64: 32, 1>}, {transform_indices = @transform_2, window_bounds = array<i64: 1, 288, 16>}, {transform_indices = @transform_3, window_bounds = array<i64: 1, 32, 16>}]} {
    %c0 = arith.constant 0 : index
    %c0_0 = arith.constant 0 : index
    %c0_1 = arith.constant 0 : index
    %0 = vector.load %arg3[%c0, %c0_0, %c0_1] : memref<1x288x16xbf16, #tpu.memory_space<vmem>>, vector<1x288x16xbf16>
    %1 = vector.shape_cast %0 : vector<1x288x16xbf16> to vector<288x16xbf16>
    %c0_2 = arith.constant 0 : index
    %c0_3 = arith.constant 0 : index
    %2 = vector.load %arg1[%c0_2, %c0_3] : memref<32x288xbf16, #tpu.memory_space<vmem>>, vector<32x288xbf16>
    %cst = arith.constant dense<0.000000e+00> : vector<32x16xf32>
    %3 = tpu.matmul %2, %1, %cst {dimension_numbers = #tpu.dot_dimension_numbers<[1], [0], [0], [1], [0, 0, 1, 1], [], []>} : vector<32x288xbf16>, vector<288x16xbf16>, vector<32x16xf32> -> vector<32x16xf32>
    %c0_4 = arith.constant 0 : index
    %c0_5 = arith.constant 0 : index
    %4 = vector.load %arg2[%c0_4, %c0_5] : memref<32x1xf32, #tpu.memory_space<vmem>>, vector<32x1xf32>
    %5 = vector.broadcast %4 : vector<32x1xf32> to vector<32x16xf32>
    %6 = arith.addf %3, %5 : vector<32x16xf32>
    %cst_6 = arith.constant dense<0.000000e+00> : vector<32xf32>
    %7 = vector.multi_reduction <add>, %6, %cst_6 [1] : vector<32x16xf32> to vector<32xf32>
    %8 = vector.shape_cast %7 : vector<32xf32> to vector<32x1xf32>
    %9 = arith.mulf %6, %6 : vector<32x16xf32>
    %cst_7 = arith.constant dense<0.000000e+00> : vector<32xf32>
    %10 = vector.multi_reduction <add>, %9, %cst_7 [1] : vector<32x16xf32> to vector<32xf32>
    %11 = vector.shape_cast %10 : vector<32xf32> to vector<32x1xf32>
    %cst_8 = arith.constant 1.600000e+01 : f32
    %12 = vector.broadcast %cst_8 : f32 to vector<32x1xf32>
    %13 = arith.divf %8, %12 : vector<32x1xf32>
    %cst_9 = arith.constant 1.600000e+01 : f32
    %14 = vector.broadcast %cst_9 : f32 to vector<32x1xf32>
    %15 = arith.divf %11, %14 : vector<32x1xf32>
    %16 = arith.mulf %13, %13 : vector<32x1xf32>
    %17 = arith.subf %15, %16 : vector<32x1xf32>
    %cst_10 = arith.constant 9.99999974E-6 : f32
    %18 = vector.broadcast %cst_10 : f32 to vector<32x1xf32>
    %19 = arith.addf %17, %18 : vector<32x1xf32>
    %20 = math.rsqrt %19 : vector<32x1xf32>
    %21 = vector.broadcast %13 : vector<32x1xf32> to vector<32x16xf32>
    %22 = arith.subf %6, %21 : vector<32x16xf32>
    %23 = vector.broadcast %20 : vector<32x1xf32> to vector<32x16xf32>
    %24 = arith.mulf %22, %23 : vector<32x16xf32>
    %cst_11 = arith.constant 0.000000e+00 : f32
    %25 = vector.broadcast %cst_11 : f32 to vector<32x16xf32>
    %26 = arith.maximumf %24, %25 : vector<32x16xf32>
    %c0_12 = arith.constant 0 : index
    %c0_13 = arith.constant 0 : index
    %c0_14 = arith.constant 0 : index
    %27 = vector.load %arg4[%c0_12, %c0_13, %c0_14] : memref<1x32x16xf32, #tpu.memory_space<vmem>>, vector<1x32x16xf32>
    %28 = vector.shape_cast %27 : vector<1x32x16xf32> to vector<32x16xf32>
    %29 = vector.shape_cast %26 : vector<32x16xf32> to vector<1x32x16xf32>
    tpu.vector_store %arg4[%c0_12, %c0_13, %c0_14], %29 {strides = array<i32>} : memref<1x32x16xf32, #tpu.memory_space<vmem>>, vector<1x32x16xf32>,
    return
  }
  func.func @transform_0(%arg0: i32) -> (i32, i32) {
    %c0_i32 = arith.constant 0 : i32
    %c0_i32_0 = arith.constant 0 : i32
    %c0_i32_1 = arith.constant 0 : i32
    return %c0_i32, %c0_i32_0 : i32, i32
  }
  func.func @transform_1(%arg0: i32) -> (i32, i32) {
    %c0_i32 = arith.constant 0 : i32
    %c0_i32_0 = arith.constant 0 : i32
    %c0_i32_1 = arith.constant 0 : i32
    return %c0_i32, %c0_i32_0 : i32, i32
  }
  func.func @transform_2(%arg0: i32) -> (i32, i32, i32) {
    %c0_i32 = arith.constant 0 : i32
    %c0_i32_0 = arith.constant 0 : i32
    %c0_i32_1 = arith.constant 0 : i32
    return %arg0, %c0_i32, %c0_i32_0 : i32, i32, i32
  }
  func.func @transform_3(%arg0: i32) -> (i32, i32, i32) {
    %c0_i32 = arith.constant 0 : i32
    %c0_i32_0 = arith.constant 0 : i32
    %c0_i32_1 = arith.constant 0 : i32
    return %arg0, %c0_i32, %c0_i32_0 : i32, i32, i32
  }
}

module attributes {stable_mosaic.version = 11 : i64} {
  func.func @_fused_conv_kernel(%arg0: i32, %arg1: memref<32x288xbf16, #tpu.memory_space<vmem>>, %arg2: memref<32x1xf32, #tpu.memory_space<vmem>>, %arg3: memref<1x288x16xbf16, #tpu.memory_space<vmem>>, %arg4: memref<1x32x16xf32, #tpu.memory_space<vmem>>, %arg5: memref<1x32x16xf32, #tpu.memory_space<vmem>>) attributes {dimension_semantics = [#tpu.dimension_semantics<parallel>], iteration_bounds = array<i64: 2>, scalar_prefetch = 0 : i64, scratch_operands = 0 : i64, tpu.core_type = #tpu.core_type<tc>, window_params = [{pipeline_mode = #tpu.pipeline_mode<synchronous>, transform_indices = @transform_0, window_bounds = array<i64: 32, 288>}, {pipeline_mode = #tpu.pipeline_mode<synchronous>, transform_indices = @transform_1, window_bounds = array<i64: 32, 1>}, {transform_indices = @transform_2, window_bounds = array<i64: 1, 288, 16>}, {transform_indices = @transform_3, window_bounds = array<i64: 1, 32, 16>}, {transform_indices = @transform_4, window_bounds = array<i64: 1, 32, 16>}]} {
    %c0 = arith.constant 0 : index
    %c0_0 = arith.constant 0 : index
    %c0_1 = arith.constant 0 : index
    %0 = vector.load %arg3[%c0, %c0_0, %c0_1] : memref<1x288x16xbf16, #tpu.memory_space<vmem>>, vector<1x288x16xbf16>
    %1 = vector.shape_cast %0 : vector<1x288x16xbf16> to vector<288x16xbf16>
    %c0_2 = arith.constant 0 : index
    %c0_3 = arith.constant 0 : index
    %2 = vector.load %arg1[%c0_2, %c0_3] : memref<32x288xbf16, #tpu.memory_space<vmem>>, vector<32x288xbf16>
    %cst = arith.constant dense<0.000000e+00> : vector<32x16xf32>
    %3 = tpu.matmul %2, %1, %cst {dimension_numbers = #tpu.dot_dimension_numbers<[1], [0], [0], [1], [0, 0, 1, 1], [], []>} : vector<32x288xbf16>, vector<288x16xbf16>, vector<32x16xf32> -> vector<32x16xf32>
    %c0_4 = arith.constant 0 : index
    %c0_5 = arith.constant 0 : index
    %4 = vector.load %arg2[%c0_4, %c0_5] : memref<32x1xf32, #tpu.memory_space<vmem>>, vector<32x1xf32>
    %5 = vector.broadcast %4 : vector<32x1xf32> to vector<32x16xf32>
    %6 = arith.addf %3, %5 : vector<32x16xf32>
    %cst_6 = arith.constant dense<0.000000e+00> : vector<32xf32>
    %7 = vector.multi_reduction <add>, %6, %cst_6 [1] : vector<32x16xf32> to vector<32xf32>
    %8 = vector.shape_cast %7 : vector<32xf32> to vector<32x1xf32>
    %9 = arith.mulf %6, %6 : vector<32x16xf32>
    %cst_7 = arith.constant dense<0.000000e+00> : vector<32xf32>
    %10 = vector.multi_reduction <add>, %9, %cst_7 [1] : vector<32x16xf32> to vector<32xf32>
    %11 = vector.shape_cast %10 : vector<32xf32> to vector<32x1xf32>
    %cst_8 = arith.constant 1.600000e+01 : f32
    %12 = vector.broadcast %cst_8 : f32 to vector<32x1xf32>
    %13 = arith.divf %8, %12 : vector<32x1xf32>
    %cst_9 = arith.constant 1.600000e+01 : f32
    %14 = vector.broadcast %cst_9 : f32 to vector<32x1xf32>
    %15 = arith.divf %11, %14 : vector<32x1xf32>
    %16 = arith.mulf %13, %13 : vector<32x1xf32>
    %17 = arith.subf %15, %16 : vector<32x1xf32>
    %cst_10 = arith.constant 9.99999974E-6 : f32
    %18 = vector.broadcast %cst_10 : f32 to vector<32x1xf32>
    %19 = arith.addf %17, %18 : vector<32x1xf32>
    %20 = math.rsqrt %19 : vector<32x1xf32>
    %21 = vector.broadcast %13 : vector<32x1xf32> to vector<32x16xf32>
    %22 = arith.subf %6, %21 : vector<32x16xf32>
    %23 = vector.broadcast %20 : vector<32x1xf32> to vector<32x16xf32>
    %24 = arith.mulf %22, %23 : vector<32x16xf32>
    %c0_11 = arith.constant 0 : index
    %c0_12 = arith.constant 0 : index
    %c0_13 = arith.constant 0 : index
    %25 = vector.load %arg4[%c0_11, %c0_12, %c0_13] : memref<1x32x16xf32, #tpu.memory_space<vmem>>, vector<1x32x16xf32>
    %26 = vector.shape_cast %25 : vector<1x32x16xf32> to vector<32x16xf32>
    %27 = arith.addf %24, %26 : vector<32x16xf32>
    %c0_14 = arith.constant 0 : index
    %c0_15 = arith.constant 0 : index
    %c0_16 = arith.constant 0 : index
    %28 = vector.load %arg5[%c0_14, %c0_15, %c0_16] : memref<1x32x16xf32, #tpu.memory_space<vmem>>, vector<1x32x16xf32>
    %29 = vector.shape_cast %28 : vector<1x32x16xf32> to vector<32x16xf32>
    %30 = vector.shape_cast %27 : vector<32x16xf32> to vector<1x32x16xf32>
    tpu.vector_store %arg5[%c0_14, %c0_15, %c0_16], %30 {strides = array<i32>} : memref<1x32x16xf32, #tpu.memory_space<vmem>>, vector<1x32x16xf32>,
    return
  }
  func.func @transform_0(%arg0: i32) -> (i32, i32) {
    %c0_i32 = arith.constant 0 : i32
    %c0_i32_0 = arith.constant 0 : i32
    %c0_i32_1 = arith.constant 0 : i32
    return %c0_i32, %c0_i32_0 : i32, i32
  }
  func.func @transform_1(%arg0: i32) -> (i32, i32) {
    %c0_i32 = arith.constant 0 : i32
    %c0_i32_0 = arith.constant 0 : i32
    %c0_i32_1 = arith.constant 0 : i32
    return %c0_i32, %c0_i32_0 : i32, i32
  }
  func.func @transform_2(%arg0: i32) -> (i32, i32, i32) {
    %c0_i32 = arith.constant 0 : i32
    %c0_i32_0 = arith.constant 0 : i32
    %c0_i32_1 = arith.constant 0 : i32
    return %arg0, %c0_i32, %c0_i32_0 : i32, i32, i32
  }
  func.func @transform_3(%arg0: i32) -> (i32, i32, i32) {
    %c0_i32 = arith.constant 0 : i32
    %c0_i32_0 = arith.constant 0 : i32
    %c0_i32_1 = arith.constant 0 : i32
    return %arg0, %c0_i32, %c0_i32_0 : i32, i32, i32
  }
  func.func @transform_4(%arg0: i32) -> (i32, i32, i32) {
    %c0_i32 = arith.constant 0 : i32
    %c0_i32_0 = arith.constant 0 : i32
    %c0_i32_1 = arith.constant 0 : i32
    return %arg0, %c0_i32, %c0_i32_0 : i32, i32, i32
  }
}

module attributes {stable_mosaic.version = 11 : i64} {
  func.func @_fused_conv_kernel(%arg0: i32, %arg1: memref<64x128xbf16, #tpu.memory_space<vmem>>, %arg2: memref<64x1xf32, #tpu.memory_space<vmem>>, %arg3: memref<1x128x16xbf16, #tpu.memory_space<vmem>>, %arg4: memref<1x64x16xf32, #tpu.memory_space<vmem>>) attributes {dimension_semantics = [#tpu.dimension_semantics<parallel>], iteration_bounds = array<i64: 2>, scalar_prefetch = 0 : i64, scratch_operands = 0 : i64, tpu.core_type = #tpu.core_type<tc>, window_params = [{pipeline_mode = #tpu.pipeline_mode<synchronous>, transform_indices = @transform_0, window_bounds = array<i64: 64, 128>}, {pipeline_mode = #tpu.pipeline_mode<synchronous>, transform_indices = @transform_1, window_bounds = array<i64: 64, 1>}, {transform_indices = @transform_2, window_bounds = array<i64: 1, 128, 16>}, {transform_indices = @transform_3, window_bounds = array<i64: 1, 64, 16>}]} {
    %c0 = arith.constant 0 : index
    %c0_0 = arith.constant 0 : index
    %c0_1 = arith.constant 0 : index
    %0 = vector.load %arg3[%c0, %c0_0, %c0_1] : memref<1x128x16xbf16, #tpu.memory_space<vmem>>, vector<1x128x16xbf16>
    %1 = vector.shape_cast %0 : vector<1x128x16xbf16> to vector<128x16xbf16>
    %c0_2 = arith.constant 0 : index
    %c0_3 = arith.constant 0 : index
    %2 = vector.load %arg1[%c0_2, %c0_3] : memref<64x128xbf16, #tpu.memory_space<vmem>>, vector<64x128xbf16>
    %cst = arith.constant dense<0.000000e+00> : vector<64x16xf32>
    %3 = tpu.matmul %2, %1, %cst {dimension_numbers = #tpu.dot_dimension_numbers<[1], [0], [0], [1], [0, 0, 1, 1], [], []>} : vector<64x128xbf16>, vector<128x16xbf16>, vector<64x16xf32> -> vector<64x16xf32>
    %c0_4 = arith.constant 0 : index
    %c0_5 = arith.constant 0 : index
    %4 = vector.load %arg2[%c0_4, %c0_5] : memref<64x1xf32, #tpu.memory_space<vmem>>, vector<64x1xf32>
    %5 = vector.broadcast %4 : vector<64x1xf32> to vector<64x16xf32>
    %6 = arith.addf %3, %5 : vector<64x16xf32>
    %cst_6 = arith.constant dense<0.000000e+00> : vector<64xf32>
    %7 = vector.multi_reduction <add>, %6, %cst_6 [1] : vector<64x16xf32> to vector<64xf32>
    %8 = vector.shape_cast %7 : vector<64xf32> to vector<64x1xf32>
    %9 = arith.mulf %6, %6 : vector<64x16xf32>
    %cst_7 = arith.constant dense<0.000000e+00> : vector<64xf32>
    %10 = vector.multi_reduction <add>, %9, %cst_7 [1] : vector<64x16xf32> to vector<64xf32>
    %11 = vector.shape_cast %10 : vector<64xf32> to vector<64x1xf32>
    %12 = vector.extract_strided_slice %8 {offsets = [0, 0], sizes = [16, 1], strides = [1, 1]} : vector<64x1xf32> to vector<16x1xf32>
    %13 = vector.extract_strided_slice %11 {offsets = [0, 0], sizes = [16, 1], strides = [1, 1]} : vector<64x1xf32> to vector<16x1xf32>
    %14 = vector.extract_strided_slice %8 {offsets = [16, 0], sizes = [16, 1], strides = [1, 1]} : vector<64x1xf32> to vector<16x1xf32>
    %15 = arith.addf %12, %14 : vector<16x1xf32>
    %16 = vector.extract_strided_slice %11 {offsets = [16, 0], sizes = [16, 1], strides = [1, 1]} : vector<64x1xf32> to vector<16x1xf32>
    %17 = arith.addf %13, %16 : vector<16x1xf32>
    %18 = vector.extract_strided_slice %8 {offsets = [32, 0], sizes = [16, 1], strides = [1, 1]} : vector<64x1xf32> to vector<16x1xf32>
    %19 = arith.addf %15, %18 : vector<16x1xf32>
    %20 = vector.extract_strided_slice %11 {offsets = [32, 0], sizes = [16, 1], strides = [1, 1]} : vector<64x1xf32> to vector<16x1xf32>
    %21 = arith.addf %17, %20 : vector<16x1xf32>
    %22 = vector.extract_strided_slice %8 {offsets = [48, 0], sizes = [16, 1], strides = [1, 1]} : vector<64x1xf32> to vector<16x1xf32>
    %23 = arith.addf %19, %22 : vector<16x1xf32>
    %24 = vector.extract_strided_slice %11 {offsets = [48, 0], sizes = [16, 1], strides = [1, 1]} : vector<64x1xf32> to vector<16x1xf32>
    %25 = arith.addf %21, %24 : vector<16x1xf32>
    %cst_8 = arith.constant 6.400000e+01 : f32
    %26 = vector.broadcast %cst_8 : f32 to vector<16x1xf32>
    %27 = arith.divf %23, %26 : vector<16x1xf32>
    %cst_9 = arith.constant 6.400000e+01 : f32
    %28 = vector.broadcast %cst_9 : f32 to vector<16x1xf32>
    %29 = arith.divf %25, %28 : vector<16x1xf32>
    %30 = arith.mulf %27, %27 : vector<16x1xf32>
    %31 = arith.subf %29, %30 : vector<16x1xf32>
    %cst_10 = arith.constant 9.99999974E-6 : f32
    %32 = vector.broadcast %cst_10 : f32 to vector<16x1xf32>
    %33 = arith.addf %31, %32 : vector<16x1xf32>
    %34 = math.rsqrt %33 : vector<16x1xf32>
    %35 = tpu.concatenate %27, %27, %27, %27 in 0 : vector<16x1xf32>, vector<16x1xf32>, vector<16x1xf32>, vector<16x1xf32> -> vector<64x1xf32>
    %36 = tpu.concatenate %34, %34, %34, %34 in 0 : vector<16x1xf32>, vector<16x1xf32>, vector<16x1xf32>, vector<16x1xf32> -> vector<64x1xf32>
    %37 = vector.broadcast %35 : vector<64x1xf32> to vector<64x16xf32>
    %38 = arith.subf %6, %37 : vector<64x16xf32>
    %39 = vector.broadcast %36 : vector<64x1xf32> to vector<64x16xf32>
    %40 = arith.mulf %38, %39 : vector<64x16xf32>
    %cst_11 = arith.constant 0.000000e+00 : f32
    %41 = vector.broadcast %cst_11 : f32 to vector<64x16xf32>
    %42 = arith.maximumf %40, %41 : vector<64x16xf32>
    %c0_12 = arith.constant 0 : index
    %c0_13 = arith.constant 0 : index
    %c0_14 = arith.constant 0 : index
    %43 = vector.load %arg4[%c0_12, %c0_13, %c0_14] : memref<1x64x16xf32, #tpu.memory_space<vmem>>, vector<1x64x16xf32>
    %44 = vector.shape_cast %43 : vector<1x64x16xf32> to vector<64x16xf32>
    %45 = vector.shape_cast %42 : vector<64x16xf32> to vector<1x64x16xf32>
    tpu.vector_store %arg4[%c0_12, %c0_13, %c0_14], %45 {strides = array<i32>} : memref<1x64x16xf32, #tpu.memory_space<vmem>>, vector<1x64x16xf32>,
    return
  }
  func.func @transform_0(%arg0: i32) -> (i32, i32) {
    %c0_i32 = arith.constant 0 : i32
    %c0_i32_0 = arith.constant 0 : i32
    %c0_i32_1 = arith.constant 0 : i32
    return %c0_i32, %c0_i32_0 : i32, i32
  }
  func.func @transform_1(%arg0: i32) -> (i32, i32) {
    %c0_i32 = arith.constant 0 : i32
    %c0_i32_0 = arith.constant 0 : i32
    %c0_i32_1 = arith.constant 0 : i32
    return %c0_i32, %c0_i32_0 : i32, i32
  }
  func.func @transform_2(%arg0: i32) -> (i32, i32, i32) {
    %c0_i32 = arith.constant 0 : i32
    %c0_i32_0 = arith.constant 0 : i32
    %c0_i32_1 = arith.constant 0 : i32
    return %arg0, %c0_i32, %c0_i32_0 : i32, i32, i32
  }
  func.func @transform_3(%arg0: i32) -> (i32, i32, i32) {
    %c0_i32 = arith.constant 0 : i32
    %c0_i32_0 = arith.constant 0 : i32
    %c0_i32_1 = arith.constant 0 : i32
    return %arg0, %c0_i32, %c0_i32_0 : i32, i32, i32
  }
}

module attributes {stable_mosaic.version = 11 : i64} {
  func.func @_fused_conv_kernel(%arg0: i32, %arg1: memref<32x64xbf16, #tpu.memory_space<vmem>>, %arg2: memref<32x1xf32, #tpu.memory_space<vmem>>, %arg3: memref<1x64x64xbf16, #tpu.memory_space<vmem>>, %arg4: memref<1x32x64xf32, #tpu.memory_space<vmem>>) attributes {dimension_semantics = [#tpu.dimension_semantics<parallel>], iteration_bounds = array<i64: 2>, scalar_prefetch = 0 : i64, scratch_operands = 0 : i64, tpu.core_type = #tpu.core_type<tc>, window_params = [{pipeline_mode = #tpu.pipeline_mode<synchronous>, transform_indices = @transform_0, window_bounds = array<i64: 32, 64>}, {pipeline_mode = #tpu.pipeline_mode<synchronous>, transform_indices = @transform_1, window_bounds = array<i64: 32, 1>}, {transform_indices = @transform_2, window_bounds = array<i64: 1, 64, 64>}, {transform_indices = @transform_3, window_bounds = array<i64: 1, 32, 64>}]} {
    %c0 = arith.constant 0 : index
    %c0_0 = arith.constant 0 : index
    %c0_1 = arith.constant 0 : index
    %0 = vector.load %arg3[%c0, %c0_0, %c0_1] : memref<1x64x64xbf16, #tpu.memory_space<vmem>>, vector<1x64x64xbf16>
    %1 = vector.shape_cast %0 : vector<1x64x64xbf16> to vector<64x64xbf16>
    %c0_2 = arith.constant 0 : index
    %c0_3 = arith.constant 0 : index
    %2 = vector.load %arg1[%c0_2, %c0_3] : memref<32x64xbf16, #tpu.memory_space<vmem>>, vector<32x64xbf16>
    %cst = arith.constant dense<0.000000e+00> : vector<32x64xf32>
    %3 = tpu.matmul %2, %1, %cst {dimension_numbers = #tpu.dot_dimension_numbers<[1], [0], [0], [1], [0, 0, 1, 1], [], []>} : vector<32x64xbf16>, vector<64x64xbf16>, vector<32x64xf32> -> vector<32x64xf32>
    %c0_4 = arith.constant 0 : index
    %c0_5 = arith.constant 0 : index
    %4 = vector.load %arg2[%c0_4, %c0_5] : memref<32x1xf32, #tpu.memory_space<vmem>>, vector<32x1xf32>
    %5 = vector.broadcast %4 : vector<32x1xf32> to vector<32x64xf32>
    %6 = arith.addf %3, %5 : vector<32x64xf32>
    %cst_6 = arith.constant dense<0.000000e+00> : vector<32xf32>
    %7 = vector.multi_reduction <add>, %6, %cst_6 [1] : vector<32x64xf32> to vector<32xf32>
    %8 = vector.shape_cast %7 : vector<32xf32> to vector<32x1xf32>
    %9 = arith.mulf %6, %6 : vector<32x64xf32>
    %cst_7 = arith.constant dense<0.000000e+00> : vector<32xf32>
    %10 = vector.multi_reduction <add>, %9, %cst_7 [1] : vector<32x64xf32> to vector<32xf32>
    %11 = vector.shape_cast %10 : vector<32xf32> to vector<32x1xf32>
    %12 = vector.extract_strided_slice %8 {offsets = [0, 0], sizes = [8, 1], strides = [1, 1]} : vector<32x1xf32> to vector<8x1xf32>
    %13 = vector.extract_strided_slice %11 {offsets = [0, 0], sizes = [8, 1], strides = [1, 1]} : vector<32x1xf32> to vector<8x1xf32>
    %14 = vector.extract_strided_slice %8 {offsets = [8, 0], sizes = [8, 1], strides = [1, 1]} : vector<32x1xf32> to vector<8x1xf32>
    %15 = arith.addf %12, %14 : vector<8x1xf32>
    %16 = vector.extract_strided_slice %11 {offsets = [8, 0], sizes = [8, 1], strides = [1, 1]} : vector<32x1xf32> to vector<8x1xf32>
    %17 = arith.addf %13, %16 : vector<8x1xf32>
    %18 = vector.extract_strided_slice %8 {offsets = [16, 0], sizes = [8, 1], strides = [1, 1]} : vector<32x1xf32> to vector<8x1xf32>
    %19 = arith.addf %15, %18 : vector<8x1xf32>
    %20 = vector.extract_strided_slice %11 {offsets = [16, 0], sizes = [8, 1], strides = [1, 1]} : vector<32x1xf32> to vector<8x1xf32>
    %21 = arith.addf %17, %20 : vector<8x1xf32>
    %22 = vector.extract_strided_slice %8 {offsets = [24, 0], sizes = [8, 1], strides = [1, 1]} : vector<32x1xf32> to vector<8x1xf32>
    %23 = arith.addf %19, %22 : vector<8x1xf32>
    %24 = vector.extract_strided_slice %11 {offsets = [24, 0], sizes = [8, 1], strides = [1, 1]} : vector<32x1xf32> to vector<8x1xf32>
    %25 = arith.addf %21, %24 : vector<8x1xf32>
    %cst_8 = arith.constant 2.560000e+02 : f32
    %26 = vector.broadcast %cst_8 : f32 to vector<8x1xf32>
    %27 = arith.divf %23, %26 : vector<8x1xf32>
    %cst_9 = arith.constant 2.560000e+02 : f32
    %28 = vector.broadcast %cst_9 : f32 to vector<8x1xf32>
    %29 = arith.divf %25, %28 : vector<8x1xf32>
    %30 = arith.mulf %27, %27 : vector<8x1xf32>
    %31 = arith.subf %29, %30 : vector<8x1xf32>
    %cst_10 = arith.constant 9.99999974E-6 : f32
    %32 = vector.broadcast %cst_10 : f32 to vector<8x1xf32>
    %33 = arith.addf %31, %32 : vector<8x1xf32>
    %34 = math.rsqrt %33 : vector<8x1xf32>
    %35 = tpu.concatenate %27, %27, %27, %27 in 0 : vector<8x1xf32>, vector<8x1xf32>, vector<8x1xf32>, vector<8x1xf32> -> vector<32x1xf32>
    %36 = tpu.concatenate %34, %34, %34, %34 in 0 : vector<8x1xf32>, vector<8x1xf32>, vector<8x1xf32>, vector<8x1xf32> -> vector<32x1xf32>
    %37 = vector.broadcast %35 : vector<32x1xf32> to vector<32x64xf32>
    %38 = arith.subf %6, %37 : vector<32x64xf32>
    %39 = vector.broadcast %36 : vector<32x1xf32> to vector<32x64xf32>
    %40 = arith.mulf %38, %39 : vector<32x64xf32>
    %cst_11 = arith.constant 0.000000e+00 : f32
    %41 = vector.broadcast %cst_11 : f32 to vector<32x64xf32>
    %42 = arith.maximumf %40, %41 : vector<32x64xf32>
    %c0_12 = arith.constant 0 : index
    %c0_13 = arith.constant 0 : index
    %c0_14 = arith.constant 0 : index
    %43 = vector.load %arg4[%c0_12, %c0_13, %c0_14] : memref<1x32x64xf32, #tpu.memory_space<vmem>>, vector<1x32x64xf32>
    %44 = vector.shape_cast %43 : vector<1x32x64xf32> to vector<32x64xf32>
    %45 = vector.shape_cast %42 : vector<32x64xf32> to vector<1x32x64xf32>
    tpu.vector_store %arg4[%c0_12, %c0_13, %c0_14], %45 {strides = array<i32>} : memref<1x32x64xf32, #tpu.memory_space<vmem>>, vector<1x32x64xf32>,
    return
  }
  func.func @transform_0(%arg0: i32) -> (i32, i32) {
    %c0_i32 = arith.constant 0 : i32
    %c0_i32_0 = arith.constant 0 : i32
    %c0_i32_1 = arith.constant 0 : i32
    return %c0_i32, %c0_i32_0 : i32, i32
  }
  func.func @transform_1(%arg0: i32) -> (i32, i32) {
    %c0_i32 = arith.constant 0 : i32
    %c0_i32_0 = arith.constant 0 : i32
    %c0_i32_1 = arith.constant 0 : i32
    return %c0_i32, %c0_i32_0 : i32, i32
  }
  func.func @transform_2(%arg0: i32) -> (i32, i32, i32) {
    %c0_i32 = arith.constant 0 : i32
    %c0_i32_0 = arith.constant 0 : i32
    %c0_i32_1 = arith.constant 0 : i32
    return %arg0, %c0_i32, %c0_i32_0 : i32, i32, i32
  }
  func.func @transform_3(%arg0: i32) -> (i32, i32, i32) {
    %c0_i32 = arith.constant 0 : i32
    %c0_i32_0 = arith.constant 0 : i32
    %c0_i32_1 = arith.constant 0 : i32
    return %arg0, %c0_i32, %c0_i32_0 : i32, i32, i32
  }
}

module attributes {stable_mosaic.version = 11 : i64} {
  func.func @_fused_conv_kernel(%arg0: i32, %arg1: memref<1x392xbf16, #tpu.memory_space<vmem>>, %arg2: memref<1x1xf32, #tpu.memory_space<vmem>>, %arg3: memref<1x392x256xbf16, #tpu.memory_space<vmem>>, %arg4: memref<1x1x256xf32, #tpu.memory_space<vmem>>) attributes {dimension_semantics = [#tpu.dimension_semantics<parallel>], iteration_bounds = array<i64: 2>, scalar_prefetch = 0 : i64, scratch_operands = 0 : i64, tpu.core_type = #tpu.core_type<tc>, window_params = [{pipeline_mode = #tpu.pipeline_mode<synchronous>, transform_indices = @transform_0, window_bounds = array<i64: 1, 392>}, {pipeline_mode = #tpu.pipeline_mode<synchronous>, transform_indices = @transform_1, window_bounds = array<i64: 1, 1>}, {transform_indices = @transform_2, window_bounds = array<i64: 1, 392, 256>}, {transform_indices = @transform_3, window_bounds = array<i64: 1, 1, 256>}]} {
    %c0 = arith.constant 0 : index
    %c0_0 = arith.constant 0 : index
    %c0_1 = arith.constant 0 : index
    %0 = vector.load %arg3[%c0, %c0_0, %c0_1] : memref<1x392x256xbf16, #tpu.memory_space<vmem>>, vector<1x392x256xbf16>
    %1 = vector.shape_cast %0 : vector<1x392x256xbf16> to vector<392x256xbf16>
    %c0_2 = arith.constant 0 : index
    %c0_3 = arith.constant 0 : index
    %2 = vector.load %arg1[%c0_2, %c0_3] : memref<1x392xbf16, #tpu.memory_space<vmem>>, vector<1x392xbf16>
    %cst = arith.constant dense<0.000000e+00> : vector<1x256xf32>
    %3 = tpu.matmul %2, %1, %cst {dimension_numbers = #tpu.dot_dimension_numbers<[1], [0], [0], [1], [0, 0, 1, 1], [], []>} : vector<1x392xbf16>, vector<392x256xbf16>, vector<1x256xf32> -> vector<1x256xf32>
    %c0_4 = arith.constant 0 : index
    %c0_5 = arith.constant 0 : index
    %4 = vector.load %arg2[%c0_4, %c0_5] : memref<1x1xf32, #tpu.memory_space<vmem>>, vector<1x1xf32>
    %5 = vector.broadcast %4 : vector<1x1xf32> to vector<1x256xf32>
    %6 = arith.addf %3, %5 : vector<1x256xf32>
    %7 = math.tanh %6 : vector<1x256xf32>
    %c0_6 = arith.constant 0 : index
    %c0_7 = arith.constant 0 : index
    %c0_8 = arith.constant 0 : index
    %8 = vector.load %arg4[%c0_6, %c0_7, %c0_8] : memref<1x1x256xf32, #tpu.memory_space<vmem>>, vector<1x1x256xf32>
    %9 = vector.shape_cast %8 : vector<1x1x256xf32> to vector<1x256xf32>
    %10 = vector.shape_cast %7 : vector<1x256xf32> to vector<1x1x256xf32>
    tpu.vector_store %arg4[%c0_6, %c0_7, %c0_8], %10 {strides = array<i32>} : memref<1x1x256xf32, #tpu.memory_space<vmem>>, vector<1x1x256xf32>,
    return
  }
  func.func @transform_0(%arg0: i32) -> (i32, i32) {
    %c0_i32 = arith.constant 0 : i32
    %c0_i32_0 = arith.constant 0 : i32
    %c0_i32_1 = arith.constant 0 : i32
    return %c0_i32, %c0_i32_0 : i32, i32
  }
  func.func @transform_1(%arg0: i32) -> (i32, i32) {
    %c0_i32 = arith.constant 0 : i32
    %c0_i32_0 = arith.constant 0 : i32
    %c0_i32_1 = arith.constant 0 : i32
    return %c0_i32, %c0_i32_0 : i32, i32
  }
  func.func @transform_2(%arg0: i32) -> (i32, i32, i32) {
    %c0_i32 = arith.constant 0 : i32
    %c0_i32_0 = arith.constant 0 : i32
    %c0_i32_1 = arith.constant 0 : i32
    return %arg0, %c0_i32, %c0_i32_0 : i32, i32, i32
  }
  func.func @transform_3(%arg0: i32) -> (i32, i32, i32) {
    %c0_i32 = arith.constant 0 : i32
    %c0_i32_0 = arith.constant 0 : i32
    %c0_i32_1 = arith.constant 0 : i32
    return %arg0, %c0_i32, %c0_i32_0 : i32, i32, i32
  }
}

</mosaic_0001>

<llo_original>
// kernel: resnet_generator_forward.10
$region0: #{resnet_generator_forward.10}
  #allocation0 [shape = 'u32[]', space=smem, size = 0x4, offset = 0x4, fixed_abs, tag = 'smem constant byte address 0x4 - core index']
  #allocation1 [shape = 'u32[144,128]{1,0:T(1,128)}', space=vmem, size = 0x12000, scoped, tag = 'internal scratch']
  %s0 = inlined_call_operand.vmem [shape: bf16[8,49], index: 0, kind: input, shape index: {}]
  %s1 = inlined_call_operand.vmem [shape: f32[8,1], index: 1, kind: input, shape index: {}]
  %s2 = inlined_call_operand.vmem [shape: bf16[2,49,256], index: 2, kind: input, shape index: {}]
  %s3 = inlined_call_operand.vmem [shape: f32[2,8,256], index: 3, kind: output, shape index: {}]
  %s4 = sld [smem:[#allocation0]]
  $region45: #{resnet_generator_forward.10} parent=0
    _
  %s6 = ssub.s32 1, %s4
  %s7 = scalar_select 0, %s6, %s4
  loop: start=0, step=1, limit=4
  $region2: #{resnet_generator_forward.10} parent=0 // loop_pre_header
    _
  $region3: #{resnet_generator_forward.10} parent=0 // loop_header
    %s9 = sphi 0, %s13
    %p10 = scmp.ge.s32.totalorder %s9, 4
    %s17 = sphi 0, %s17
    %s19 = sphi 0, %s17
    %s20 = sphi 0, %s19
    %s34 = sphi 0, %s20
    %s38 = sphi 0, %s38
    %s40 = sphi 0, %s38
    %s41 = sphi 0, %s40
    %s55 = sphi 0, %s41
    %s61 = sphi 0, %s63
    %s64 = sphi 0, %s61
    %s65 = sphi 0, %s64
    %s81 = sphi 0, %s65
    %s87 = sphi 0, %s89
    %s90 = sphi 0, %s87
    %s91 = sphi 0, %s90
    %s107 = sphi 0, %s91
  $region4: #{resnet_generator_forward.10} parent=0 // loop_header_branch
    %12 = sbr.rel (%p10) target = $region8
  $region5: #{resnet_generator_forward.10} parent=0 // loop_body
    %s14 = ssub.s32 %s9, 1
    %s15 = ssub.s32 %s9, 2
    %s16 = sadd.s32 %s9, 1
    %s18 = sadd.s32 %s17, 1
    %p21 = scmp.eq.s32.totalorder %s9, 1
    %p22 = scmp.ne.s32.totalorder %s17, %s19
    %p23 = scmp.eq.s32.totalorder %s9, 0
    %p24 = por %p22, %p23
    %p25 = scmp.ne.s32.totalorder %s17, %s19
    %p26 = scmp.eq.s32.totalorder %s14, 1
    %p27 = por %p25, %p26
    %p28 = scmp.ne.s32.totalorder %s19, %s20
    %p29 = scmp.eq.s32.totalorder %s14, 0
    %p30 = por %p28, %p29
    %p31 = scmp.ne.s32.totalorder %s19, %s20
    %p32 = scmp.eq.s32.totalorder %s15, 1
    %p33 = por %p31, %p32
    %p35 = scmp.ne.s32.totalorder %s20, %s34
    %p36 = scmp.eq.s32.totalorder %s15, 0
    %p37 = por %p35, %p36
    %s39 = sadd.s32 %s38, 1
    %p42 = scmp.eq.s32.totalorder %s9, 1
    %p43 = scmp.ne.s32.totalorder %s38, %s40
    %p44 = scmp.eq.s32.totalorder %s9, 0
    %p45 = por %p43, %p44
    %p46 = scmp.ne.s32.totalorder %s38, %s40
    %p47 = scmp.eq.s32.totalorder %s14, 1
    %p48 = por %p46, %p47
    %p49 = scmp.ne.s32.totalorder %s40, %s41
    %p50 = scmp.eq.s32.totalorder %s14, 0
    %p51 = por %p49, %p50
    %p52 = scmp.ne.s32.totalorder %s40, %s41
    %p53 = scmp.eq.s32.totalorder %s15, 1
    %p54 = por %p52, %p53
    %p56 = scmp.ne.s32.totalorder %s41, %s55
    %p57 = scmp.eq.s32.totalorder %s15, 0
    %p58 = por %p56, %p57
    %s59 = ssub.s32 %s9, %s16
    %p60 = scmp.eq.s32.totalorder %s59, 0
    %s62 = sadd.s32 %s61, 1
    %s63 = scalar_select %p60, %s61, %s62
    %p66 = pneg %p60
    %p67 = scmp.eq.s32.totalorder %s9, 1
    %p68 = por %p66, %p67
    %p69 = scmp.ne.s32.totalorder %s61, %s64
    %p70 = scmp.eq.s32.totalorder %s9, 0
    %p71 = por %p69, %p70
    %p72 = scmp.ne.s32.totalorder %s61, %s64
    %p73 = scmp.eq.s32.totalorder %s14, 1
    %p74 = por %p72, %p73
    %p75 = scmp.ne.s32.totalorder %s64, %s65
    %p76 = scmp.eq.s32.totalorder %s14, 0
    %p77 = por %p75, %p76
    %p78 = scmp.ne.s32.totalorder %s64, %s65
    %p79 = scmp.eq.s32.totalorder %s15, 1
    %p80 = por %p78, %p79
    %p82 = scmp.ne.s32.totalorder %s65, %s81
    %p83 = scmp.eq.s32.totalorder %s15, 0
    %p84 = por %p82, %p83
    %s85 = ssub.s32 %s9, %s16
    %p86 = scmp.eq.s32.totalorder %s85, 0
    %s88 = sadd.s32 %s87, 1
    %s89 = scalar_select %p86, %s87, %s88
    %p92 = pneg %p86
    %p93 = scmp.eq.s32.totalorder %s9, 1
    %p94 = por %p92, %p93
    %p95 = scmp.ne.s32.totalorder %s87, %s90
    %p96 = scmp.eq.s32.totalorder %s9, 0
    %p97 = por %p95, %p96
    %p98 = scmp.ne.s32.totalorder %s87, %s90
    %p99 = scmp.eq.s32.totalorder %s14, 1
    %p100 = por %p98, %p99
    %p101 = scmp.ne.s32.totalorder %s90, %s91
    %p102 = scmp.eq.s32.totalorder %s14, 0
    %p103 = por %p101, %p102
    %p104 = scmp.ne.s32.totalorder %s90, %s91
    %p105 = scmp.eq.s32.totalorder %s15, 1
    %p106 = por %p104, %p105
    %p108 = scmp.ne.s32.totalorder %s91, %s107
    %p109 = scmp.eq.s32.totalorder %s15, 0
    %p110 = por %p108, %p109
    %p111 = scmp.le.s32.totalorder 1, %s9
    %p112 = scmp.lt.s32.totalorder %s9, 3
    %p113 = pnand %p111, %p112
    %p114 = pneg %p113
    // Predicated region
    $region9: #{resnet_generator_forward.10} parent=5 // pred_check
      _
    $region10: #{resnet_generator_forward.10} parent=5 // pred_check_branch
      %116 = sbr.rel (%p113) target = $region12
    $region11: #{resnet_generator_forward.10} parent=5 // pred_region
      %s117 = ssub.s32 %s9, 1
      // Predicated region
      $region13: #{resnet_generator_forward.10} parent=11 // pred_check
        %p118 = pneg %p30
      $region14: #{resnet_generator_forward.10} parent=11 // pred_check_branch
        %120 = sbr.rel (%p118) target = $region16
      $region15: #{resnet_generator_forward.10} parent=11 // pred_region
        _
      $region16: #{resnet_generator_forward.10} parent=11 // pred_fallthru
        _
      // Predicated region
      $region17: #{resnet_generator_forward.10} parent=11 // pred_check
        %p121 = pneg %p51
      $region18: #{resnet_generator_forward.10} parent=11 // pred_check_branch
        %123 = sbr.rel (%p121) target = $region20
      $region19: #{resnet_generator_forward.10} parent=11 // pred_region
        _
      $region20: #{resnet_generator_forward.10} parent=11 // pred_fallthru
        _
    $region12: #{resnet_generator_forward.10} parent=5 // pred_fallthru
      _
    %p124 = scmp.lt.s32.totalorder %s9, 2
    // Predicated region
    $region21: #{resnet_generator_forward.10} parent=5 // pred_check
      %p125 = pneg %p124
    $region22: #{resnet_generator_forward.10} parent=5 // pred_check_branch
      %127 = sbr.rel (%p125) target = $region24
    $region23: #{resnet_generator_forward.10} parent=5 // pred_region
      // Predicated region
      $region25: #{resnet_generator_forward.10} parent=23 // pred_check
        %p128 = pneg %p71
      $region26: #{resnet_generator_forward.10} parent=23 // pred_check_branch
        %130 = sbr.rel (%p128) target = $region28
      $region27: #{resnet_generator_forward.10} parent=23 // pred_region
        %p131 = scmp.lt.s32.totalorder %s9, 1
        %s132 = scalar_select %p131, %s9, 1
        %s133 = smul.addr %s132, 14
        %s134 = smul.addr %s133, 4
        %s135 = scalar_lea.vmem %s2, %s134
      $region28: #{resnet_generator_forward.10} parent=23 // pred_fallthru
        _
    $region24: #{resnet_generator_forward.10} parent=5 // pred_fallthru
      _
    %p136 = scmp.le.s32.totalorder 1, %s9
    %p137 = scmp.lt.s32.totalorder %s9, 3
    %p138 = pnand %p136, %p137
    %p139 = pneg %p138
    // Predicated region
    $region29: #{resnet_generator_forward.10} parent=5 // pred_check
      _
    $region30: #{resnet_generator_forward.10} parent=5 // pred_check_branch
      %141 = sbr.rel (%p138) target = $region32
    $region31: #{resnet_generator_forward.10} parent=5 // pred_region
      %s142 = ssub.s32 %s9, 1
      %p143 = pneg %p30
      %p144 = pneg %p27
      %p145 = pneg %p51
      %p146 = pneg %p48
      %p147 = scmp.lt.s32.totalorder %s14, 1
      %s148 = scalar_select %p147, %s14, 1
      %s149 = smul.addr %s148, 14
      %s150 = smul.addr %s149, 4
      %s151 = scalar_lea.vmem %s2, %s150
      %p152 = pneg %p77
      %p153 = pneg %p74
      %p154 = pneg %p103
      %p155 = pneg %p100
      %p156 = scmp.lt.s32.totalorder %s14, 1
      %s157 = scalar_select %p156, %s14, 1
      %s158 = smul.addr %s157, 2
      %s159 = smul.addr %s158, 8
      %s160 = scalar_lea.vmem %s3, %s159
      %p161 = scmp.lt.s32.totalorder %s14, 1
      %s162 = scalar_select %p161, %s14, 1
      %s163 = smul.addr %s162, 14
      %s164 = smul.addr %s163, 4
      %s165 = scalar_lea.vmem %s2, %s164
      %p166 = scmp.lt.s32.totalorder %s14, 1
      %s167 = scalar_select %p166, %s14, 1
      %s168 = smul.addr %s167, 2
      %s169 = smul.addr %s168, 8
      %s170 = scalar_lea.vmem %s3, %s169
      %v172 = vld [vmem:[%s165] sm:$0xff]
      %v173 = vld [vmem:[%s165 + $0x8] sm:$0xff]
      %v174 = vld [vmem:[%s165 + $0x10] sm:$0xff]
      %v175 = vld [vmem:[%s165 + $0x18] sm:$0xff]
      %v176 = vld [vmem:[%s165 + $0x20] sm:$0xff]
      %v177 = vld [vmem:[%s165 + $0x28] sm:$0xff]
      %v178 = vld [vmem:[%s165 + $0x30] sm:$0x11]
      %v179 = vld [vmem:[%s0] sm:$0xf]
      %v180 = vld [vmem:[%s1] sm:$0xff]
      %182 = vset.pattern.permute.xlu0 0
      %183 = vperm.xlu0 %182, %v180
      %v184 = vpop.permute.xlu0 %183
      %v193 = vunpack.c.l.b16 %v172
      %v194 = vunpack.c.h.b16 %v172
      %v195 = vunpack.c.l.b16 %v173
      %v196 = vunpack.c.h.b16 %v173
      %v197 = vunpack.c.l.b16 %v174
      %v198 = vunpack.c.h.b16 %v174
      %v199 = vunpack.c.l.b16 %v175
      %v200 = vunpack.c.h.b16 %v175
      %v201 = vunpack.c.l.b16 %v176
      %v202 = vunpack.c.h.b16 %v176
      %v203 = vunpack.c.l.b16 %v177
      %v204 = vunpack.c.h.b16 %v177
      %v205 = vunpack.c.l.b16 %v178
      %v206 = vunpack.c.h.b16 %v178
      %v207 = vpack.c.b16 %v195, %v193
      %v208 = vpack.c.b16 %v196, %v194
      %v209 = vpack.c.b16 %v199, %v197
      %v210 = vpack.c.b16 %v200, %v198
      %v211 = vpack.c.b16 %v203, %v201
      %v212 = vpack.c.b16 %v204, %v202
      %v213 = vpack.c.b16 %v205, %v205
      %v214 = vpack.c.b16 %v206, %v206
      %vm221 = vcmask 400384
      %v223 = vsel %vm221, %v179, 0
      %vm225 = vcmask 1040384
      %v226 = vsel 0, 4294967295, 65535
      %v227 = vsel %vm225, %v226, 0
      %v229 = vand.u32 %v213, %v227
      %v232 = vand.u32 %v214, %v227
      %234 = vmatprep.subr.bf16.mxu0 %v208
      %235 = vmatpush1.bf16.msra.mxu0 %v207
      %236 = vmatprep.subr.bf16.mxu0 %v210
      %237 = vmatpush1.bf16.msra.mxu0 %v209
      %238 = vmatprep.subr.bf16.mxu0 %v212
      %239 = vmatpush1.bf16.msra.mxu0 %v211
      %240 = vmatprep.subr.bf16.mxu0 %v232
      %241 = vmatpush1.bf16.msra.mxu0 %v229
      %242 = vmatprep.subr.bf16.mxu0 0
      %243 = vmatpush1.bf16.msra.mxu0 0
      %244 = vmatprep.subr.bf16.mxu0 0
      %245 = vmatpush1.bf16.msra.mxu0 0
      %246 = vmatprep.subr.bf16.mxu0 0
      %247 = vmatpush1.bf16.msra.mxu0 0
      %248 = vmatprep.subr.bf16.mxu0 0
      %249 = vmatpush1.bf16.msra.mxu0 0
      %250 = vmatprep.subr.bf16.mxu0 0
      %251 = vmatpush1.bf16.msra.mxu0 0
      %252 = vmatprep.subr.bf16.mxu0 0
      %253 = vmatpush1.bf16.msra.mxu0 0
      %254 = vmatprep.subr.bf16.mxu0 0
      %255 = vmatpush1.bf16.msra.mxu0 0
      %256 = vmatprep.subr.bf16.mxu0 0
      %257 = vmatpush1.bf16.msra.mxu0 0
      %258 = vmatprep.subr.bf16.mxu0 0
      %259 = vmatpush1.bf16.msra.mxu0 0
      %260 = vmatprep.subr.bf16.mxu0 0
      %261 = vmatpush1.bf16.msra.mxu0 0
      %262 = vmatprep.subr.bf16.mxu0 0
      %263 = vmatpush1.bf16.msra.mxu0 0
      %264 = vmatprep.subr.bf16.mxu0 0
      %265 = vmatpush1.bf16.msra.mxu0 0
      %266 = vmatprep.mubr.bf16.mxu0 0
      %267 = vmatmul.mubr.bf16.gmra.mrb[0].mxu0 %v223
      %v268 = vpop.f32.mrb[0].mxu0
      %v269 = vadd.f32 %v184, %v268
      %v270 = vpop.f32.mrb[0].mxu0
      %v271 = vadd.f32 %v184, %v270
      %v272 = vpop.f32.mrb[0].mxu0
      %v273 = vpop.f32.mrb[0].mxu0
      %274 = vdwg.mxu0
      %v275 = vadd.f32 %v269, %v271
      %276 = vadd.xlane.f32.xlu0 %v275
      %v277 = vpop.xlane.xlu0 %276
      %v278 = vmul.f32 %v269, %v269
      %v279 = vmul.f32 %v271, %v271
      %v280 = vadd.f32 %v278, %v279
      %281 = vadd.xlane.f32.xlu0 %v280
      %v282 = vpop.xlane.xlu0 %281
      %v283 = vrcp.pop 256.0
      %v284 = vmul.f32 %v277, %v283
      %v285 = vmul.f32 %v282, %v283
      %v286 = vmul.f32 %v284, %v284
      %v287 = vsub.f32 %v285, %v286
      %v288 = vadd.f32 %v287, 1e-05
      %v289 = vrsqrt.pop %v288
      %v290 = vsub.f32 %v269, %v284
      %v291 = vsub.f32 %v271, %v284
      %v292 = vmul.f32 %v290, %v289
      %v293 = vmul.f32 %v291, %v289
      %v294 = vmax.f32 %v292, 0.0
      %v295 = vmax.f32 %v293, 0.0
      %296 = vst [vmem:[%s170] sm:$0xff] %v294
      %297 = vst [vmem:[%s170 + $0x8] sm:$0xff] %v295
      %p298 = scmp.lt.s32.totalorder %s14, 1
      %s299 = scalar_select %p298, %s14, 1
      %s300 = smul.addr %s299, 2
      %s301 = smul.addr %s300, 8
      %s302 = scalar_lea.vmem %s3, %s301
      // Predicated region
      $region33: #{resnet_generator_forward.10} parent=31 // pred_check
        %p303 = pneg %p100
      $region34: #{resnet_generator_forward.10} parent=31 // pred_check_branch
        %305 = sbr.rel (%p303) target = $region36
      $region35: #{resnet_generator_forward.10} parent=31 // pred_region
        _
      $region36: #{resnet_generator_forward.10} parent=31 // pred_fallthru
        _
    $region32: #{resnet_generator_forward.10} parent=5 // pred_fallthru
      _
    %p306 = scmp.le.s32.totalorder 2, %s9
    // Predicated region
    $region37: #{resnet_generator_forward.10} parent=5 // pred_check
      %p307 = pneg %p306
    $region38: #{resnet_generator_forward.10} parent=5 // pred_check_branch
      %309 = sbr.rel (%p307) target = $region40
    $region39: #{resnet_generator_forward.10} parent=5 // pred_region
      %s310 = ssub.s32 %s9, 2
      // Predicated region
      $region41: #{resnet_generator_forward.10} parent=39 // pred_check
        %p311 = pneg %p106
      $region42: #{resnet_generator_forward.10} parent=39 // pred_check_branch
        %313 = sbr.rel (%p311) target = $region44
      $region43: #{resnet_generator_forward.10} parent=39 // pred_region
        %p314 = scmp.lt.s32.totalorder %s15, 1
        %s315 = scalar_select %p314, %s15, 1
        %s316 = smul.addr %s315, 2
        %s317 = smul.addr %s316, 8
        %s318 = scalar_lea.vmem %s3, %s317
      $region44: #{resnet_generator_forward.10} parent=39 // pred_fallthru
        _
    $region40: #{resnet_generator_forward.10} parent=5 // pred_fallthru
      _
  $region6: #{resnet_generator_forward.10} parent=0 // loop_footer
    %s13 = sadd.s32 1, %s9
  $region7: #{resnet_generator_forward.10} parent=0 // loop_footer_branch
    %8 = sbr.rel target = $region3
  $region8: #{resnet_generator_forward.10} parent=0 // loop_exit
    _

// kernel: resnet_generator_forward.11
$region0: #{resnet_generator_forward.11}
  #allocation0 [shape = 'u32[]', space=smem, size = 0x4, offset = 0x4, fixed_abs, tag = 'smem constant byte address 0x4 - core index']
  #allocation1 [shape = 'u32[144,128]{1,0:T(1,128)}', space=vmem, size = 0x12000, scoped, tag = 'internal scratch']
  %s0 = inlined_call_operand.vmem [shape: bf16[16,72], index: 0, kind: input, shape index: {}]
  %s1 = inlined_call_operand.vmem [shape: f32[16,1], index: 1, kind: input, shape index: {}]
  %s2 = inlined_call_operand.vmem [shape: bf16[2,72,64], index: 2, kind: input, shape index: {}]
  %s3 = inlined_call_operand.vmem [shape: f32[2,16,64], index: 3, kind: output, shape index: {}]
  %s4 = sld [smem:[#allocation0]]
  $region45: #{resnet_generator_forward.11} parent=0
    _
  %s6 = ssub.s32 1, %s4
  %s7 = scalar_select 0, %s6, %s4
  loop: start=0, step=1, limit=4
  $region2: #{resnet_generator_forward.11} parent=0 // loop_pre_header
    _
  $region3: #{resnet_generator_forward.11} parent=0 // loop_header
    %s9 = sphi 0, %s13
    %p10 = scmp.ge.s32.totalorder %s9, 4
    %s17 = sphi 0, %s17
    %s19 = sphi 0, %s17
    %s20 = sphi 0, %s19
    %s34 = sphi 0, %s20
    %s38 = sphi 0, %s38
    %s40 = sphi 0, %s38
    %s41 = sphi 0, %s40
    %s55 = sphi 0, %s41
    %s61 = sphi 0, %s63
    %s64 = sphi 0, %s61
    %s65 = sphi 0, %s64
    %s81 = sphi 0, %s65
    %s87 = sphi 0, %s89
    %s90 = sphi 0, %s87
    %s91 = sphi 0, %s90
    %s107 = sphi 0, %s91
  $region4: #{resnet_generator_forward.11} parent=0 // loop_header_branch
    %12 = sbr.rel (%p10) target = $region8
  $region5: #{resnet_generator_forward.11} parent=0 // loop_body
    %s14 = ssub.s32 %s9, 1
    %s15 = ssub.s32 %s9, 2
    %s16 = sadd.s32 %s9, 1
    %s18 = sadd.s32 %s17, 1
    %p21 = scmp.eq.s32.totalorder %s9, 1
    %p22 = scmp.ne.s32.totalorder %s17, %s19
    %p23 = scmp.eq.s32.totalorder %s9, 0
    %p24 = por %p22, %p23
    %p25 = scmp.ne.s32.totalorder %s17, %s19
    %p26 = scmp.eq.s32.totalorder %s14, 1
    %p27 = por %p25, %p26
    %p28 = scmp.ne.s32.totalorder %s19, %s20
    %p29 = scmp.eq.s32.totalorder %s14, 0
    %p30 = por %p28, %p29
    %p31 = scmp.ne.s32.totalorder %s19, %s20
    %p32 = scmp.eq.s32.totalorder %s15, 1
    %p33 = por %p31, %p32
    %p35 = scmp.ne.s32.totalorder %s20, %s34
    %p36 = scmp.eq.s32.totalorder %s15, 0
    %p37 = por %p35, %p36
    %s39 = sadd.s32 %s38, 1
    %p42 = scmp.eq.s32.totalorder %s9, 1
    %p43 = scmp.ne.s32.totalorder %s38, %s40
    %p44 = scmp.eq.s32.totalorder %s9, 0
    %p45 = por %p43, %p44
    %p46 = scmp.ne.s32.totalorder %s38, %s40
    %p47 = scmp.eq.s32.totalorder %s14, 1
    %p48 = por %p46, %p47
    %p49 = scmp.ne.s32.totalorder %s40, %s41
    %p50 = scmp.eq.s32.totalorder %s14, 0
    %p51 = por %p49, %p50
    %p52 = scmp.ne.s32.totalorder %s40, %s41
    %p53 = scmp.eq.s32.totalorder %s15, 1
    %p54 = por %p52, %p53
    %p56 = scmp.ne.s32.totalorder %s41, %s55
    %p57 = scmp.eq.s32.totalorder %s15, 0
    %p58 = por %p56, %p57
    %s59 = ssub.s32 %s9, %s16
    %p60 = scmp.eq.s32.totalorder %s59, 0
    %s62 = sadd.s32 %s61, 1
    %s63 = scalar_select %p60, %s61, %s62
    %p66 = pneg %p60
    %p67 = scmp.eq.s32.totalorder %s9, 1
    %p68 = por %p66, %p67
    %p69 = scmp.ne.s32.totalorder %s61, %s64
    %p70 = scmp.eq.s32.totalorder %s9, 0
    %p71 = por %p69, %p70
    %p72 = scmp.ne.s32.totalorder %s61, %s64
    %p73 = scmp.eq.s32.totalorder %s14, 1
    %p74 = por %p72, %p73
    %p75 = scmp.ne.s32.totalorder %s64, %s65
    %p76 = scmp.eq.s32.totalorder %s14, 0
    %p77 = por %p75, %p76
    %p78 = scmp.ne.s32.totalorder %s64, %s65
    %p79 = scmp.eq.s32.totalorder %s15, 1
    %p80 = por %p78, %p79
    %p82 = scmp.ne.s32.totalorder %s65, %s81
    %p83 = scmp.eq.s32.totalorder %s15, 0
    %p84 = por %p82, %p83
    %s85 = ssub.s32 %s9, %s16
    %p86 = scmp.eq.s32.totalorder %s85, 0
    %s88 = sadd.s32 %s87, 1
    %s89 = scalar_select %p86, %s87, %s88
    %p92 = pneg %p86
    %p93 = scmp.eq.s32.totalorder %s9, 1
    %p94 = por %p92, %p93
    %p95 = scmp.ne.s32.totalorder %s87, %s90
    %p96 = scmp.eq.s32.totalorder %s9, 0
    %p97 = por %p95, %p96
    %p98 = scmp.ne.s32.totalorder %s87, %s90
    %p99 = scmp.eq.s32.totalorder %s14, 1
    %p100 = por %p98, %p99
    %p101 = scmp.ne.s32.totalorder %s90, %s91
    %p102 = scmp.eq.s32.totalorder %s14, 0
    %p103 = por %p101, %p102
    %p104 = scmp.ne.s32.totalorder %s90, %s91
    %p105 = scmp.eq.s32.totalorder %s15, 1
    %p106 = por %p104, %p105
    %p108 = scmp.ne.s32.totalorder %s91, %s107
    %p109 = scmp.eq.s32.totalorder %s15, 0
    %p110 = por %p108, %p109
    %p111 = scmp.le.s32.totalorder 1, %s9
    %p112 = scmp.lt.s32.totalorder %s9, 3
    %p113 = pnand %p111, %p112
    %p114 = pneg %p113
    // Predicated region
    $region9: #{resnet_generator_forward.11} parent=5 // pred_check
      _
    $region10: #{resnet_generator_forward.11} parent=5 // pred_check_branch
      %116 = sbr.rel (%p113) target = $region12
    $region11: #{resnet_generator_forward.11} parent=5 // pred_region
      %s117 = ssub.s32 %s9, 1
      // Predicated region
      $region13: #{resnet_generator_forward.11} parent=11 // pred_check
        %p118 = pneg %p30
      $region14: #{resnet_generator_forward.11} parent=11 // pred_check_branch
        %120 = sbr.rel (%p118) target = $region16
      $region15: #{resnet_generator_forward.11} parent=11 // pred_region
        _
      $region16: #{resnet_generator_forward.11} parent=11 // pred_fallthru
        _
      // Predicated region
      $region17: #{resnet_generator_forward.11} parent=11 // pred_check
        %p121 = pneg %p51
      $region18: #{resnet_generator_forward.11} parent=11 // pred_check_branch
        %123 = sbr.rel (%p121) target = $region20
      $region19: #{resnet_generator_forward.11} parent=11 // pred_region
        _
      $region20: #{resnet_generator_forward.11} parent=11 // pred_fallthru
        _
    $region12: #{resnet_generator_forward.11} parent=5 // pred_fallthru
      _
    %p124 = scmp.lt.s32.totalorder %s9, 2
    // Predicated region
    $region21: #{resnet_generator_forward.11} parent=5 // pred_check
      %p125 = pneg %p124
    $region22: #{resnet_generator_forward.11} parent=5 // pred_check_branch
      %127 = sbr.rel (%p125) target = $region24
    $region23: #{resnet_generator_forward.11} parent=5 // pred_region
      // Predicated region
      $region25: #{resnet_generator_forward.11} parent=23 // pred_check
        %p128 = pneg %p71
      $region26: #{resnet_generator_forward.11} parent=23 // pred_check_branch
        %130 = sbr.rel (%p128) target = $region28
      $region27: #{resnet_generator_forward.11} parent=23 // pred_region
        %p131 = scmp.lt.s32.totalorder %s9, 1
        %s132 = scalar_select %p131, %s9, 1
        %s133 = smul.addr %s132, 9
        %s134 = smul.addr %s133, 4
        %s135 = scalar_lea.vmem %s2, %s134
      $region28: #{resnet_generator_forward.11} parent=23 // pred_fallthru
        _
    $region24: #{resnet_generator_forward.11} parent=5 // pred_fallthru
      _
    %p136 = scmp.le.s32.totalorder 1, %s9
    %p137 = scmp.lt.s32.totalorder %s9, 3
    %p138 = pnand %p136, %p137
    %p139 = pneg %p138
    // Predicated region
    $region29: #{resnet_generator_forward.11} parent=5 // pred_check
      _
    $region30: #{resnet_generator_forward.11} parent=5 // pred_check_branch
      %141 = sbr.rel (%p138) target = $region32
    $region31: #{resnet_generator_forward.11} parent=5 // pred_region
      %s142 = ssub.s32 %s9, 1
      %p143 = pneg %p30
      %p144 = pneg %p27
      %p145 = pneg %p51
      %p146 = pneg %p48
      %p147 = scmp.lt.s32.totalorder %s14, 1
      %s148 = scalar_select %p147, %s14, 1
      %s149 = smul.addr %s148, 9
      %s150 = smul.addr %s149, 4
      %s151 = scalar_lea.vmem %s2, %s150
      %p152 = pneg %p77
      %p153 = pneg %p74
      %p154 = pneg %p103
      %p155 = pneg %p100
      %p156 = scmp.lt.s32.totalorder %s14, 1
      %s157 = scalar_select %p156, %s14, 1
      %s158 = smul.addr %s157, 2
      %s159 = smul.addr %s158, 8
      %s160 = scalar_lea.vmem %s3, %s159
      %p161 = scmp.lt.s32.totalorder %s14, 1
      %s162 = scalar_select %p161, %s14, 1
      %s163 = smul.addr %s162, 9
      %s164 = smul.addr %s163, 4
      %s165 = scalar_lea.vmem %s2, %s164
      %p166 = scmp.lt.s32.totalorder %s14, 1
      %s167 = scalar_select %p166, %s14, 1
      %s168 = smul.addr %s167, 2
      %s169 = smul.addr %s168, 8
      %s170 = scalar_lea.vmem %s3, %s169
      %v172 = vld [vmem:[%s165] sm:$0xf]
      %v173 = vld [vmem:[%s165 + $0x4] sm:$0xf]
      %v174 = vld [vmem:[%s165 + $0x8] sm:$0xf]
      %v175 = vld [vmem:[%s165 + $0xc] sm:$0xf]
      %v176 = vld [vmem:[%s165 + $0x10] sm:$0xf]
      %v177 = vld [vmem:[%s165 + $0x14] sm:$0xf]
      %v178 = vld [vmem:[%s165 + $0x18] sm:$0xf]
      %v179 = vld [vmem:[%s165 + $0x1c] sm:$0xf]
      %v180 = vld [vmem:[%s165 + $0x20] sm:$0xf]
      %v181 = vld [vmem:[%s0] sm:$0xf]
      %v182 = vld [vmem:[%s0 + $0x4] sm:$0xf]
      %v183 = vld [vmem:[%s1] sm:$0xff]
      %v184 = vld [vmem:[%s1 + $0x8] sm:$0xff]
      %186 = vset.pattern.permute.xlu0 0
      %187 = vperm.xlu0 %186, %v183
      %v188 = vpop.permute.xlu0 %187
      %191 = vset.pattern.permute.xlu0 0
      %192 = vperm.xlu0 %191, %v184
      %v193 = vpop.permute.xlu0 %192
      %v197 = vunpack.c.l.b16 %v181
      %v198 = vunpack.c.l.b16 %v182
      %v199 = vpack.c.b16 %v198, %v197
      %v209 = vunpack.c.l.b16 %v172
      %v210 = vunpack.c.l.b16 %v173
      %v211 = vunpack.c.l.b16 %v174
      %v212 = vunpack.c.l.b16 %v175
      %v213 = vunpack.c.l.b16 %v176
      %v214 = vunpack.c.l.b16 %v177
      %v215 = vunpack.c.l.b16 %v178
      %v216 = vunpack.c.l.b16 %v179
      %v217 = vunpack.c.l.b16 %v180
      %v218 = vpack.c.b16 %v210, %v209
      %v219 = vpack.c.b16 %v212, %v211
      %v220 = vpack.c.b16 %v214, %v213
      %v221 = vpack.c.b16 %v216, %v215
      %v222 = vpack.c.b16 %v217, %v217
      %vm227 = vcmask 588800
      %v229 = vsel %vm227, %v199, 0
      %vm231 = vcmask 1043456
      %v233 = vsel %vm231, %v222, 0
      %235 = vmatprep.subr.bf16.mxu0 0
      %236 = vmatpush1.bf16.msra.mxu0 %v218
      %237 = vmatprep.subr.bf16.mxu0 0
      %238 = vmatpush1.bf16.msra.mxu0 %v219
      %239 = vmatprep.subr.bf16.mxu0 0
      %240 = vmatpush1.bf16.msra.mxu0 %v220
      %241 = vmatprep.subr.bf16.mxu0 0
      %242 = vmatpush1.bf16.msra.mxu0 %v221
      %243 = vmatprep.subr.bf16.mxu0 0
      %244 = vmatpush1.bf16.msra.mxu0 %v233
      %245 = vmatprep.subr.bf16.mxu0 0
      %246 = vmatpush1.bf16.msra.mxu0 0
      %247 = vmatprep.subr.bf16.mxu0 0
      %248 = vmatpush1.bf16.msra.mxu0 0
      %249 = vmatprep.subr.bf16.mxu0 0
      %250 = vmatpush1.bf16.msra.mxu0 0
      %251 = vmatprep.subr.bf16.mxu0 0
      %252 = vmatpush1.bf16.msra.mxu0 0
      %253 = vmatprep.subr.bf16.mxu0 0
      %254 = vmatpush1.bf16.msra.mxu0 0
      %255 = vmatprep.subr.bf16.mxu0 0
      %256 = vmatpush1.bf16.msra.mxu0 0
      %257 = vmatprep.subr.bf16.mxu0 0
      %258 = vmatpush1.bf16.msra.mxu0 0
      %259 = vmatprep.subr.bf16.mxu0 0
      %260 = vmatpush1.bf16.msra.mxu0 0
      %261 = vmatprep.subr.bf16.mxu0 0
      %262 = vmatpush1.bf16.msra.mxu0 0
      %263 = vmatprep.subr.bf16.mxu0 0
      %264 = vmatpush1.bf16.msra.mxu0 0
      %265 = vmatprep.subr.bf16.mxu0 0
      %266 = vmatpush1.bf16.msra.mxu0 0
      %267 = vmatprep.mubr.bf16.mxu0 0
      %268 = vmatmul.mubr.bf16.gmra.mrb[0].mxu0 %v229
      %v269 = vpop.f32.mrb[0].mxu0
      %v270 = vadd.f32 %v188, %v269
      %v271 = vpop.f32.mrb[0].mxu0
      %v272 = vpop.f32.mrb[0].mxu0
      %v273 = vadd.f32 %v193, %v272
      %v274 = vpop.f32.mrb[0].mxu0
      %275 = vdwg.mxu0
      %vm276 = vcmask 523264
      %v277 = vsel %vm276, %v270, 0.0
      %278 = vadd.xlane.f32.xlu0 %v277
      %v279 = vpop.xlane.xlu0 %278
      %v280 = vsel %vm276, %v273, 0.0
      %281 = vadd.xlane.f32.xlu0 %v280
      %v282 = vpop.xlane.xlu0 %281
      %v283 = vmul.f32 %v270, %v270
      %v284 = vmul.f32 %v273, %v273
      %v285 = vsel %vm276, %v283, 0.0
      %286 = vadd.xlane.f32.xlu0 %v285
      %v287 = vpop.xlane.xlu0 %286
      %v288 = vsel %vm276, %v284, 0.0
      %289 = vadd.xlane.f32.xlu0 %v288
      %v290 = vpop.xlane.xlu0 %289
      %v291 = vrcp.pop 64.0
      %v292 = vmul.f32 %v279, %v291
      %v293 = vmul.f32 %v282, %v291
      %v294 = vmul.f32 %v287, %v291
      %v295 = vmul.f32 %v290, %v291
      %v296 = vmul.f32 %v292, %v292
      %v297 = vmul.f32 %v293, %v293
      %v298 = vsub.f32 %v294, %v296
      %v299 = vsub.f32 %v295, %v297
      %v300 = vadd.f32 %v298, 1e-05
      %v301 = vadd.f32 %v299, 1e-05
      %v302 = vrsqrt.pop %v300
      %v303 = vrsqrt.pop %v301
      %v304 = vsub.f32 %v270, %v292
      %v305 = vsub.f32 %v273, %v293
      %v306 = vmul.f32 %v304, %v302
      %v307 = vmul.f32 %v305, %v303
      %v308 = vmax.f32 %v306, 0.0
      %v309 = vmax.f32 %v307, 0.0
      %310 = vst.msk [vmem:[%s170] sm:$0xff] %vm276, %v308
      %311 = vst.msk [vmem:[%s170 + $0x8] sm:$0xff] %vm276, %v309
      %p312 = scmp.lt.s32.totalorder %s14, 1
      %s313 = scalar_select %p312, %s14, 1
      %s314 = smul.addr %s313, 2
      %s315 = smul.addr %s314, 8
      %s316 = scalar_lea.vmem %s3, %s315
      // Predicated region
      $region33: #{resnet_generator_forward.11} parent=31 // pred_check
        %p317 = pneg %p100
      $region34: #{resnet_generator_forward.11} parent=31 // pred_check_branch
        %319 = sbr.rel (%p317) target = $region36
      $region35: #{resnet_generator_forward.11} parent=31 // pred_region
        _
      $region36: #{resnet_generator_forward.11} parent=31 // pred_fallthru
        _
    $region32: #{resnet_generator_forward.11} parent=5 // pred_fallthru
      _
    %p320 = scmp.le.s32.totalorder 2, %s9
    // Predicated region
    $region37: #{resnet_generator_forward.11} parent=5 // pred_check
      %p321 = pneg %p320
    $region38: #{resnet_generator_forward.11} parent=5 // pred_check_branch
      %323 = sbr.rel (%p321) target = $region40
    $region39: #{resnet_generator_forward.11} parent=5 // pred_region
      %s324 = ssub.s32 %s9, 2
      // Predicated region
      $region41: #{resnet_generator_forward.11} parent=39 // pred_check
        %p325 = pneg %p106
      $region42: #{resnet_generator_forward.11} parent=39 // pred_check_branch
        %327 = sbr.rel (%p325) target = $region44
      $region43: #{resnet_generator_forward.11} parent=39 // pred_region
        %p328 = scmp.lt.s32.totalorder %s15, 1
        %s329 = scalar_select %p328, %s15, 1
        %s330 = smul.addr %s329, 2
        %s331 = smul.addr %s330, 8
        %s332 = scalar_lea.vmem %s3, %s331
      $region44: #{resnet_generator_forward.11} parent=39 // pred_fallthru
        _
    $region40: #{resnet_generator_forward.11} parent=5 // pred_fallthru
      _
  $region6: #{resnet_generator_forward.11} parent=0 // loop_footer
    %s13 = sadd.s32 1, %s9
  $region7: #{resnet_generator_forward.11} parent=0 // loop_footer_branch
    %8 = sbr.rel target = $region3
  $region8: #{resnet_generator_forward.11} parent=0 // loop_exit
    _

// kernel: resnet_generator_forward.12
$region0: #{resnet_generator_forward.12}
  #allocation0 [shape = 'u32[]', space=smem, size = 0x4, offset = 0x4, fixed_abs, tag = 'smem constant byte address 0x4 - core index']
  #allocation1 [shape = 'u32[144,128]{1,0:T(1,128)}', space=vmem, size = 0x12000, scoped, tag = 'internal scratch']
  %s0 = inlined_call_operand.vmem [shape: bf16[32,144], index: 0, kind: input, shape index: {}]
  %s1 = inlined_call_operand.vmem [shape: f32[32,1], index: 1, kind: input, shape index: {}]
  %s2 = inlined_call_operand.vmem [shape: bf16[2,144,16], index: 2, kind: input, shape index: {}]
  %s3 = inlined_call_operand.vmem [shape: f32[2,32,16], index: 3, kind: output, shape index: {}]
  %s4 = sld [smem:[#allocation0]]
  $region45: #{resnet_generator_forward.12} parent=0
    _
  %s6 = ssub.s32 1, %s4
  %s7 = scalar_select 0, %s6, %s4
  loop: start=0, step=1, limit=4
  $region2: #{resnet_generator_forward.12} parent=0 // loop_pre_header
    _
  $region3: #{resnet_generator_forward.12} parent=0 // loop_header
    %s9 = sphi 0, %s13
    %p10 = scmp.ge.s32.totalorder %s9, 4
    %s17 = sphi 0, %s17
    %s19 = sphi 0, %s17
    %s20 = sphi 0, %s19
    %s34 = sphi 0, %s20
    %s38 = sphi 0, %s38
    %s40 = sphi 0, %s38
    %s41 = sphi 0, %s40
    %s55 = sphi 0, %s41
    %s61 = sphi 0, %s63
    %s64 = sphi 0, %s61
    %s65 = sphi 0, %s64
    %s81 = sphi 0, %s65
    %s87 = sphi 0, %s89
    %s90 = sphi 0, %s87
    %s91 = sphi 0, %s90
    %s107 = sphi 0, %s91
  $region4: #{resnet_generator_forward.12} parent=0 // loop_header_branch
    %12 = sbr.rel (%p10) target = $region8
  $region5: #{resnet_generator_forward.12} parent=0 // loop_body
    %s14 = ssub.s32 %s9, 1
    %s15 = ssub.s32 %s9, 2
    %s16 = sadd.s32 %s9, 1
    %s18 = sadd.s32 %s17, 1
    %p21 = scmp.eq.s32.totalorder %s9, 1
    %p22 = scmp.ne.s32.totalorder %s17, %s19
    %p23 = scmp.eq.s32.totalorder %s9, 0
    %p24 = por %p22, %p23
    %p25 = scmp.ne.s32.totalorder %s17, %s19
    %p26 = scmp.eq.s32.totalorder %s14, 1
    %p27 = por %p25, %p26
    %p28 = scmp.ne.s32.totalorder %s19, %s20
    %p29 = scmp.eq.s32.totalorder %s14, 0
    %p30 = por %p28, %p29
    %p31 = scmp.ne.s32.totalorder %s19, %s20
    %p32 = scmp.eq.s32.totalorder %s15, 1
    %p33 = por %p31, %p32
    %p35 = scmp.ne.s32.totalorder %s20, %s34
    %p36 = scmp.eq.s32.totalorder %s15, 0
    %p37 = por %p35, %p36
    %s39 = sadd.s32 %s38, 1
    %p42 = scmp.eq.s32.totalorder %s9, 1
    %p43 = scmp.ne.s32.totalorder %s38, %s40
    %p44 = scmp.eq.s32.totalorder %s9, 0
    %p45 = por %p43, %p44
    %p46 = scmp.ne.s32.totalorder %s38, %s40
    %p47 = scmp.eq.s32.totalorder %s14, 1
    %p48 = por %p46, %p47
    %p49 = scmp.ne.s32.totalorder %s40, %s41
    %p50 = scmp.eq.s32.totalorder %s14, 0
    %p51 = por %p49, %p50
    %p52 = scmp.ne.s32.totalorder %s40, %s41
    %p53 = scmp.eq.s32.totalorder %s15, 1
    %p54 = por %p52, %p53
    %p56 = scmp.ne.s32.totalorder %s41, %s55
    %p57 = scmp.eq.s32.totalorder %s15, 0
    %p58 = por %p56, %p57
    %s59 = ssub.s32 %s9, %s16
    %p60 = scmp.eq.s32.totalorder %s59, 0
    %s62 = sadd.s32 %s61, 1
    %s63 = scalar_select %p60, %s61, %s62
    %p66 = pneg %p60
    %p67 = scmp.eq.s32.totalorder %s9, 1
    %p68 = por %p66, %p67
    %p69 = scmp.ne.s32.totalorder %s61, %s64
    %p70 = scmp.eq.s32.totalorder %s9, 0
    %p71 = por %p69, %p70
    %p72 = scmp.ne.s32.totalorder %s61, %s64
    %p73 = scmp.eq.s32.totalorder %s14, 1
    %p74 = por %p72, %p73
    %p75 = scmp.ne.s32.totalorder %s64, %s65
    %p76 = scmp.eq.s32.totalorder %s14, 0
    %p77 = por %p75, %p76
    %p78 = scmp.ne.s32.totalorder %s64, %s65
    %p79 = scmp.eq.s32.totalorder %s15, 1
    %p80 = por %p78, %p79
    %p82 = scmp.ne.s32.totalorder %s65, %s81
    %p83 = scmp.eq.s32.totalorder %s15, 0
    %p84 = por %p82, %p83
    %s85 = ssub.s32 %s9, %s16
    %p86 = scmp.eq.s32.totalorder %s85, 0
    %s88 = sadd.s32 %s87, 1
    %s89 = scalar_select %p86, %s87, %s88
    %p92 = pneg %p86
    %p93 = scmp.eq.s32.totalorder %s9, 1
    %p94 = por %p92, %p93
    %p95 = scmp.ne.s32.totalorder %s87, %s90
    %p96 = scmp.eq.s32.totalorder %s9, 0
    %p97 = por %p95, %p96
    %p98 = scmp.ne.s32.totalorder %s87, %s90
    %p99 = scmp.eq.s32.totalorder %s14, 1
    %p100 = por %p98, %p99
    %p101 = scmp.ne.s32.totalorder %s90, %s91
    %p102 = scmp.eq.s32.totalorder %s14, 0
    %p103 = por %p101, %p102
    %p104 = scmp.ne.s32.totalorder %s90, %s91
    %p105 = scmp.eq.s32.totalorder %s15, 1
    %p106 = por %p104, %p105
    %p108 = scmp.ne.s32.totalorder %s91, %s107
    %p109 = scmp.eq.s32.totalorder %s15, 0
    %p110 = por %p108, %p109
    %p111 = scmp.le.s32.totalorder 1, %s9
    %p112 = scmp.lt.s32.totalorder %s9, 3
    %p113 = pnand %p111, %p112
    %p114 = pneg %p113
    // Predicated region
    $region9: #{resnet_generator_forward.12} parent=5 // pred_check
      _
    $region10: #{resnet_generator_forward.12} parent=5 // pred_check_branch
      %116 = sbr.rel (%p113) target = $region12
    $region11: #{resnet_generator_forward.12} parent=5 // pred_region
      %s117 = ssub.s32 %s9, 1
      // Predicated region
      $region13: #{resnet_generator_forward.12} parent=11 // pred_check
        %p118 = pneg %p30
      $region14: #{resnet_generator_forward.12} parent=11 // pred_check_branch
        %120 = sbr.rel (%p118) target = $region16
      $region15: #{resnet_generator_forward.12} parent=11 // pred_region
        _
      $region16: #{resnet_generator_forward.12} parent=11 // pred_fallthru
        _
      // Predicated region
      $region17: #{resnet_generator_forward.12} parent=11 // pred_check
        %p121 = pneg %p51
      $region18: #{resnet_generator_forward.12} parent=11 // pred_check_branch
        %123 = sbr.rel (%p121) target = $region20
      $region19: #{resnet_generator_forward.12} parent=11 // pred_region
        _
      $region20: #{resnet_generator_forward.12} parent=11 // pred_fallthru
        _
    $region12: #{resnet_generator_forward.12} parent=5 // pred_fallthru
      _
    %p124 = scmp.lt.s32.totalorder %s9, 2
    // Predicated region
    $region21: #{resnet_generator_forward.12} parent=5 // pred_check
      %p125 = pneg %p124
    $region22: #{resnet_generator_forward.12} parent=5 // pred_check_branch
      %127 = sbr.rel (%p125) target = $region24
    $region23: #{resnet_generator_forward.12} parent=5 // pred_region
      // Predicated region
      $region25: #{resnet_generator_forward.12} parent=23 // pred_check
        %p128 = pneg %p71
      $region26: #{resnet_generator_forward.12} parent=23 // pred_check_branch
        %130 = sbr.rel (%p128) target = $region28
      $region27: #{resnet_generator_forward.12} parent=23 // pred_region
        %p131 = scmp.lt.s32.totalorder %s9, 1
        %s132 = scalar_select %p131, %s9, 1
        %s133 = smul.addr %s132, 18
        %s134 = smul.addr %s133, 4
        %s135 = scalar_lea.vmem %s2, %s134
      $region28: #{resnet_generator_forward.12} parent=23 // pred_fallthru
        _
    $region24: #{resnet_generator_forward.12} parent=5 // pred_fallthru
      _
    %p136 = scmp.le.s32.totalorder 1, %s9
    %p137 = scmp.lt.s32.totalorder %s9, 3
    %p138 = pnand %p136, %p137
    %p139 = pneg %p138
    // Predicated region
    $region29: #{resnet_generator_forward.12} parent=5 // pred_check
      _
    $region30: #{resnet_generator_forward.12} parent=5 // pred_check_branch
      %141 = sbr.rel (%p138) target = $region32
    $region31: #{resnet_generator_forward.12} parent=5 // pred_region
      %s142 = ssub.s32 %s9, 1
      %p143 = pneg %p30
      %p144 = pneg %p27
      %p145 = pneg %p51
      %p146 = pneg %p48
      %p147 = scmp.lt.s32.totalorder %s14, 1
      %s148 = scalar_select %p147, %s14, 1
      %s149 = smul.addr %s148, 18
      %s150 = smul.addr %s149, 4
      %s151 = scalar_lea.vmem %s2, %s150
      %p152 = pneg %p77
      %p153 = pneg %p74
      %p154 = pneg %p103
      %p155 = pneg %p100
      %p156 = scmp.lt.s32.totalorder %s14, 1
      %s157 = scalar_select %p156, %s14, 1
      %s158 = smul.addr %s157, 4
      %s159 = smul.addr %s158, 8
      %s160 = scalar_lea.vmem %s3, %s159
      %p161 = scmp.lt.s32.totalorder %s14, 1
      %s162 = scalar_select %p161, %s14, 1
      %s163 = smul.addr %s162, 18
      %s164 = smul.addr %s163, 4
      %s165 = scalar_lea.vmem %s2, %s164
      %p166 = scmp.lt.s32.totalorder %s14, 1
      %s167 = scalar_select %p166, %s14, 1
      %s168 = smul.addr %s167, 4
      %s169 = smul.addr %s168, 8
      %s170 = scalar_lea.vmem %s3, %s169
      %v172 = vld [vmem:[%s165] sm:$0xf]
      %v173 = vld [vmem:[%s165 + $0x4] sm:$0xf]
      %v174 = vld [vmem:[%s165 + $0x8] sm:$0xf]
      %v175 = vld [vmem:[%s165 + $0xc] sm:$0xf]
      %v176 = vld [vmem:[%s165 + $0x10] sm:$0xf]
      %v177 = vld [vmem:[%s165 + $0x14] sm:$0xf]
      %v178 = vld [vmem:[%s165 + $0x18] sm:$0xf]
      %v179 = vld [vmem:[%s165 + $0x1c] sm:$0xf]
      %v180 = vld [vmem:[%s165 + $0x20] sm:$0xf]
      %v181 = vld [vmem:[%s165 + $0x24] sm:$0xf]
      %v182 = vld [vmem:[%s165 + $0x28] sm:$0xf]
      %v183 = vld [vmem:[%s165 + $0x2c] sm:$0xf]
      %v184 = vld [vmem:[%s165 + $0x30] sm:$0xf]
      %v185 = vld [vmem:[%s165 + $0x34] sm:$0xf]
      %v186 = vld [vmem:[%s165 + $0x38] sm:$0xf]
      %v187 = vld [vmem:[%s165 + $0x3c] sm:$0xf]
      %v188 = vld [vmem:[%s165 + $0x40] sm:$0xf]
      %v189 = vld [vmem:[%s165 + $0x44] sm:$0xf]
      %v190 = vld [vmem:[%s0] sm:$0xff]
      %v191 = vld [vmem:[%s0 + $0x8] sm:$0xff]
      %v192 = vld [vmem:[%s0 + $0x10] sm:$0xff]
      %v193 = vld [vmem:[%s0 + $0x18] sm:$0xff]
      %v194 = vld [vmem:[%s1] sm:$0xff]
      %v195 = vld [vmem:[%s1 + $0x8] sm:$0xff]
      %v196 = vld [vmem:[%s1 + $0x10] sm:$0xff]
      %v197 = vld [vmem:[%s1 + $0x18] sm:$0xff]
      %199 = vset.pattern.permute.xlu0 0
      %200 = vperm.xlu0 %199, %v194
      %v201 = vpop.permute.xlu0 %200
      %204 = vset.pattern.permute.xlu0 0
      %205 = vperm.xlu0 %204, %v195
      %v206 = vpop.permute.xlu0 %205
      %209 = vset.pattern.permute.xlu0 0
      %210 = vperm.xlu0 %209, %v196
      %v211 = vpop.permute.xlu0 %210
      %214 = vset.pattern.permute.xlu0 0
      %215 = vperm.xlu0 %214, %v197
      %v216 = vpop.permute.xlu0 %215
      %v222 = vunpack.c.l.b16 %v190
      %v223 = vunpack.c.h.b16 %v190
      %v224 = vunpack.c.l.b16 %v191
      %v225 = vunpack.c.h.b16 %v191
      %v226 = vunpack.c.l.b16 %v192
      %v227 = vunpack.c.h.b16 %v192
      %v228 = vunpack.c.l.b16 %v193
      %v229 = vunpack.c.h.b16 %v193
      %v230 = vpack.c.b16 %v224, %v222
      %v231 = vpack.c.b16 %v225, %v223
      %v232 = vpack.c.b16 %v228, %v226
      %v233 = vpack.c.b16 %v229, %v227
      %v254 = vunpack.c.l.b16 %v172
      %v255 = vunpack.c.l.b16 %v173
      %v256 = vunpack.c.l.b16 %v174
      %v257 = vunpack.c.l.b16 %v175
      %v258 = vunpack.c.l.b16 %v176
      %v259 = vunpack.c.l.b16 %v177
      %v260 = vunpack.c.l.b16 %v178
      %v261 = vunpack.c.l.b16 %v179
      %v262 = vunpack.c.l.b16 %v180
      %v263 = vunpack.c.l.b16 %v181
      %v264 = vunpack.c.l.b16 %v182
      %v265 = vunpack.c.l.b16 %v183
      %v266 = vunpack.c.l.b16 %v184
      %v267 = vunpack.c.l.b16 %v185
      %v268 = vunpack.c.l.b16 %v186
      %v269 = vunpack.c.l.b16 %v187
      %v270 = vunpack.c.l.b16 %v188
      %v271 = vunpack.c.l.b16 %v189
      %v272 = vpack.c.b16 %v255, %v254
      %v273 = vpack.c.b16 %v257, %v256
      %v274 = vpack.c.b16 %v259, %v258
      %v275 = vpack.c.b16 %v261, %v260
      %v276 = vpack.c.b16 %v263, %v262
      %v277 = vpack.c.b16 %v265, %v264
      %v278 = vpack.c.b16 %v267, %v266
      %v279 = vpack.c.b16 %v269, %v268
      %v280 = vpack.c.b16 %v271, %v270
      %vm290 = vcmask 130048
      %v292 = vsel %vm290, %v231, 0
      %v295 = vsel %vm290, %v233, 0
      %297 = vmatprep.subr.bf16.mxu0 0
      %298 = vmatpush1.bf16.msra.mxu0 %v272
      %299 = vmatprep.subr.bf16.mxu0 0
      %300 = vmatpush1.bf16.msra.mxu0 %v273
      %301 = vmatprep.subr.bf16.mxu0 0
      %302 = vmatpush1.bf16.msra.mxu0 %v274
      %303 = vmatprep.subr.bf16.mxu0 0
      %304 = vmatpush1.bf16.msra.mxu0 %v275
      %305 = vmatprep.subr.bf16.mxu0 0
      %306 = vmatpush1.bf16.msra.mxu0 %v276
      %307 = vmatprep.subr.bf16.mxu0 0
      %308 = vmatpush1.bf16.msra.mxu0 %v277
      %309 = vmatprep.subr.bf16.mxu0 0
      %310 = vmatpush1.bf16.msra.mxu0 %v278
      %311 = vmatprep.subr.bf16.mxu0 0
      %312 = vmatpush1.bf16.msra.mxu0 %v279
      %313 = vmatprep.subr.bf16.mxu0 0
      %314 = vmatpush1.bf16.msra.mxu0 %v280
      %315 = vmatprep.subr.bf16.mxu0 0
      %316 = vmatpush1.bf16.msra.mxu0 0
      %317 = vmatprep.subr.bf16.mxu0 0
      %318 = vmatpush1.bf16.msra.mxu0 0
      %319 = vmatprep.subr.bf16.mxu0 0
      %320 = vmatpush1.bf16.msra.mxu0 0
      %321 = vmatprep.subr.bf16.mxu0 0
      %322 = vmatpush1.bf16.msra.mxu0 0
      %323 = vmatprep.subr.bf16.mxu0 0
      %324 = vmatpush1.bf16.msra.mxu0 0
      %325 = vmatprep.subr.bf16.mxu0 0
      %326 = vmatpush1.bf16.msra.mxu0 0
      %327 = vmatprep.subr.bf16.mxu0 0
      %328 = vmatpush1.bf16.msra.mxu0 0
      %329 = vmatprep.mubr.bf16.mxu0 %v292
      %330 = vmatmul.mubr.bf16.gmra.mrb[0].mxu0 %v230
      %v331 = vpop.f32.mrb[0].mxu0
      %v332 = vadd.f32 %v201, %v331
      %v333 = vpop.f32.mrb[0].mxu0
      %v334 = vpop.f32.mrb[0].mxu0
      %v335 = vadd.f32 %v206, %v334
      %v336 = vpop.f32.mrb[0].mxu0
      %337 = vmatprep.mubr.bf16.mxu0 %v295
      %338 = vmatmul.mubr.bf16.gmra.mrb[0].mxu0 %v232
      %v339 = vpop.f32.mrb[0].mxu0
      %v340 = vadd.f32 %v211, %v339
      %v341 = vpop.f32.mrb[0].mxu0
      %v342 = vpop.f32.mrb[0].mxu0
      %v343 = vadd.f32 %v216, %v342
      %v344 = vpop.f32.mrb[0].mxu0
      %345 = vdwg.mxu0
      %v346 = vsel %vm290, %v332, 0.0
      %347 = vadd.xlane.f32.xlu0 %v346
      %v348 = vpop.xlane.xlu0 %347
      %v349 = vsel %vm290, %v335, 0.0
      %350 = vadd.xlane.f32.xlu0 %v349
      %v351 = vpop.xlane.xlu0 %350
      %v352 = vsel %vm290, %v340, 0.0
      %353 = vadd.xlane.f32.xlu0 %v352
      %v354 = vpop.xlane.xlu0 %353
      %v355 = vsel %vm290, %v343, 0.0
      %356 = vadd.xlane.f32.xlu0 %v355
      %v357 = vpop.xlane.xlu0 %356
      %v358 = vmul.f32 %v332, %v332
      %v359 = vmul.f32 %v335, %v335
      %v360 = vmul.f32 %v340, %v340
      %v361 = vmul.f32 %v343, %v343
      %v362 = vsel %vm290, %v358, 0.0
      %363 = vadd.xlane.f32.xlu0 %v362
      %v364 = vpop.xlane.xlu0 %363
      %v365 = vsel %vm290, %v359, 0.0
      %366 = vadd.xlane.f32.xlu0 %v365
      %v367 = vpop.xlane.xlu0 %366
      %v368 = vsel %vm290, %v360, 0.0
      %369 = vadd.xlane.f32.xlu0 %v368
      %v370 = vpop.xlane.xlu0 %369
      %v371 = vsel %vm290, %v361, 0.0
      %372 = vadd.xlane.f32.xlu0 %v371
      %v373 = vpop.xlane.xlu0 %372
      %v374 = vrcp.pop 16.0
      %v375 = vmul.f32 %v348, %v374
      %v376 = vmul.f32 %v351, %v374
      %v377 = vmul.f32 %v354, %v374
      %v378 = vmul.f32 %v357, %v374
      %v379 = vmul.f32 %v364, %v374
      %v380 = vmul.f32 %v367, %v374
      %v381 = vmul.f32 %v370, %v374
      %v382 = vmul.f32 %v373, %v374
      %v383 = vmul.f32 %v375, %v375
      %v384 = vmul.f32 %v376, %v376
      %v385 = vmul.f32 %v377, %v377
      %v386 = vmul.f32 %v378, %v378
      %v387 = vsub.f32 %v379, %v383
      %v388 = vsub.f32 %v380, %v384
      %v389 = vsub.f32 %v381, %v385
      %v390 = vsub.f32 %v382, %v386
      %v391 = vadd.f32 %v387, 1e-05
      %v392 = vadd.f32 %v388, 1e-05
      %v393 = vadd.f32 %v389, 1e-05
      %v394 = vadd.f32 %v390, 1e-05
      %v395 = vrsqrt.pop %v391
      %v396 = vrsqrt.pop %v392
      %v397 = vrsqrt.pop %v393
      %v398 = vrsqrt.pop %v394
      %v399 = vsub.f32 %v332, %v375
      %v400 = vsub.f32 %v335, %v376
      %v401 = vsub.f32 %v340, %v377
      %v402 = vsub.f32 %v343, %v378
      %v403 = vmul.f32 %v399, %v395
      %v404 = vmul.f32 %v400, %v396
      %v405 = vmul.f32 %v401, %v397
      %v406 = vmul.f32 %v402, %v398
      %v407 = vmax.f32 %v403, 0.0
      %v408 = vmax.f32 %v404, 0.0
      %v409 = vmax.f32 %v405, 0.0
      %v410 = vmax.f32 %v406, 0.0
      %411 = vst.msk [vmem:[%s170] sm:$0xff] %vm290, %v407
      %412 = vst.msk [vmem:[%s170 + $0x8] sm:$0xff] %vm290, %v408
      %413 = vst.msk [vmem:[%s170 + $0x10] sm:$0xff] %vm290, %v409
      %414 = vst.msk [vmem:[%s170 + $0x18] sm:$0xff] %vm290, %v410
      %p415 = scmp.lt.s32.totalorder %s14, 1
      %s416 = scalar_select %p415, %s14, 1
      %s417 = smul.addr %s416, 4
      %s418 = smul.addr %s417, 8
      %s419 = scalar_lea.vmem %s3, %s418
      // Predicated region
      $region33: #{resnet_generator_forward.12} parent=31 // pred_check
        %p420 = pneg %p100
      $region34: #{resnet_generator_forward.12} parent=31 // pred_check_branch
        %422 = sbr.rel (%p420) target = $region36
      $region35: #{resnet_generator_forward.12} parent=31 // pred_region
        _
      $region36: #{resnet_generator_forward.12} parent=31 // pred_fallthru
        _
    $region32: #{resnet_generator_forward.12} parent=5 // pred_fallthru
      _
    %p423 = scmp.le.s32.totalorder 2, %s9
    // Predicated region
    $region37: #{resnet_generator_forward.12} parent=5 // pred_check
      %p424 = pneg %p423
    $region38: #{resnet_generator_forward.12} parent=5 // pred_check_branch
      %426 = sbr.rel (%p424) target = $region40
    $region39: #{resnet_generator_forward.12} parent=5 // pred_region
      %s427 = ssub.s32 %s9, 2
      // Predicated region
      $region41: #{resnet_generator_forward.12} parent=39 // pred_check
        %p428 = pneg %p106
      $region42: #{resnet_generator_forward.12} parent=39 // pred_check_branch
        %430 = sbr.rel (%p428) target = $region44
      $region43: #{resnet_generator_forward.12} parent=39 // pred_region
        %p431 = scmp.lt.s32.totalorder %s15, 1
        %s432 = scalar_select %p431, %s15, 1
        %s433 = smul.addr %s432, 4
        %s434 = smul.addr %s433, 8
        %s435 = scalar_lea.vmem %s3, %s434
      $region44: #{resnet_generator_forward.12} parent=39 // pred_fallthru
        _
    $region40: #{resnet_generator_forward.12} parent=5 // pred_fallthru
      _
  $region6: #{resnet_generator_forward.12} parent=0 // loop_footer
    %s13 = sadd.s32 1, %s9
  $region7: #{resnet_generator_forward.12} parent=0 // loop_footer_branch
    %8 = sbr.rel target = $region3
  $region8: #{resnet_generator_forward.12} parent=0 // loop_exit
    _

// kernel: resnet_generator_forward.13
$region0: #{resnet_generator_forward.13}
  #allocation0 [shape = 'u32[]', space=smem, size = 0x4, offset = 0x4, fixed_abs, tag = 'smem constant byte address 0x4 - core index']
  #allocation1 [shape = 'u32[144,128]{1,0:T(1,128)}', space=vmem, size = 0x12000, scoped, tag = 'internal scratch']
  %s0 = inlined_call_operand.vmem [shape: bf16[32,288], index: 0, kind: input, shape index: {}]
  %s1 = inlined_call_operand.vmem [shape: f32[32,1], index: 1, kind: input, shape index: {}]
  %s2 = inlined_call_operand.vmem [shape: bf16[2,288,16], index: 2, kind: input, shape index: {}]
  %s3 = inlined_call_operand.vmem [shape: f32[2,32,16], index: 3, kind: output, shape index: {}]
  %s4 = sld [smem:[#allocation0]]
  $region45: #{resnet_generator_forward.13} parent=0
    _
  %s6 = ssub.s32 1, %s4
  %s7 = scalar_select 0, %s6, %s4
  loop: start=0, step=1, limit=4
  $region2: #{resnet_generator_forward.13} parent=0 // loop_pre_header
    _
  $region3: #{resnet_generator_forward.13} parent=0 // loop_header
    %s9 = sphi 0, %s13
    %p10 = scmp.ge.s32.totalorder %s9, 4
    %s17 = sphi 0, %s17
    %s19 = sphi 0, %s17
    %s20 = sphi 0, %s19
    %s34 = sphi 0, %s20
    %s38 = sphi 0, %s38
    %s40 = sphi 0, %s38
    %s41 = sphi 0, %s40
    %s55 = sphi 0, %s41
    %s61 = sphi 0, %s63
    %s64 = sphi 0, %s61
    %s65 = sphi 0, %s64
    %s81 = sphi 0, %s65
    %s87 = sphi 0, %s89
    %s90 = sphi 0, %s87
    %s91 = sphi 0, %s90
    %s107 = sphi 0, %s91
  $region4: #{resnet_generator_forward.13} parent=0 // loop_header_branch
    %12 = sbr.rel (%p10) target = $region8
  $region5: #{resnet_generator_forward.13} parent=0 // loop_body
    %s14 = ssub.s32 %s9, 1
    %s15 = ssub.s32 %s9, 2
    %s16 = sadd.s32 %s9, 1
    %s18 = sadd.s32 %s17, 1
    %p21 = scmp.eq.s32.totalorder %s9, 1
    %p22 = scmp.ne.s32.totalorder %s17, %s19
    %p23 = scmp.eq.s32.totalorder %s9, 0
    %p24 = por %p22, %p23
    %p25 = scmp.ne.s32.totalorder %s17, %s19
    %p26 = scmp.eq.s32.totalorder %s14, 1
    %p27 = por %p25, %p26
    %p28 = scmp.ne.s32.totalorder %s19, %s20
    %p29 = scmp.eq.s32.totalorder %s14, 0
    %p30 = por %p28, %p29
    %p31 = scmp.ne.s32.totalorder %s19, %s20
    %p32 = scmp.eq.s32.totalorder %s15, 1
    %p33 = por %p31, %p32
    %p35 = scmp.ne.s32.totalorder %s20, %s34
    %p36 = scmp.eq.s32.totalorder %s15, 0
    %p37 = por %p35, %p36
    %s39 = sadd.s32 %s38, 1
    %p42 = scmp.eq.s32.totalorder %s9, 1
    %p43 = scmp.ne.s32.totalorder %s38, %s40
    %p44 = scmp.eq.s32.totalorder %s9, 0
    %p45 = por %p43, %p44
    %p46 = scmp.ne.s32.totalorder %s38, %s40
    %p47 = scmp.eq.s32.totalorder %s14, 1
    %p48 = por %p46, %p47
    %p49 = scmp.ne.s32.totalorder %s40, %s41
    %p50 = scmp.eq.s32.totalorder %s14, 0
    %p51 = por %p49, %p50
    %p52 = scmp.ne.s32.totalorder %s40, %s41
    %p53 = scmp.eq.s32.totalorder %s15, 1
    %p54 = por %p52, %p53
    %p56 = scmp.ne.s32.totalorder %s41, %s55
    %p57 = scmp.eq.s32.totalorder %s15, 0
    %p58 = por %p56, %p57
    %s59 = ssub.s32 %s9, %s16
    %p60 = scmp.eq.s32.totalorder %s59, 0
    %s62 = sadd.s32 %s61, 1
    %s63 = scalar_select %p60, %s61, %s62
    %p66 = pneg %p60
    %p67 = scmp.eq.s32.totalorder %s9, 1
    %p68 = por %p66, %p67
    %p69 = scmp.ne.s32.totalorder %s61, %s64
    %p70 = scmp.eq.s32.totalorder %s9, 0
    %p71 = por %p69, %p70
    %p72 = scmp.ne.s32.totalorder %s61, %s64
    %p73 = scmp.eq.s32.totalorder %s14, 1
    %p74 = por %p72, %p73
    %p75 = scmp.ne.s32.totalorder %s64, %s65
    %p76 = scmp.eq.s32.totalorder %s14, 0
    %p77 = por %p75, %p76
    %p78 = scmp.ne.s32.totalorder %s64, %s65
    %p79 = scmp.eq.s32.totalorder %s15, 1
    %p80 = por %p78, %p79
    %p82 = scmp.ne.s32.totalorder %s65, %s81
    %p83 = scmp.eq.s32.totalorder %s15, 0
    %p84 = por %p82, %p83
    %s85 = ssub.s32 %s9, %s16
    %p86 = scmp.eq.s32.totalorder %s85, 0
    %s88 = sadd.s32 %s87, 1
    %s89 = scalar_select %p86, %s87, %s88
    %p92 = pneg %p86
    %p93 = scmp.eq.s32.totalorder %s9, 1
    %p94 = por %p92, %p93
    %p95 = scmp.ne.s32.totalorder %s87, %s90
    %p96 = scmp.eq.s32.totalorder %s9, 0
    %p97 = por %p95, %p96
    %p98 = scmp.ne.s32.totalorder %s87, %s90
    %p99 = scmp.eq.s32.totalorder %s14, 1
    %p100 = por %p98, %p99
    %p101 = scmp.ne.s32.totalorder %s90, %s91
    %p102 = scmp.eq.s32.totalorder %s14, 0
    %p103 = por %p101, %p102
    %p104 = scmp.ne.s32.totalorder %s90, %s91
    %p105 = scmp.eq.s32.totalorder %s15, 1
    %p106 = por %p104, %p105
    %p108 = scmp.ne.s32.totalorder %s91, %s107
    %p109 = scmp.eq.s32.totalorder %s15, 0
    %p110 = por %p108, %p109
    %p111 = scmp.le.s32.totalorder 1, %s9
    %p112 = scmp.lt.s32.totalorder %s9, 3
    %p113 = pnand %p111, %p112
    %p114 = pneg %p113
    // Predicated region
    $region9: #{resnet_generator_forward.13} parent=5 // pred_check
      _
    $region10: #{resnet_generator_forward.13} parent=5 // pred_check_branch
      %116 = sbr.rel (%p113) target = $region12
    $region11: #{resnet_generator_forward.13} parent=5 // pred_region
      %s117 = ssub.s32 %s9, 1
      // Predicated region
      $region13: #{resnet_generator_forward.13} parent=11 // pred_check
        %p118 = pneg %p30
      $region14: #{resnet_generator_forward.13} parent=11 // pred_check_branch
        %120 = sbr.rel (%p118) target = $region16
      $region15: #{resnet_generator_forward.13} parent=11 // pred_region
        _
      $region16: #{resnet_generator_forward.13} parent=11 // pred_fallthru
        _
      // Predicated region
      $region17: #{resnet_generator_forward.13} parent=11 // pred_check
        %p121 = pneg %p51
      $region18: #{resnet_generator_forward.13} parent=11 // pred_check_branch
        %123 = sbr.rel (%p121) target = $region20
      $region19: #{resnet_generator_forward.13} parent=11 // pred_region
        _
      $region20: #{resnet_generator_forward.13} parent=11 // pred_fallthru
        _
    $region12: #{resnet_generator_forward.13} parent=5 // pred_fallthru
      _
    %p124 = scmp.lt.s32.totalorder %s9, 2
    // Predicated region
    $region21: #{resnet_generator_forward.13} parent=5 // pred_check
      %p125 = pneg %p124
    $region22: #{resnet_generator_forward.13} parent=5 // pred_check_branch
      %127 = sbr.rel (%p125) target = $region24
    $region23: #{resnet_generator_forward.13} parent=5 // pred_region
      // Predicated region
      $region25: #{resnet_generator_forward.13} parent=23 // pred_check
        %p128 = pneg %p71
      $region26: #{resnet_generator_forward.13} parent=23 // pred_check_branch
        %130 = sbr.rel (%p128) target = $region28
      $region27: #{resnet_generator_forward.13} parent=23 // pred_region
        %p131 = scmp.lt.s32.totalorder %s9, 1
        %s132 = scalar_select %p131, %s9, 1
        %s133 = smul.addr %s132, 36
        %s134 = smul.addr %s133, 4
        %s135 = scalar_lea.vmem %s2, %s134
      $region28: #{resnet_generator_forward.13} parent=23 // pred_fallthru
        _
    $region24: #{resnet_generator_forward.13} parent=5 // pred_fallthru
      _
    %p136 = scmp.le.s32.totalorder 1, %s9
    %p137 = scmp.lt.s32.totalorder %s9, 3
    %p138 = pnand %p136, %p137
    %p139 = pneg %p138
    // Predicated region
    $region29: #{resnet_generator_forward.13} parent=5 // pred_check
      _
    $region30: #{resnet_generator_forward.13} parent=5 // pred_check_branch
      %141 = sbr.rel (%p138) target = $region32
    $region31: #{resnet_generator_forward.13} parent=5 // pred_region
      %s142 = ssub.s32 %s9, 1
      %p143 = pneg %p30
      %p144 = pneg %p27
      %p145 = pneg %p51
      %p146 = pneg %p48
      %p147 = scmp.lt.s32.totalorder %s14, 1
      %s148 = scalar_select %p147, %s14, 1
      %s149 = smul.addr %s148, 36
      %s150 = smul.addr %s149, 4
      %s151 = scalar_lea.vmem %s2, %s150
      %p152 = pneg %p77
      %p153 = pneg %p74
      %p154 = pneg %p103
      %p155 = pneg %p100
      %p156 = scmp.lt.s32.totalorder %s14, 1
      %s157 = scalar_select %p156, %s14, 1
      %s158 = smul.addr %s157, 4
      %s159 = smul.addr %s158, 8
      %s160 = scalar_lea.vmem %s3, %s159
      %p161 = scmp.lt.s32.totalorder %s14, 1
      %s162 = scalar_select %p161, %s14, 1
      %s163 = smul.addr %s162, 36
      %s164 = smul.addr %s163, 4
      %s165 = scalar_lea.vmem %s2, %s164
      %p166 = scmp.lt.s32.totalorder %s14, 1
      %s167 = scalar_select %p166, %s14, 1
      %s168 = smul.addr %s167, 4
      %s169 = smul.addr %s168, 8
      %s170 = scalar_lea.vmem %s3, %s169
      %v172 = vld [vmem:[%s165] sm:$0xf]
      %v173 = vld [vmem:[%s165 + $0x4] sm:$0xf]
      %v174 = vld [vmem:[%s165 + $0x8] sm:$0xf]
      %v175 = vld [vmem:[%s165 + $0xc] sm:$0xf]
      %v176 = vld [vmem:[%s165 + $0x10] sm:$0xf]
      %v177 = vld [vmem:[%s165 + $0x14] sm:$0xf]
      %v178 = vld [vmem:[%s165 + $0x18] sm:$0xf]
      %v179 = vld [vmem:[%s165 + $0x1c] sm:$0xf]
      %v180 = vld [vmem:[%s165 + $0x20] sm:$0xf]
      %v181 = vld [vmem:[%s165 + $0x24] sm:$0xf]
      %v182 = vld [vmem:[%s165 + $0x28] sm:$0xf]
      %v183 = vld [vmem:[%s165 + $0x2c] sm:$0xf]
      %v184 = vld [vmem:[%s165 + $0x30] sm:$0xf]
      %v185 = vld [vmem:[%s165 + $0x34] sm:$0xf]
      %v186 = vld [vmem:[%s165 + $0x38] sm:$0xf]
      %v187 = vld [vmem:[%s165 + $0x3c] sm:$0xf]
      %v188 = vld [vmem:[%s165 + $0x40] sm:$0xf]
      %v189 = vld [vmem:[%s165 + $0x44] sm:$0xf]
      %v190 = vld [vmem:[%s165 + $0x48] sm:$0xf]
      %v191 = vld [vmem:[%s165 + $0x4c] sm:$0xf]
      %v192 = vld [vmem:[%s165 + $0x50] sm:$0xf]
      %v193 = vld [vmem:[%s165 + $0x54] sm:$0xf]
      %v194 = vld [vmem:[%s165 + $0x58] sm:$0xf]
      %v195 = vld [vmem:[%s165 + $0x5c] sm:$0xf]
      %v196 = vld [vmem:[%s165 + $0x60] sm:$0xf]
      %v197 = vld [vmem:[%s165 + $0x64] sm:$0xf]
      %v198 = vld [vmem:[%s165 + $0x68] sm:$0xf]
      %v199 = vld [vmem:[%s165 + $0x6c] sm:$0xf]
      %v200 = vld [vmem:[%s165 + $0x70] sm:$0xf]
      %v201 = vld [vmem:[%s165 + $0x74] sm:$0xf]
      %v202 = vld [vmem:[%s165 + $0x78] sm:$0xf]
      %v203 = vld [vmem:[%s165 + $0x7c] sm:$0xf]
      %v204 = vld [vmem:[%s165 + $0x80] sm:$0xf]
      %v205 = vld [vmem:[%s165 + $0x84] sm:$0xf]
      %v206 = vld [vmem:[%s165 + $0x88] sm:$0xf]
      %v207 = vld [vmem:[%s165 + $0x8c] sm:$0xf]
      %v208 = vld [vmem:[%s0] sm:$0xff]
      %v209 = vld [vmem:[%s0 + $0x8] sm:$0xf]
      %v210 = vld [vmem:[%s0 + $0xc] sm:$0xff]
      %v211 = vld [vmem:[%s0 + $0x14] sm:$0xf]
      %v212 = vld [vmem:[%s0 + $0x18] sm:$0xff]
      %v213 = vld [vmem:[%s0 + $0x20] sm:$0xf]
      %v214 = vld [vmem:[%s0 + $0x24] sm:$0xff]
      %v215 = vld [vmem:[%s0 + $0x2c] sm:$0xf]
      %v216 = vld [vmem:[%s1] sm:$0xff]
      %v217 = vld [vmem:[%s1 + $0x8] sm:$0xff]
      %v218 = vld [vmem:[%s1 + $0x10] sm:$0xff]
      %v219 = vld [vmem:[%s1 + $0x18] sm:$0xff]
      %221 = vset.pattern.permute.xlu0 0
      %222 = vperm.xlu0 %221, %v216
      %v223 = vpop.permute.xlu0 %222
      %226 = vset.pattern.permute.xlu0 0
      %227 = vperm.xlu0 %226, %v217
      %v228 = vpop.permute.xlu0 %227
      %231 = vset.pattern.permute.xlu0 0
      %232 = vperm.xlu0 %231, %v218
      %v233 = vpop.permute.xlu0 %232
      %236 = vset.pattern.permute.xlu0 0
      %237 = vperm.xlu0 %236, %v219
      %v238 = vpop.permute.xlu0 %237
      %v248 = vunpack.c.l.b16 %v208
      %v249 = vunpack.c.h.b16 %v208
      %v250 = vunpack.c.l.b16 %v209
      %v251 = vunpack.c.l.b16 %v210
      %v252 = vunpack.c.h.b16 %v210
      %v253 = vunpack.c.l.b16 %v211
      %v254 = vunpack.c.l.b16 %v212
      %v255 = vunpack.c.h.b16 %v212
      %v256 = vunpack.c.l.b16 %v213
      %v257 = vunpack.c.l.b16 %v214
      %v258 = vunpack.c.h.b16 %v214
      %v259 = vunpack.c.l.b16 %v215
      %v260 = vpack.c.b16 %v251, %v248
      %v261 = vpack.c.b16 %v252, %v249
      %v262 = vpack.c.b16 %v253, %v250
      %v263 = vpack.c.b16 %v257, %v254
      %v264 = vpack.c.b16 %v258, %v255
      %v265 = vpack.c.b16 %v259, %v256
      %v306 = vunpack.c.l.b16 %v172
      %v307 = vunpack.c.l.b16 %v173
      %v308 = vunpack.c.l.b16 %v174
      %v309 = vunpack.c.l.b16 %v175
      %v310 = vunpack.c.l.b16 %v176
      %v311 = vunpack.c.l.b16 %v177
      %v312 = vunpack.c.l.b16 %v178
      %v313 = vunpack.c.l.b16 %v179
      %v314 = vunpack.c.l.b16 %v180
      %v315 = vunpack.c.l.b16 %v181
      %v316 = vunpack.c.l.b16 %v182
      %v317 = vunpack.c.l.b16 %v183
      %v318 = vunpack.c.l.b16 %v184
      %v319 = vunpack.c.l.b16 %v185
      %v320 = vunpack.c.l.b16 %v186
      %v321 = vunpack.c.l.b16 %v187
      %v322 = vunpack.c.l.b16 %v188
      %v323 = vunpack.c.l.b16 %v189
      %v324 = vunpack.c.l.b16 %v190
      %v325 = vunpack.c.l.b16 %v191
      %v326 = vunpack.c.l.b16 %v192
      %v327 = vunpack.c.l.b16 %v193
      %v328 = vunpack.c.l.b16 %v194
      %v329 = vunpack.c.l.b16 %v195
      %v330 = vunpack.c.l.b16 %v196
      %v331 = vunpack.c.l.b16 %v197
      %v332 = vunpack.c.l.b16 %v198
      %v333 = vunpack.c.l.b16 %v199
      %v334 = vunpack.c.l.b16 %v200
      %v335 = vunpack.c.l.b16 %v201
      %v336 = vunpack.c.l.b16 %v202
      %v337 = vunpack.c.l.b16 %v203
      %v338 = vunpack.c.l.b16 %v204
      %v339 = vunpack.c.l.b16 %v205
      %v340 = vunpack.c.l.b16 %v206
      %v341 = vunpack.c.l.b16 %v207
      %v342 = vpack.c.b16 %v307, %v306
      %v343 = vpack.c.b16 %v309, %v308
      %v344 = vpack.c.b16 %v311, %v310
      %v345 = vpack.c.b16 %v313, %v312
      %v346 = vpack.c.b16 %v315, %v314
      %v347 = vpack.c.b16 %v317, %v316
      %v348 = vpack.c.b16 %v319, %v318
      %v349 = vpack.c.b16 %v321, %v320
      %v350 = vpack.c.b16 %v323, %v322
      %v351 = vpack.c.b16 %v325, %v324
      %v352 = vpack.c.b16 %v327, %v326
      %v353 = vpack.c.b16 %v329, %v328
      %v354 = vpack.c.b16 %v331, %v330
      %v355 = vpack.c.b16 %v333, %v332
      %v356 = vpack.c.b16 %v335, %v334
      %v357 = vpack.c.b16 %v337, %v336
      %v358 = vpack.c.b16 %v339, %v338
      %v359 = vpack.c.b16 %v341, %v340
      %vm378 = vcmask 261120
      %v380 = vsel %vm378, %v262, 0
      %v383 = vsel %vm378, %v265, 0
      %385 = vmatprep.subr.bf16.mxu0 0
      %386 = vmatpush1.bf16.msra.mxu0 %v342
      %387 = vmatprep.subr.bf16.mxu0 0
      %388 = vmatpush1.bf16.msra.mxu0 %v343
      %389 = vmatprep.subr.bf16.mxu0 0
      %390 = vmatpush1.bf16.msra.mxu0 %v344
      %391 = vmatprep.subr.bf16.mxu0 0
      %392 = vmatpush1.bf16.msra.mxu0 %v345
      %393 = vmatprep.subr.bf16.mxu0 0
      %394 = vmatpush1.bf16.msra.mxu0 %v346
      %395 = vmatprep.subr.bf16.mxu0 0
      %396 = vmatpush1.bf16.msra.mxu0 %v347
      %397 = vmatprep.subr.bf16.mxu0 0
      %398 = vmatpush1.bf16.msra.mxu0 %v348
      %399 = vmatprep.subr.bf16.mxu0 0
      %400 = vmatpush1.bf16.msra.mxu0 %v349
      %401 = vmatprep.subr.bf16.mxu0 0
      %402 = vmatpush1.bf16.msra.mxu0 %v350
      %403 = vmatprep.subr.bf16.mxu0 0
      %404 = vmatpush1.bf16.msra.mxu0 %v351
      %405 = vmatprep.subr.bf16.mxu0 0
      %406 = vmatpush1.bf16.msra.mxu0 %v352
      %407 = vmatprep.subr.bf16.mxu0 0
      %408 = vmatpush1.bf16.msra.mxu0 %v353
      %409 = vmatprep.subr.bf16.mxu0 0
      %410 = vmatpush1.bf16.msra.mxu0 %v354
      %411 = vmatprep.subr.bf16.mxu0 0
      %412 = vmatpush1.bf16.msra.mxu0 %v355
      %413 = vmatprep.subr.bf16.mxu0 0
      %414 = vmatpush1.bf16.msra.mxu0 %v356
      %415 = vmatprep.subr.bf16.mxu0 0
      %416 = vmatpush1.bf16.msra.mxu0 %v357
      %417 = vmatprep.mubr.bf16.mxu0 %v261
      %418 = vmatmul.mubr.bf16.gmra.mrb[0].mxu0 %v260
      %v419 = vpop.f32.mrb[0].mxu0
      %v420 = vadd.f32 %v223, %v419
      %v421 = vpop.f32.mrb[0].mxu0
      %v422 = vpop.f32.mrb[0].mxu0
      %v423 = vadd.f32 %v228, %v422
      %v424 = vpop.f32.mrb[0].mxu0
      %425 = vmatprep.mubr.bf16.mxu0 %v264
      %426 = vmatmul.mubr.bf16.gmra.mrb[0].mxu0 %v263
      %v427 = vpop.f32.mrb[0].mxu0
      %v428 = vadd.f32 %v233, %v427
      %v429 = vpop.f32.mrb[0].mxu0
      %v430 = vpop.f32.mrb[0].mxu0
      %v431 = vadd.f32 %v238, %v430
      %v432 = vpop.f32.mrb[0].mxu0
      %433 = vdwg.mxu0
      %434 = vmatprep.subr.bf16.mxu0 0
      %435 = vmatpush1.bf16.msra.mxu0 %v358
      %436 = vmatprep.subr.bf16.mxu0 0
      %437 = vmatpush1.bf16.msra.mxu0 %v359
      %438 = vmatprep.subr.bf16.mxu0 0
      %439 = vmatpush1.bf16.msra.mxu0 0
      %440 = vmatprep.subr.bf16.mxu0 0
      %441 = vmatpush1.bf16.msra.mxu0 0
      %442 = vmatprep.subr.bf16.mxu0 0
      %443 = vmatpush1.bf16.msra.mxu0 0
      %444 = vmatprep.subr.bf16.mxu0 0
      %445 = vmatpush1.bf16.msra.mxu0 0
      %446 = vmatprep.subr.bf16.mxu0 0
      %447 = vmatpush1.bf16.msra.mxu0 0
      %448 = vmatprep.subr.bf16.mxu0 0
      %449 = vmatpush1.bf16.msra.mxu0 0
      %450 = vmatprep.subr.bf16.mxu0 0
      %451 = vmatpush1.bf16.msra.mxu0 0
      %452 = vmatprep.subr.bf16.mxu0 0
      %453 = vmatpush1.bf16.msra.mxu0 0
      %454 = vmatprep.subr.bf16.mxu0 0
      %455 = vmatpush1.bf16.msra.mxu0 0
      %456 = vmatprep.subr.bf16.mxu0 0
      %457 = vmatpush1.bf16.msra.mxu0 0
      %458 = vmatprep.subr.bf16.mxu0 0
      %459 = vmatpush1.bf16.msra.mxu0 0
      %460 = vmatprep.subr.bf16.mxu0 0
      %461 = vmatpush1.bf16.msra.mxu0 0
      %462 = vmatprep.subr.bf16.mxu0 0
      %463 = vmatpush1.bf16.msra.mxu0 0
      %464 = vmatprep.subr.bf16.mxu0 0
      %465 = vmatpush1.bf16.msra.mxu0 0
      %466 = vmatprep.mubr.bf16.mxu0 0
      %467 = vmatmul.mubr.bf16.gmra.mrb[0].mxu0 %v380
      %v468 = vpop.f32.mrb[0].mxu0
      %v469 = vadd.f32 %v420, %v468
      %v470 = vpop.f32.mrb[0].mxu0
      %v471 = vpop.f32.mrb[0].mxu0
      %v472 = vadd.f32 %v423, %v471
      %v473 = vpop.f32.mrb[0].mxu0
      %474 = vmatprep.mubr.bf16.mxu0 0
      %475 = vmatmul.mubr.bf16.gmra.mrb[0].mxu0 %v383
      %v476 = vpop.f32.mrb[0].mxu0
      %v477 = vadd.f32 %v428, %v476
      %v478 = vpop.f32.mrb[0].mxu0
      %v479 = vpop.f32.mrb[0].mxu0
      %v480 = vadd.f32 %v431, %v479
      %v481 = vpop.f32.mrb[0].mxu0
      %482 = vdwg.mxu0
      %vm483 = vcmask 130048
      %v484 = vsel %vm483, %v469, 0.0
      %485 = vadd.xlane.f32.xlu0 %v484
      %v486 = vpop.xlane.xlu0 %485
      %v487 = vsel %vm483, %v472, 0.0
      %488 = vadd.xlane.f32.xlu0 %v487
      %v489 = vpop.xlane.xlu0 %488
      %v490 = vsel %vm483, %v477, 0.0
      %491 = vadd.xlane.f32.xlu0 %v490
      %v492 = vpop.xlane.xlu0 %491
      %v493 = vsel %vm483, %v480, 0.0
      %494 = vadd.xlane.f32.xlu0 %v493
      %v495 = vpop.xlane.xlu0 %494
      %v496 = vmul.f32 %v469, %v469
      %v497 = vmul.f32 %v472, %v472
      %v498 = vmul.f32 %v477, %v477
      %v499 = vmul.f32 %v480, %v480
      %v500 = vsel %vm483, %v496, 0.0
      %501 = vadd.xlane.f32.xlu0 %v500
      %v502 = vpop.xlane.xlu0 %501
      %v503 = vsel %vm483, %v497, 0.0
      %504 = vadd.xlane.f32.xlu0 %v503
      %v505 = vpop.xlane.xlu0 %504
      %v506 = vsel %vm483, %v498, 0.0
      %507 = vadd.xlane.f32.xlu0 %v506
      %v508 = vpop.xlane.xlu0 %507
      %v509 = vsel %vm483, %v499, 0.0
      %510 = vadd.xlane.f32.xlu0 %v509
      %v511 = vpop.xlane.xlu0 %510
      %v512 = vrcp.pop 16.0
      %v513 = vmul.f32 %v486, %v512
      %v514 = vmul.f32 %v489, %v512
      %v515 = vmul.f32 %v492, %v512
      %v516 = vmul.f32 %v495, %v512
      %v517 = vmul.f32 %v502, %v512
      %v518 = vmul.f32 %v505, %v512
      %v519 = vmul.f32 %v508, %v512
      %v520 = vmul.f32 %v511, %v512
      %v521 = vmul.f32 %v513, %v513
      %v522 = vmul.f32 %v514, %v514
      %v523 = vmul.f32 %v515, %v515
      %v524 = vmul.f32 %v516, %v516
      %v525 = vsub.f32 %v517, %v521
      %v526 = vsub.f32 %v518, %v522
      %v527 = vsub.f32 %v519, %v523
      %v528 = vsub.f32 %v520, %v524
      %v529 = vadd.f32 %v525, 1e-05
      %v530 = vadd.f32 %v526, 1e-05
      %v531 = vadd.f32 %v527, 1e-05
      %v532 = vadd.f32 %v528, 1e-05
      %v533 = vrsqrt.pop %v529
      %v534 = vrsqrt.pop %v530
      %v535 = vrsqrt.pop %v531
      %v536 = vrsqrt.pop %v532
      %v537 = vsub.f32 %v469, %v513
      %v538 = vsub.f32 %v472, %v514
      %v539 = vsub.f32 %v477, %v515
      %v540 = vsub.f32 %v480, %v516
      %v541 = vmul.f32 %v537, %v533
      %v542 = vmul.f32 %v538, %v534
      %v543 = vmul.f32 %v539, %v535
      %v544 = vmul.f32 %v540, %v536
      %v545 = vmax.f32 %v541, 0.0
      %v546 = vmax.f32 %v542, 0.0
      %v547 = vmax.f32 %v543, 0.0
      %v548 = vmax.f32 %v544, 0.0
      %549 = vst.msk [vmem:[%s170] sm:$0xff] %vm483, %v545
      %550 = vst.msk [vmem:[%s170 + $0x8] sm:$0xff] %vm483, %v546
      %551 = vst.msk [vmem:[%s170 + $0x10] sm:$0xff] %vm483, %v547
      %552 = vst.msk [vmem:[%s170 + $0x18] sm:$0xff] %vm483, %v548
      %p553 = scmp.lt.s32.totalorder %s14, 1
      %s554 = scalar_select %p553, %s14, 1
      %s555 = smul.addr %s554, 4
      %s556 = smul.addr %s555, 8
      %s557 = scalar_lea.vmem %s3, %s556
      // Predicated region
      $region33: #{resnet_generator_forward.13} parent=31 // pred_check
        %p558 = pneg %p100
      $region34: #{resnet_generator_forward.13} parent=31 // pred_check_branch
        %560 = sbr.rel (%p558) target = $region36
      $region35: #{resnet_generator_forward.13} parent=31 // pred_region
        _
      $region36: #{resnet_generator_forward.13} parent=31 // pred_fallthru
        _
    $region32: #{resnet_generator_forward.13} parent=5 // pred_fallthru
      _
    %p561 = scmp.le.s32.totalorder 2, %s9
    // Predicated region
    $region37: #{resnet_generator_forward.13} parent=5 // pred_check
      %p562 = pneg %p561
    $region38: #{resnet_generator_forward.13} parent=5 // pred_check_branch
      %564 = sbr.rel (%p562) target = $region40
    $region39: #{resnet_generator_forward.13} parent=5 // pred_region
      %s565 = ssub.s32 %s9, 2
      // Predicated region
      $region41: #{resnet_generator_forward.13} parent=39 // pred_check
        %p566 = pneg %p106
      $region42: #{resnet_generator_forward.13} parent=39 // pred_check_branch
        %568 = sbr.rel (%p566) target = $region44
      $region43: #{resnet_generator_forward.13} parent=39 // pred_region
        %p569 = scmp.lt.s32.totalorder %s15, 1
        %s570 = scalar_select %p569, %s15, 1
        %s571 = smul.addr %s570, 4
        %s572 = smul.addr %s571, 8
        %s573 = scalar_lea.vmem %s3, %s572
      $region44: #{resnet_generator_forward.13} parent=39 // pred_fallthru
        _
    $region40: #{resnet_generator_forward.13} parent=5 // pred_fallthru
      _
  $region6: #{resnet_generator_forward.13} parent=0 // loop_footer
    %s13 = sadd.s32 1, %s9
  $region7: #{resnet_generator_forward.13} parent=0 // loop_footer_branch
    %8 = sbr.rel target = $region3
  $region8: #{resnet_generator_forward.13} parent=0 // loop_exit
    _

// kernel: resnet_generator_forward.14
$region0: #{resnet_generator_forward.14}
  #allocation0 [shape = 'u32[]', space=smem, size = 0x4, offset = 0x4, fixed_abs, tag = 'smem constant byte address 0x4 - core index']
  #allocation1 [shape = 'u32[144,128]{1,0:T(1,128)}', space=vmem, size = 0x12000, scoped, tag = 'internal scratch']
  %s0 = inlined_call_operand.vmem [shape: bf16[32,288], index: 0, kind: input, shape index: {}]
  %s1 = inlined_call_operand.vmem [shape: f32[32,1], index: 1, kind: input, shape index: {}]
  %s2 = inlined_call_operand.vmem [shape: bf16[2,288,16], index: 2, kind: input, shape index: {}]
  %s3 = inlined_call_operand.vmem [shape: f32[2,32,16], index: 3, kind: input, shape index: {}]
  %s4 = inlined_call_operand.vmem [shape: f32[2,32,16], index: 4, kind: output, shape index: {}]
  %s5 = sld [smem:[#allocation0]]
  $region49: #{resnet_generator_forward.14} parent=0
    _
  %s7 = ssub.s32 1, %s5
  %s8 = scalar_select 0, %s7, %s5
  loop: start=0, step=1, limit=4
  $region2: #{resnet_generator_forward.14} parent=0 // loop_pre_header
    _
  $region3: #{resnet_generator_forward.14} parent=0 // loop_header
    %s10 = sphi 0, %s14
    %p11 = scmp.ge.s32.totalorder %s10, 4
    %s18 = sphi 0, %s18
    %s20 = sphi 0, %s18
    %s21 = sphi 0, %s20
    %s35 = sphi 0, %s21
    %s39 = sphi 0, %s39
    %s41 = sphi 0, %s39
    %s42 = sphi 0, %s41
    %s56 = sphi 0, %s42
    %s62 = sphi 0, %s64
    %s65 = sphi 0, %s62
    %s66 = sphi 0, %s65
    %s82 = sphi 0, %s66
    %s88 = sphi 0, %s90
    %s91 = sphi 0, %s88
    %s92 = sphi 0, %s91
    %s108 = sphi 0, %s92
    %s114 = sphi 0, %s116
    %s117 = sphi 0, %s114
    %s118 = sphi 0, %s117
    %s134 = sphi 0, %s118
  $region4: #{resnet_generator_forward.14} parent=0 // loop_header_branch
    %13 = sbr.rel (%p11) target = $region8
  $region5: #{resnet_generator_forward.14} parent=0 // loop_body
    %s15 = ssub.s32 %s10, 1
    %s16 = ssub.s32 %s10, 2
    %s17 = sadd.s32 %s10, 1
    %s19 = sadd.s32 %s18, 1
    %p22 = scmp.eq.s32.totalorder %s10, 1
    %p23 = scmp.ne.s32.totalorder %s18, %s20
    %p24 = scmp.eq.s32.totalorder %s10, 0
    %p25 = por %p23, %p24
    %p26 = scmp.ne.s32.totalorder %s18, %s20
    %p27 = scmp.eq.s32.totalorder %s15, 1
    %p28 = por %p26, %p27
    %p29 = scmp.ne.s32.totalorder %s20, %s21
    %p30 = scmp.eq.s32.totalorder %s15, 0
    %p31 = por %p29, %p30
    %p32 = scmp.ne.s32.totalorder %s20, %s21
    %p33 = scmp.eq.s32.totalorder %s16, 1
    %p34 = por %p32, %p33
    %p36 = scmp.ne.s32.totalorder %s21, %s35
    %p37 = scmp.eq.s32.totalorder %s16, 0
    %p38 = por %p36, %p37
    %s40 = sadd.s32 %s39, 1
    %p43 = scmp.eq.s32.totalorder %s10, 1
    %p44 = scmp.ne.s32.totalorder %s39, %s41
    %p45 = scmp.eq.s32.totalorder %s10, 0
    %p46 = por %p44, %p45
    %p47 = scmp.ne.s32.totalorder %s39, %s41
    %p48 = scmp.eq.s32.totalorder %s15, 1
    %p49 = por %p47, %p48
    %p50 = scmp.ne.s32.totalorder %s41, %s42
    %p51 = scmp.eq.s32.totalorder %s15, 0
    %p52 = por %p50, %p51
    %p53 = scmp.ne.s32.totalorder %s41, %s42
    %p54 = scmp.eq.s32.totalorder %s16, 1
    %p55 = por %p53, %p54
    %p57 = scmp.ne.s32.totalorder %s42, %s56
    %p58 = scmp.eq.s32.totalorder %s16, 0
    %p59 = por %p57, %p58
    %s60 = ssub.s32 %s10, %s17
    %p61 = scmp.eq.s32.totalorder %s60, 0
    %s63 = sadd.s32 %s62, 1
    %s64 = scalar_select %p61, %s62, %s63
    %p67 = pneg %p61
    %p68 = scmp.eq.s32.totalorder %s10, 1
    %p69 = por %p67, %p68
    %p70 = scmp.ne.s32.totalorder %s62, %s65
    %p71 = scmp.eq.s32.totalorder %s10, 0
    %p72 = por %p70, %p71
    %p73 = scmp.ne.s32.totalorder %s62, %s65
    %p74 = scmp.eq.s32.totalorder %s15, 1
    %p75 = por %p73, %p74
    %p76 = scmp.ne.s32.totalorder %s65, %s66
    %p77 = scmp.eq.s32.totalorder %s15, 0
    %p78 = por %p76, %p77
    %p79 = scmp.ne.s32.totalorder %s65, %s66
    %p80 = scmp.eq.s32.totalorder %s16, 1
    %p81 = por %p79, %p80
    %p83 = scmp.ne.s32.totalorder %s66, %s82
    %p84 = scmp.eq.s32.totalorder %s16, 0
    %p85 = por %p83, %p84
    %s86 = ssub.s32 %s10, %s17
    %p87 = scmp.eq.s32.totalorder %s86, 0
    %s89 = sadd.s32 %s88, 1
    %s90 = scalar_select %p87, %s88, %s89
    %p93 = pneg %p87
    %p94 = scmp.eq.s32.totalorder %s10, 1
    %p95 = por %p93, %p94
    %p96 = scmp.ne.s32.totalorder %s88, %s91
    %p97 = scmp.eq.s32.totalorder %s10, 0
    %p98 = por %p96, %p97
    %p99 = scmp.ne.s32.totalorder %s88, %s91
    %p100 = scmp.eq.s32.totalorder %s15, 1
    %p101 = por %p99, %p100
    %p102 = scmp.ne.s32.totalorder %s91, %s92
    %p103 = scmp.eq.s32.totalorder %s15, 0
    %p104 = por %p102, %p103
    %p105 = scmp.ne.s32.totalorder %s91, %s92
    %p106 = scmp.eq.s32.totalorder %s16, 1
    %p107 = por %p105, %p106
    %p109 = scmp.ne.s32.totalorder %s92, %s108
    %p110 = scmp.eq.s32.totalorder %s16, 0
    %p111 = por %p109, %p110
    %s112 = ssub.s32 %s10, %s17
    %p113 = scmp.eq.s32.totalorder %s112, 0
    %s115 = sadd.s32 %s114, 1
    %s116 = scalar_select %p113, %s114, %s115
    %p119 = pneg %p113
    %p120 = scmp.eq.s32.totalorder %s10, 1
    %p121 = por %p119, %p120
    %p122 = scmp.ne.s32.totalorder %s114, %s117
    %p123 = scmp.eq.s32.totalorder %s10, 0
    %p124 = por %p122, %p123
    %p125 = scmp.ne.s32.totalorder %s114, %s117
    %p126 = scmp.eq.s32.totalorder %s15, 1
    %p127 = por %p125, %p126
    %p128 = scmp.ne.s32.totalorder %s117, %s118
    %p129 = scmp.eq.s32.totalorder %s15, 0
    %p130 = por %p128, %p129
    %p131 = scmp.ne.s32.totalorder %s117, %s118
    %p132 = scmp.eq.s32.totalorder %s16, 1
    %p133 = por %p131, %p132
    %p135 = scmp.ne.s32.totalorder %s118, %s134
    %p136 = scmp.eq.s32.totalorder %s16, 0
    %p137 = por %p135, %p136
    %p138 = scmp.le.s32.totalorder 1, %s10
    %p139 = scmp.lt.s32.totalorder %s10, 3
    %p140 = pnand %p138, %p139
    %p141 = pneg %p140
    // Predicated region
    $region9: #{resnet_generator_forward.14} parent=5 // pred_check
      _
    $region10: #{resnet_generator_forward.14} parent=5 // pred_check_branch
      %143 = sbr.rel (%p140) target = $region12
    $region11: #{resnet_generator_forward.14} parent=5 // pred_region
      %s144 = ssub.s32 %s10, 1
      // Predicated region
      $region13: #{resnet_generator_forward.14} parent=11 // pred_check
        %p145 = pneg %p31
      $region14: #{resnet_generator_forward.14} parent=11 // pred_check_branch
        %147 = sbr.rel (%p145) target = $region16
      $region15: #{resnet_generator_forward.14} parent=11 // pred_region
        _
      $region16: #{resnet_generator_forward.14} parent=11 // pred_fallthru
        _
      // Predicated region
      $region17: #{resnet_generator_forward.14} parent=11 // pred_check
        %p148 = pneg %p52
      $region18: #{resnet_generator_forward.14} parent=11 // pred_check_branch
        %150 = sbr.rel (%p148) target = $region20
      $region19: #{resnet_generator_forward.14} parent=11 // pred_region
        _
      $region20: #{resnet_generator_forward.14} parent=11 // pred_fallthru
        _
    $region12: #{resnet_generator_forward.14} parent=5 // pred_fallthru
      _
    %p151 = scmp.lt.s32.totalorder %s10, 2
    // Predicated region
    $region21: #{resnet_generator_forward.14} parent=5 // pred_check
      %p152 = pneg %p151
    $region22: #{resnet_generator_forward.14} parent=5 // pred_check_branch
      %154 = sbr.rel (%p152) target = $region24
    $region23: #{resnet_generator_forward.14} parent=5 // pred_region
      // Predicated region
      $region25: #{resnet_generator_forward.14} parent=23 // pred_check
        %p155 = pneg %p72
      $region26: #{resnet_generator_forward.14} parent=23 // pred_check_branch
        %157 = sbr.rel (%p155) target = $region28
      $region27: #{resnet_generator_forward.14} parent=23 // pred_region
        %p158 = scmp.lt.s32.totalorder %s10, 1
        %s159 = scalar_select %p158, %s10, 1
        %s160 = smul.addr %s159, 36
        %s161 = smul.addr %s160, 4
        %s162 = scalar_lea.vmem %s2, %s161
      $region28: #{resnet_generator_forward.14} parent=23 // pred_fallthru
        _
      // Predicated region
      $region29: #{resnet_generator_forward.14} parent=23 // pred_check
        %p163 = pneg %p98
      $region30: #{resnet_generator_forward.14} parent=23 // pred_check_branch
        %165 = sbr.rel (%p163) target = $region32
      $region31: #{resnet_generator_forward.14} parent=23 // pred_region
        %p166 = scmp.lt.s32.totalorder %s10, 1
        %s167 = scalar_select %p166, %s10, 1
        %s168 = smul.addr %s167, 4
        %s169 = smul.addr %s168, 8
        %s170 = scalar_lea.vmem %s3, %s169
      $region32: #{resnet_generator_forward.14} parent=23 // pred_fallthru
        _
    $region24: #{resnet_generator_forward.14} parent=5 // pred_fallthru
      _
    %p171 = scmp.le.s32.totalorder 1, %s10
    %p172 = scmp.lt.s32.totalorder %s10, 3
    %p173 = pnand %p171, %p172
    %p174 = pneg %p173
    // Predicated region
    $region33: #{resnet_generator_forward.14} parent=5 // pred_check
      _
    $region34: #{resnet_generator_forward.14} parent=5 // pred_check_branch
      %176 = sbr.rel (%p173) target = $region36
    $region35: #{resnet_generator_forward.14} parent=5 // pred_region
      %s177 = ssub.s32 %s10, 1
      %p178 = pneg %p31
      %p179 = pneg %p28
      %p180 = pneg %p52
      %p181 = pneg %p49
      %p182 = scmp.lt.s32.totalorder %s15, 1
      %s183 = scalar_select %p182, %s15, 1
      %s184 = smul.addr %s183, 36
      %s185 = smul.addr %s184, 4
      %s186 = scalar_lea.vmem %s2, %s185
      %p187 = pneg %p78
      %p188 = pneg %p75
      %p189 = scmp.lt.s32.totalorder %s15, 1
      %s190 = scalar_select %p189, %s15, 1
      %s191 = smul.addr %s190, 4
      %s192 = smul.addr %s191, 8
      %s193 = scalar_lea.vmem %s3, %s192
      %p194 = pneg %p104
      %p195 = pneg %p101
      %p196 = pneg %p130
      %p197 = pneg %p127
      %p198 = scmp.lt.s32.totalorder %s15, 1
      %s199 = scalar_select %p198, %s15, 1
      %s200 = smul.addr %s199, 4
      %s201 = smul.addr %s200, 8
      %s202 = scalar_lea.vmem %s4, %s201
      %p203 = scmp.lt.s32.totalorder %s15, 1
      %s204 = scalar_select %p203, %s15, 1
      %s205 = smul.addr %s204, 36
      %s206 = smul.addr %s205, 4
      %s207 = scalar_lea.vmem %s2, %s206
      %p208 = scmp.lt.s32.totalorder %s15, 1
      %s209 = scalar_select %p208, %s15, 1
      %s210 = smul.addr %s209, 4
      %s211 = smul.addr %s210, 8
      %s212 = scalar_lea.vmem %s3, %s211
      %p213 = scmp.lt.s32.totalorder %s15, 1
      %s214 = scalar_select %p213, %s15, 1
      %s215 = smul.addr %s214, 4
      %s216 = smul.addr %s215, 8
      %s217 = scalar_lea.vmem %s4, %s216
      %v219 = vld [vmem:[%s207] sm:$0xf]
      %v220 = vld [vmem:[%s207 + $0x4] sm:$0xf]
      %v221 = vld [vmem:[%s207 + $0x8] sm:$0xf]
      %v222 = vld [vmem:[%s207 + $0xc] sm:$0xf]
      %v223 = vld [vmem:[%s207 + $0x10] sm:$0xf]
      %v224 = vld [vmem:[%s207 + $0x14] sm:$0xf]
      %v225 = vld [vmem:[%s207 + $0x18] sm:$0xf]
      %v226 = vld [vmem:[%s207 + $0x1c] sm:$0xf]
      %v227 = vld [vmem:[%s207 + $0x20] sm:$0xf]
      %v228 = vld [vmem:[%s207 + $0x24] sm:$0xf]
      %v229 = vld [vmem:[%s207 + $0x28] sm:$0xf]
      %v230 = vld [vmem:[%s207 + $0x2c] sm:$0xf]
      %v231 = vld [vmem:[%s207 + $0x30] sm:$0xf]
      %v232 = vld [vmem:[%s207 + $0x34] sm:$0xf]
      %v233 = vld [vmem:[%s207 + $0x38] sm:$0xf]
      %v234 = vld [vmem:[%s207 + $0x3c] sm:$0xf]
      %v235 = vld [vmem:[%s207 + $0x40] sm:$0xf]
      %v236 = vld [vmem:[%s207 + $0x44] sm:$0xf]
      %v237 = vld [vmem:[%s207 + $0x48] sm:$0xf]
      %v238 = vld [vmem:[%s207 + $0x4c] sm:$0xf]
      %v239 = vld [vmem:[%s207 + $0x50] sm:$0xf]
      %v240 = vld [vmem:[%s207 + $0x54] sm:$0xf]
      %v241 = vld [vmem:[%s207 + $0x58] sm:$0xf]
      %v242 = vld [vmem:[%s207 + $0x5c] sm:$0xf]
      %v243 = vld [vmem:[%s207 + $0x60] sm:$0xf]
      %v244 = vld [vmem:[%s207 + $0x64] sm:$0xf]
      %v245 = vld [vmem:[%s207 + $0x68] sm:$0xf]
      %v246 = vld [vmem:[%s207 + $0x6c] sm:$0xf]
      %v247 = vld [vmem:[%s207 + $0x70] sm:$0xf]
      %v248 = vld [vmem:[%s207 + $0x74] sm:$0xf]
      %v249 = vld [vmem:[%s207 + $0x78] sm:$0xf]
      %v250 = vld [vmem:[%s207 + $0x7c] sm:$0xf]
      %v251 = vld [vmem:[%s207 + $0x80] sm:$0xf]
      %v252 = vld [vmem:[%s207 + $0x84] sm:$0xf]
      %v253 = vld [vmem:[%s207 + $0x88] sm:$0xf]
      %v254 = vld [vmem:[%s207 + $0x8c] sm:$0xf]
      %v255 = vld [vmem:[%s0] sm:$0xff]
      %v256 = vld [vmem:[%s0 + $0x8] sm:$0xf]
      %v257 = vld [vmem:[%s0 + $0xc] sm:$0xff]
      %v258 = vld [vmem:[%s0 + $0x14] sm:$0xf]
      %v259 = vld [vmem:[%s0 + $0x18] sm:$0xff]
      %v260 = vld [vmem:[%s0 + $0x20] sm:$0xf]
      %v261 = vld [vmem:[%s0 + $0x24] sm:$0xff]
      %v262 = vld [vmem:[%s0 + $0x2c] sm:$0xf]
      %v263 = vld [vmem:[%s1] sm:$0xff]
      %v264 = vld [vmem:[%s1 + $0x8] sm:$0xff]
      %v265 = vld [vmem:[%s1 + $0x10] sm:$0xff]
      %v266 = vld [vmem:[%s1 + $0x18] sm:$0xff]
      %268 = vset.pattern.permute.xlu0 0
      %269 = vperm.xlu0 %268, %v263
      %v270 = vpop.permute.xlu0 %269
      %273 = vset.pattern.permute.xlu0 0
      %274 = vperm.xlu0 %273, %v264
      %v275 = vpop.permute.xlu0 %274
      %278 = vset.pattern.permute.xlu0 0
      %279 = vperm.xlu0 %278, %v265
      %v280 = vpop.permute.xlu0 %279
      %283 = vset.pattern.permute.xlu0 0
      %284 = vperm.xlu0 %283, %v266
      %v285 = vpop.permute.xlu0 %284
      %v295 = vunpack.c.l.b16 %v255
      %v296 = vunpack.c.h.b16 %v255
      %v297 = vunpack.c.l.b16 %v256
      %v298 = vunpack.c.l.b16 %v257
      %v299 = vunpack.c.h.b16 %v257
      %v300 = vunpack.c.l.b16 %v258
      %v301 = vunpack.c.l.b16 %v259
      %v302 = vunpack.c.h.b16 %v259
      %v303 = vunpack.c.l.b16 %v260
      %v304 = vunpack.c.l.b16 %v261
      %v305 = vunpack.c.h.b16 %v261
      %v306 = vunpack.c.l.b16 %v262
      %v307 = vpack.c.b16 %v298, %v295
      %v308 = vpack.c.b16 %v299, %v296
      %v309 = vpack.c.b16 %v300, %v297
      %v310 = vpack.c.b16 %v304, %v301
      %v311 = vpack.c.b16 %v305, %v302
      %v312 = vpack.c.b16 %v306, %v303
      %v353 = vunpack.c.l.b16 %v219
      %v354 = vunpack.c.l.b16 %v220
      %v355 = vunpack.c.l.b16 %v221
      %v356 = vunpack.c.l.b16 %v222
      %v357 = vunpack.c.l.b16 %v223
      %v358 = vunpack.c.l.b16 %v224
      %v359 = vunpack.c.l.b16 %v225
      %v360 = vunpack.c.l.b16 %v226
      %v361 = vunpack.c.l.b16 %v227
      %v362 = vunpack.c.l.b16 %v228
      %v363 = vunpack.c.l.b16 %v229
      %v364 = vunpack.c.l.b16 %v230
      %v365 = vunpack.c.l.b16 %v231
      %v366 = vunpack.c.l.b16 %v232
      %v367 = vunpack.c.l.b16 %v233
      %v368 = vunpack.c.l.b16 %v234
      %v369 = vunpack.c.l.b16 %v235
      %v370 = vunpack.c.l.b16 %v236
      %v371 = vunpack.c.l.b16 %v237
      %v372 = vunpack.c.l.b16 %v238
      %v373 = vunpack.c.l.b16 %v239
      %v374 = vunpack.c.l.b16 %v240
      %v375 = vunpack.c.l.b16 %v241
      %v376 = vunpack.c.l.b16 %v242
      %v377 = vunpack.c.l.b16 %v243
      %v378 = vunpack.c.l.b16 %v244
      %v379 = vunpack.c.l.b16 %v245
      %v380 = vunpack.c.l.b16 %v246
      %v381 = vunpack.c.l.b16 %v247
      %v382 = vunpack.c.l.b16 %v248
      %v383 = vunpack.c.l.b16 %v249
      %v384 = vunpack.c.l.b16 %v250
      %v385 = vunpack.c.l.b16 %v251
      %v386 = vunpack.c.l.b16 %v252
      %v387 = vunpack.c.l.b16 %v253
      %v388 = vunpack.c.l.b16 %v254
      %v389 = vpack.c.b16 %v354, %v353
      %v390 = vpack.c.b16 %v356, %v355
      %v391 = vpack.c.b16 %v358, %v357
      %v392 = vpack.c.b16 %v360, %v359
      %v393 = vpack.c.b16 %v362, %v361
      %v394 = vpack.c.b16 %v364, %v363
      %v395 = vpack.c.b16 %v366, %v365
      %v396 = vpack.c.b16 %v368, %v367
      %v397 = vpack.c.b16 %v370, %v369
      %v398 = vpack.c.b16 %v372, %v371
      %v399 = vpack.c.b16 %v374, %v373
      %v400 = vpack.c.b16 %v376, %v375
      %v401 = vpack.c.b16 %v378, %v377
      %v402 = vpack.c.b16 %v380, %v379
      %v403 = vpack.c.b16 %v382, %v381
      %v404 = vpack.c.b16 %v384, %v383
      %v405 = vpack.c.b16 %v386, %v385
      %v406 = vpack.c.b16 %v388, %v387
      %vm425 = vcmask 261120
      %v427 = vsel %vm425, %v309, 0
      %v430 = vsel %vm425, %v312, 0
      %432 = vmatprep.subr.bf16.mxu0 0
      %433 = vmatpush1.bf16.msra.mxu0 %v389
      %434 = vmatprep.subr.bf16.mxu0 0
      %435 = vmatpush1.bf16.msra.mxu0 %v390
      %436 = vmatprep.subr.bf16.mxu0 0
      %437 = vmatpush1.bf16.msra.mxu0 %v391
      %438 = vmatprep.subr.bf16.mxu0 0
      %439 = vmatpush1.bf16.msra.mxu0 %v392
      %440 = vmatprep.subr.bf16.mxu0 0
      %441 = vmatpush1.bf16.msra.mxu0 %v393
      %442 = vmatprep.subr.bf16.mxu0 0
      %443 = vmatpush1.bf16.msra.mxu0 %v394
      %444 = vmatprep.subr.bf16.mxu0 0
      %445 = vmatpush1.bf16.msra.mxu0 %v395
      %446 = vmatprep.subr.bf16.mxu0 0
      %447 = vmatpush1.bf16.msra.mxu0 %v396
      %448 = vmatprep.subr.bf16.mxu0 0
      %449 = vmatpush1.bf16.msra.mxu0 %v397
      %450 = vmatprep.subr.bf16.mxu0 0
      %451 = vmatpush1.bf16.msra.mxu0 %v398
      %452 = vmatprep.subr.bf16.mxu0 0
      %453 = vmatpush1.bf16.msra.mxu0 %v399
      %454 = vmatprep.subr.bf16.mxu0 0
      %455 = vmatpush1.bf16.msra.mxu0 %v400
      %456 = vmatprep.subr.bf16.mxu0 0
      %457 = vmatpush1.bf16.msra.mxu0 %v401
      %458 = vmatprep.subr.bf16.mxu0 0
      %459 = vmatpush1.bf16.msra.mxu0 %v402
      %460 = vmatprep.subr.bf16.mxu0 0
      %461 = vmatpush1.bf16.msra.mxu0 %v403
      %462 = vmatprep.subr.bf16.mxu0 0
      %463 = vmatpush1.bf16.msra.mxu0 %v404
      %464 = vmatprep.mubr.bf16.mxu0 %v308
      %465 = vmatmul.mubr.bf16.gmra.mrb[0].mxu0 %v307
      %v466 = vpop.f32.mrb[0].mxu0
      %v467 = vadd.f32 %v270, %v466
      %v468 = vpop.f32.mrb[0].mxu0
      %v469 = vpop.f32.mrb[0].mxu0
      %v470 = vadd.f32 %v275, %v469
      %v471 = vpop.f32.mrb[0].mxu0
      %472 = vmatprep.mubr.bf16.mxu0 %v311
      %473 = vmatmul.mubr.bf16.gmra.mrb[0].mxu0 %v310
      %v474 = vpop.f32.mrb[0].mxu0
      %v475 = vadd.f32 %v280, %v474
      %v476 = vpop.f32.mrb[0].mxu0
      %v477 = vpop.f32.mrb[0].mxu0
      %v478 = vadd.f32 %v285, %v477
      %v479 = vpop.f32.mrb[0].mxu0
      %480 = vdwg.mxu0
      %481 = vmatprep.subr.bf16.mxu0 0
      %482 = vmatpush1.bf16.msra.mxu0 %v405
      %483 = vmatprep.subr.bf16.mxu0 0
      %484 = vmatpush1.bf16.msra.mxu0 %v406
      %485 = vmatprep.subr.bf16.mxu0 0
      %486 = vmatpush1.bf16.msra.mxu0 0
      %487 = vmatprep.subr.bf16.mxu0 0
      %488 = vmatpush1.bf16.msra.mxu0 0
      %489 = vmatprep.subr.bf16.mxu0 0
      %490 = vmatpush1.bf16.msra.mxu0 0
      %491 = vmatprep.subr.bf16.mxu0 0
      %492 = vmatpush1.bf16.msra.mxu0 0
      %493 = vmatprep.subr.bf16.mxu0 0
      %494 = vmatpush1.bf16.msra.mxu0 0
      %495 = vmatprep.subr.bf16.mxu0 0
      %496 = vmatpush1.bf16.msra.mxu0 0
      %497 = vmatprep.subr.bf16.mxu0 0
      %498 = vmatpush1.bf16.msra.mxu0 0
      %499 = vmatprep.subr.bf16.mxu0 0
      %500 = vmatpush1.bf16.msra.mxu0 0
      %501 = vmatprep.subr.bf16.mxu0 0
      %502 = vmatpush1.bf16.msra.mxu0 0
      %503 = vmatprep.subr.bf16.mxu0 0
      %504 = vmatpush1.bf16.msra.mxu0 0
      %505 = vmatprep.subr.bf16.mxu0 0
      %506 = vmatpush1.bf16.msra.mxu0 0
      %507 = vmatprep.subr.bf16.mxu0 0
      %508 = vmatpush1.bf16.msra.mxu0 0
      %509 = vmatprep.subr.bf16.mxu0 0
      %510 = vmatpush1.bf16.msra.mxu0 0
      %511 = vmatprep.subr.bf16.mxu0 0
      %512 = vmatpush1.bf16.msra.mxu0 0
      %513 = vmatprep.mubr.bf16.mxu0 0
      %514 = vmatmul.mubr.bf16.gmra.mrb[0].mxu0 %v427
      %v515 = vpop.f32.mrb[0].mxu0
      %v516 = vadd.f32 %v467, %v515
      %v517 = vpop.f32.mrb[0].mxu0
      %v518 = vpop.f32.mrb[0].mxu0
      %v519 = vadd.f32 %v470, %v518
      %v520 = vpop.f32.mrb[0].mxu0
      %521 = vmatprep.mubr.bf16.mxu0 0
      %522 = vmatmul.mubr.bf16.gmra.mrb[0].mxu0 %v430
      %v523 = vpop.f32.mrb[0].mxu0
      %v524 = vadd.f32 %v475, %v523
      %v525 = vpop.f32.mrb[0].mxu0
      %v526 = vpop.f32.mrb[0].mxu0
      %v527 = vadd.f32 %v478, %v526
      %v528 = vpop.f32.mrb[0].mxu0
      %529 = vdwg.mxu0
      %vm530 = vcmask 130048
      %v531 = vsel %vm530, %v516, 0.0
      %532 = vadd.xlane.f32.xlu0 %v531
      %v533 = vpop.xlane.xlu0 %532
      %v534 = vsel %vm530, %v519, 0.0
      %535 = vadd.xlane.f32.xlu0 %v534
      %v536 = vpop.xlane.xlu0 %535
      %v537 = vsel %vm530, %v524, 0.0
      %538 = vadd.xlane.f32.xlu0 %v537
      %v539 = vpop.xlane.xlu0 %538
      %v540 = vsel %vm530, %v527, 0.0
      %541 = vadd.xlane.f32.xlu0 %v540
      %v542 = vpop.xlane.xlu0 %541
      %v543 = vmul.f32 %v516, %v516
      %v544 = vmul.f32 %v519, %v519
      %v545 = vmul.f32 %v524, %v524
      %v546 = vmul.f32 %v527, %v527
      %v547 = vsel %vm530, %v543, 0.0
      %548 = vadd.xlane.f32.xlu0 %v547
      %v549 = vpop.xlane.xlu0 %548
      %v550 = vsel %vm530, %v544, 0.0
      %551 = vadd.xlane.f32.xlu0 %v550
      %v552 = vpop.xlane.xlu0 %551
      %v553 = vsel %vm530, %v545, 0.0
      %554 = vadd.xlane.f32.xlu0 %v553
      %v555 = vpop.xlane.xlu0 %554
      %v556 = vsel %vm530, %v546, 0.0
      %557 = vadd.xlane.f32.xlu0 %v556
      %v558 = vpop.xlane.xlu0 %557
      %v559 = vrcp.pop 16.0
      %v560 = vmul.f32 %v533, %v559
      %v561 = vmul.f32 %v536, %v559
      %v562 = vmul.f32 %v539, %v559
      %v563 = vmul.f32 %v542, %v559
      %v564 = vmul.f32 %v549, %v559
      %v565 = vmul.f32 %v552, %v559
      %v566 = vmul.f32 %v555, %v559
      %v567 = vmul.f32 %v558, %v559
      %v568 = vmul.f32 %v560, %v560
      %v569 = vmul.f32 %v561, %v561
      %v570 = vmul.f32 %v562, %v562
      %v571 = vmul.f32 %v563, %v563
      %v572 = vsub.f32 %v564, %v568
      %v573 = vsub.f32 %v565, %v569
      %v574 = vsub.f32 %v566, %v570
      %v575 = vsub.f32 %v567, %v571
      %v576 = vadd.f32 %v572, 1e-05
      %v577 = vadd.f32 %v573, 1e-05
      %v578 = vadd.f32 %v574, 1e-05
      %v579 = vadd.f32 %v575, 1e-05
      %v580 = vrsqrt.pop %v576
      %v581 = vrsqrt.pop %v577
      %v582 = vrsqrt.pop %v578
      %v583 = vrsqrt.pop %v579
      %v584 = vsub.f32 %v516, %v560
      %v585 = vsub.f32 %v519, %v561
      %v586 = vsub.f32 %v524, %v562
      %v587 = vsub.f32 %v527, %v563
      %v588 = vmul.f32 %v584, %v580
      %v589 = vmul.f32 %v585, %v581
      %v590 = vmul.f32 %v586, %v582
      %v591 = vmul.f32 %v587, %v583
      %v592 = vld [vmem:[%s212] sm:$0xff]
      %v593 = vld [vmem:[%s212 + $0x8] sm:$0xff]
      %v594 = vld [vmem:[%s212 + $0x10] sm:$0xff]
      %v595 = vld [vmem:[%s212 + $0x18] sm:$0xff]
      %v596 = vadd.f32 %v588, %v592
      %v597 = vadd.f32 %v589, %v593
      %v598 = vadd.f32 %v590, %v594
      %v599 = vadd.f32 %v591, %v595
      %600 = vst.msk [vmem:[%s217] sm:$0xff] %vm530, %v596
      %601 = vst.msk [vmem:[%s217 + $0x8] sm:$0xff] %vm530, %v597
      %602 = vst.msk [vmem:[%s217 + $0x10] sm:$0xff] %vm530, %v598
      %603 = vst.msk [vmem:[%s217 + $0x18] sm:$0xff] %vm530, %v599
      %p604 = scmp.lt.s32.totalorder %s15, 1
      %s605 = scalar_select %p604, %s15, 1
      %s606 = smul.addr %s605, 4
      %s607 = smul.addr %s606, 8
      %s608 = scalar_lea.vmem %s4, %s607
      // Predicated region
      $region37: #{resnet_generator_forward.14} parent=35 // pred_check
        %p609 = pneg %p127
      $region38: #{resnet_generator_forward.14} parent=35 // pred_check_branch
        %611 = sbr.rel (%p609) target = $region40
      $region39: #{resnet_generator_forward.14} parent=35 // pred_region
        _
      $region40: #{resnet_generator_forward.14} parent=35 // pred_fallthru
        _
    $region36: #{resnet_generator_forward.14} parent=5 // pred_fallthru
      _
    %p612 = scmp.le.s32.totalorder 2, %s10
    // Predicated region
    $region41: #{resnet_generator_forward.14} parent=5 // pred_check
      %p613 = pneg %p612
    $region42: #{resnet_generator_forward.14} parent=5 // pred_check_branch
      %615 = sbr.rel (%p613) target = $region44
    $region43: #{resnet_generator_forward.14} parent=5 // pred_region
      %s616 = ssub.s32 %s10, 2
      // Predicated region
      $region45: #{resnet_generator_forward.14} parent=43 // pred_check
        %p617 = pneg %p133
      $region46: #{resnet_generator_forward.14} parent=43 // pred_check_branch
        %619 = sbr.rel (%p617) target = $region48
      $region47: #{resnet_generator_forward.14} parent=43 // pred_region
        %p620 = scmp.lt.s32.totalorder %s16, 1
        %s621 = scalar_select %p620, %s16, 1
        %s622 = smul.addr %s621, 4
        %s623 = smul.addr %s622, 8
        %s624 = scalar_lea.vmem %s4, %s623
      $region48: #{resnet_generator_forward.14} parent=43 // pred_fallthru
        _
    $region44: #{resnet_generator_forward.14} parent=5 // pred_fallthru
      _
  $region6: #{resnet_generator_forward.14} parent=0 // loop_footer
    %s14 = sadd.s32 1, %s10
  $region7: #{resnet_generator_forward.14} parent=0 // loop_footer_branch
    %9 = sbr.rel target = $region3
  $region8: #{resnet_generator_forward.14} parent=0 // loop_exit
    _

// kernel: tile.13
$region0: #{tile.13}
  #allocation0 [shape = 's32[1]{0}', space=sflag, size = 0x4, scoped, tag = 'scoped memory for tile.13']
  %s0 = inlined_call_operand.vmem [shape: f32[16], index: 0, kind: input, shape index: {}]
  %s1 = inlined_call_operand.vmem [shape: f32[4,16], index: 1, kind: output, shape index: {}]
  // Predicated region
  $region2: #{tile.13} parent=0 // pred_check
    _
  $region3: #{tile.13} parent=0 // pred_check_branch
    %3 = sbr.rel (0) target = $region5
  $region4: #{tile.13} parent=0 // pred_region
    _
  $region5: #{tile.13} parent=0 // pred_fallthru
    _
  %v4 = vld [vmem:[%s0] ss:$0 sm:$0xff]
  %5 = vst [vmem:[%s1] sm:$0xf] %v4

// kernel: tile.1
$region0: #{tile.1}
  %s0 = inlined_call_operand.vmem [shape: f32[4,16], index: 0, kind: input, shape index: {}]
  %s1 = inlined_call_operand.vmem [shape: f32[64,1], index: 1, kind: output, shape index: {}]
  $region1: #{tile.1} parent=0
    #allocation0 [shape = 'u8[4096]{0}', space=vmem, size = 0x1000, scoped, tag = 'scoped mem for input reshape']
    %s3 = sshllo.u32 0, 4
    %v4 = vld [vmem:[%s0] sm:%s3]
    %5 = vst [vmem:[#allocation0] sm:%s3] %v4
    %v6 = vld [vmem:[#allocation0] sm:$0xf]
    %vm7 = vcmask 7168
    %8 = vst.msk [vmem:[%s1] ss:$16 sm:$0x3] %vm7, %v6
    %9 = vst.msk [vmem:[%s1] ss:$16 sm:$0xc] %vm7, %v6
    %v10 = vld [vmem:[#allocation0] sm:$0xf]
    %11 = vrot.lane.b32.xlu0 %v10, 127
    %v12 = vpop.permute.xlu0 %11
    %vm13 = vcmask 7168
    %s14 = scalar_lea.vmem %s1, 1
    %15 = vst.msk [vmem:[%s14] ss:$16 sm:$0x3] %vm13, %v12
    %s16 = scalar_lea.vmem %s1, 1
    %17 = vst.msk [vmem:[%s16] ss:$16 sm:$0xc] %vm13, %v12
    %v18 = vld [vmem:[#allocation0] sm:$0xf]
    %19 = vrot.lane.b32.xlu0 %v18, 126
    %v20 = vpop.permute.xlu0 %19
    %vm21 = vcmask 7168
    %s22 = scalar_lea.vmem %s1, 2
    %23 = vst.msk [vmem:[%s22] ss:$16 sm:$0x3] %vm21, %v20
    %s24 = scalar_lea.vmem %s1, 2
    %25 = vst.msk [vmem:[%s24] ss:$16 sm:$0xc] %vm21, %v20
    %v26 = vld [vmem:[#allocation0] sm:$0xf]
    %27 = vrot.lane.b32.xlu0 %v26, 125
    %v28 = vpop.permute.xlu0 %27
    %vm29 = vcmask 7168
    %s30 = scalar_lea.vmem %s1, 3
    %31 = vst.msk [vmem:[%s30] ss:$16 sm:$0x3] %vm29, %v28
    %s32 = scalar_lea.vmem %s1, 3
    %33 = vst.msk [vmem:[%s32] ss:$16 sm:$0xc] %vm29, %v28
    %v34 = vld [vmem:[#allocation0] sm:$0xf]
    %35 = vrot.lane.b32.xlu0 %v34, 124
    %v36 = vpop.permute.xlu0 %35
    %vm37 = vcmask 7168
    %s38 = scalar_lea.vmem %s1, 4
    %39 = vst.msk [vmem:[%s38] ss:$16 sm:$0x3] %vm37, %v36
    %s40 = scalar_lea.vmem %s1, 4
    %41 = vst.msk [vmem:[%s40] ss:$16 sm:$0xc] %vm37, %v36
    %v42 = vld [vmem:[#allocation0] sm:$0xf]
    %43 = vrot.lane.b32.xlu0 %v42, 123
    %v44 = vpop.permute.xlu0 %43
    %vm45 = vcmask 7168
    %s46 = scalar_lea.vmem %s1, 5
    %47 = vst.msk [vmem:[%s46] ss:$16 sm:$0x3] %vm45, %v44
    %s48 = scalar_lea.vmem %s1, 5
    %49 = vst.msk [vmem:[%s48] ss:$16 sm:$0xc] %vm45, %v44
    %v50 = vld [vmem:[#allocation0] sm:$0xf]
    %51 = vrot.lane.b32.xlu0 %v50, 122
    %v52 = vpop.permute.xlu0 %51
    %vm53 = vcmask 7168
    %s54 = scalar_lea.vmem %s1, 6
    %55 = vst.msk [vmem:[%s54] ss:$16 sm:$0x3] %vm53, %v52
    %s56 = scalar_lea.vmem %s1, 6
    %57 = vst.msk [vmem:[%s56] ss:$16 sm:$0xc] %vm53, %v52
    %v58 = vld [vmem:[#allocation0] sm:$0xf]
    %59 = vrot.lane.b32.xlu0 %v58, 121
    %v60 = vpop.permute.xlu0 %59
    %vm61 = vcmask 7168
    %s62 = scalar_lea.vmem %s1, 7
    %63 = vst.msk [vmem:[%s62] ss:$16 sm:$0x3] %vm61, %v60
    %s64 = scalar_lea.vmem %s1, 7
    %65 = vst.msk [vmem:[%s64] ss:$16 sm:$0xc] %vm61, %v60
    %v66 = vld [vmem:[#allocation0] sm:$0xf]
    %67 = vrot.lane.b32.xlu0 %v66, 120
    %v68 = vpop.permute.xlu0 %67
    %vm69 = vcmask 7168
    %s70 = scalar_lea.vmem %s1, 8
    %71 = vst.msk [vmem:[%s70] ss:$16 sm:$0x3] %vm69, %v68
    %s72 = scalar_lea.vmem %s1, 8
    %73 = vst.msk [vmem:[%s72] ss:$16 sm:$0xc] %vm69, %v68
    %v74 = vld [vmem:[#allocation0] sm:$0xf]
    %75 = vrot.lane.b32.xlu0 %v74, 119
    %v76 = vpop.permute.xlu0 %75
    %vm77 = vcmask 7168
    %s78 = scalar_lea.vmem %s1, 9
    %79 = vst.msk [vmem:[%s78] ss:$16 sm:$0x3] %vm77, %v76
    %s80 = scalar_lea.vmem %s1, 9
    %81 = vst.msk [vmem:[%s80] ss:$16 sm:$0xc] %vm77, %v76
    %v82 = vld [vmem:[#allocation0] sm:$0xf]
    %83 = vrot.lane.b32.xlu0 %v82, 118
    %v84 = vpop.permute.xlu0 %83
    %vm85 = vcmask 7168
    %s86 = scalar_lea.vmem %s1, 10
    %87 = vst.msk [vmem:[%s86] ss:$16 sm:$0x3] %vm85, %v84
    %s88 = scalar_lea.vmem %s1, 10
    %89 = vst.msk [vmem:[%s88] ss:$16 sm:$0xc] %vm85, %v84
    %v90 = vld [vmem:[#allocation0] sm:$0xf]
    %91 = vrot.lane.b32.xlu0 %v90, 117
    %v92 = vpop.permute.xlu0 %91
    %vm93 = vcmask 7168
    %s94 = scalar_lea.vmem %s1, 11
    %95 = vst.msk [vmem:[%s94] ss:$16 sm:$0x3] %vm93, %v92
    %s96 = scalar_lea.vmem %s1, 11
    %97 = vst.msk [vmem:[%s96] ss:$16 sm:$0xc] %vm93, %v92
    %v98 = vld [vmem:[#allocation0] sm:$0xf]
    %99 = vrot.lane.b32.xlu0 %v98, 116
    %v100 = vpop.permute.xlu0 %99
    %vm101 = vcmask 7168
    %s102 = scalar_lea.vmem %s1, 12
    %103 = vst.msk [vmem:[%s102] ss:$16 sm:$0x3] %vm101, %v100
    %s104 = scalar_lea.vmem %s1, 12
    %105 = vst.msk [vmem:[%s104] ss:$16 sm:$0xc] %vm101, %v100
    %v106 = vld [vmem:[#allocation0] sm:$0xf]
    %107 = vrot.lane.b32.xlu0 %v106, 115
    %v108 = vpop.permute.xlu0 %107
    %vm109 = vcmask 7168
    %s110 = scalar_lea.vmem %s1, 13
    %111 = vst.msk [vmem:[%s110] ss:$16 sm:$0x3] %vm109, %v108
    %s112 = scalar_lea.vmem %s1, 13
    %113 = vst.msk [vmem:[%s112] ss:$16 sm:$0xc] %vm109, %v108
    %v114 = vld [vmem:[#allocation0] sm:$0xf]
    %115 = vrot.lane.b32.xlu0 %v114, 114
    %v116 = vpop.permute.xlu0 %115
    %vm117 = vcmask 7168
    %s118 = scalar_lea.vmem %s1, 14
    %119 = vst.msk [vmem:[%s118] ss:$16 sm:$0x3] %vm117, %v116
    %s120 = scalar_lea.vmem %s1, 14
    %121 = vst.msk [vmem:[%s120] ss:$16 sm:$0xc] %vm117, %v116
    %v122 = vld [vmem:[#allocation0] sm:$0xf]
    %123 = vrot.lane.b32.xlu0 %v122, 113
    %v124 = vpop.permute.xlu0 %123
    %vm125 = vcmask 7168
    %s126 = scalar_lea.vmem %s1, 15
    %127 = vst.msk [vmem:[%s126] ss:$16 sm:$0x3] %vm125, %v124
    %s128 = scalar_lea.vmem %s1, 15
    %129 = vst.msk [vmem:[%s128] ss:$16 sm:$0xc] %vm125, %v124

// kernel: resnet_generator_forward.17
$region0: #{resnet_generator_forward.17}
  #allocation0 [shape = 'u32[]', space=smem, size = 0x4, offset = 0x4, fixed_abs, tag = 'smem constant byte address 0x4 - core index']
  #allocation1 [shape = 'u32[144,128]{1,0:T(1,128)}', space=vmem, size = 0x12000, scoped, tag = 'internal scratch']
  %s0 = inlined_call_operand.vmem [shape: bf16[64,128], index: 0, kind: input, shape index: {}]
  %s1 = inlined_call_operand.vmem [shape: f32[64,1], index: 1, kind: input, shape index: {}]
  %s2 = inlined_call_operand.vmem [shape: bf16[2,128,16], index: 2, kind: input, shape index: {}]
  %s3 = inlined_call_operand.vmem [shape: f32[2,64,16], index: 3, kind: output, shape index: {}]
  %s4 = sld [smem:[#allocation0]]
  $region45: #{resnet_generator_forward.17} parent=0
    _
  %s6 = ssub.s32 1, %s4
  %s7 = scalar_select 0, %s6, %s4
  loop: start=0, step=1, limit=4
  $region2: #{resnet_generator_forward.17} parent=0 // loop_pre_header
    _
  $region3: #{resnet_generator_forward.17} parent=0 // loop_header
    %s9 = sphi 0, %s13
    %p10 = scmp.ge.s32.totalorder %s9, 4
    %s17 = sphi 0, %s17
    %s19 = sphi 0, %s17
    %s20 = sphi 0, %s19
    %s34 = sphi 0, %s20
    %s38 = sphi 0, %s38
    %s40 = sphi 0, %s38
    %s41 = sphi 0, %s40
    %s55 = sphi 0, %s41
    %s61 = sphi 0, %s63
    %s64 = sphi 0, %s61
    %s65 = sphi 0, %s64
    %s81 = sphi 0, %s65
    %s87 = sphi 0, %s89
    %s90 = sphi 0, %s87
    %s91 = sphi 0, %s90
    %s107 = sphi 0, %s91
  $region4: #{resnet_generator_forward.17} parent=0 // loop_header_branch
    %12 = sbr.rel (%p10) target = $region8
  $region5: #{resnet_generator_forward.17} parent=0 // loop_body
    %s14 = ssub.s32 %s9, 1
    %s15 = ssub.s32 %s9, 2
    %s16 = sadd.s32 %s9, 1
    %s18 = sadd.s32 %s17, 1
    %p21 = scmp.eq.s32.totalorder %s9, 1
    %p22 = scmp.ne.s32.totalorder %s17, %s19
    %p23 = scmp.eq.s32.totalorder %s9, 0
    %p24 = por %p22, %p23
    %p25 = scmp.ne.s32.totalorder %s17, %s19
    %p26 = scmp.eq.s32.totalorder %s14, 1
    %p27 = por %p25, %p26
    %p28 = scmp.ne.s32.totalorder %s19, %s20
    %p29 = scmp.eq.s32.totalorder %s14, 0
    %p30 = por %p28, %p29
    %p31 = scmp.ne.s32.totalorder %s19, %s20
    %p32 = scmp.eq.s32.totalorder %s15, 1
    %p33 = por %p31, %p32
    %p35 = scmp.ne.s32.totalorder %s20, %s34
    %p36 = scmp.eq.s32.totalorder %s15, 0
    %p37 = por %p35, %p36
    %s39 = sadd.s32 %s38, 1
    %p42 = scmp.eq.s32.totalorder %s9, 1
    %p43 = scmp.ne.s32.totalorder %s38, %s40
    %p44 = scmp.eq.s32.totalorder %s9, 0
    %p45 = por %p43, %p44
    %p46 = scmp.ne.s32.totalorder %s38, %s40
    %p47 = scmp.eq.s32.totalorder %s14, 1
    %p48 = por %p46, %p47
    %p49 = scmp.ne.s32.totalorder %s40, %s41
    %p50 = scmp.eq.s32.totalorder %s14, 0
    %p51 = por %p49, %p50
    %p52 = scmp.ne.s32.totalorder %s40, %s41
    %p53 = scmp.eq.s32.totalorder %s15, 1
    %p54 = por %p52, %p53
    %p56 = scmp.ne.s32.totalorder %s41, %s55
    %p57 = scmp.eq.s32.totalorder %s15, 0
    %p58 = por %p56, %p57
    %s59 = ssub.s32 %s9, %s16
    %p60 = scmp.eq.s32.totalorder %s59, 0
    %s62 = sadd.s32 %s61, 1
    %s63 = scalar_select %p60, %s61, %s62
    %p66 = pneg %p60
    %p67 = scmp.eq.s32.totalorder %s9, 1
    %p68 = por %p66, %p67
    %p69 = scmp.ne.s32.totalorder %s61, %s64
    %p70 = scmp.eq.s32.totalorder %s9, 0
    %p71 = por %p69, %p70
    %p72 = scmp.ne.s32.totalorder %s61, %s64
    %p73 = scmp.eq.s32.totalorder %s14, 1
    %p74 = por %p72, %p73
    %p75 = scmp.ne.s32.totalorder %s64, %s65
    %p76 = scmp.eq.s32.totalorder %s14, 0
    %p77 = por %p75, %p76
    %p78 = scmp.ne.s32.totalorder %s64, %s65
    %p79 = scmp.eq.s32.totalorder %s15, 1
    %p80 = por %p78, %p79
    %p82 = scmp.ne.s32.totalorder %s65, %s81
    %p83 = scmp.eq.s32.totalorder %s15, 0
    %p84 = por %p82, %p83
    %s85 = ssub.s32 %s9, %s16
    %p86 = scmp.eq.s32.totalorder %s85, 0
    %s88 = sadd.s32 %s87, 1
    %s89 = scalar_select %p86, %s87, %s88
    %p92 = pneg %p86
    %p93 = scmp.eq.s32.totalorder %s9, 1
    %p94 = por %p92, %p93
    %p95 = scmp.ne.s32.totalorder %s87, %s90
    %p96 = scmp.eq.s32.totalorder %s9, 0
    %p97 = por %p95, %p96
    %p98 = scmp.ne.s32.totalorder %s87, %s90
    %p99 = scmp.eq.s32.totalorder %s14, 1
    %p100 = por %p98, %p99
    %p101 = scmp.ne.s32.totalorder %s90, %s91
    %p102 = scmp.eq.s32.totalorder %s14, 0
    %p103 = por %p101, %p102
    %p104 = scmp.ne.s32.totalorder %s90, %s91
    %p105 = scmp.eq.s32.totalorder %s15, 1
    %p106 = por %p104, %p105
    %p108 = scmp.ne.s32.totalorder %s91, %s107
    %p109 = scmp.eq.s32.totalorder %s15, 0
    %p110 = por %p108, %p109
    %p111 = scmp.le.s32.totalorder 1, %s9
    %p112 = scmp.lt.s32.totalorder %s9, 3
    %p113 = pnand %p111, %p112
    %p114 = pneg %p113
    // Predicated region
    $region9: #{resnet_generator_forward.17} parent=5 // pred_check
      _
    $region10: #{resnet_generator_forward.17} parent=5 // pred_check_branch
      %116 = sbr.rel (%p113) target = $region12
    $region11: #{resnet_generator_forward.17} parent=5 // pred_region
      %s117 = ssub.s32 %s9, 1
      // Predicated region
      $region13: #{resnet_generator_forward.17} parent=11 // pred_check
        %p118 = pneg %p30
      $region14: #{resnet_generator_forward.17} parent=11 // pred_check_branch
        %120 = sbr.rel (%p118) target = $region16
      $region15: #{resnet_generator_forward.17} parent=11 // pred_region
        _
      $region16: #{resnet_generator_forward.17} parent=11 // pred_fallthru
        _
      // Predicated region
      $region17: #{resnet_generator_forward.17} parent=11 // pred_check
        %p121 = pneg %p51
      $region18: #{resnet_generator_forward.17} parent=11 // pred_check_branch
        %123 = sbr.rel (%p121) target = $region20
      $region19: #{resnet_generator_forward.17} parent=11 // pred_region
        _
      $region20: #{resnet_generator_forward.17} parent=11 // pred_fallthru
        _
    $region12: #{resnet_generator_forward.17} parent=5 // pred_fallthru
      _
    %p124 = scmp.lt.s32.totalorder %s9, 2
    // Predicated region
    $region21: #{resnet_generator_forward.17} parent=5 // pred_check
      %p125 = pneg %p124
    $region22: #{resnet_generator_forward.17} parent=5 // pred_check_branch
      %127 = sbr.rel (%p125) target = $region24
    $region23: #{resnet_generator_forward.17} parent=5 // pred_region
      // Predicated region
      $region25: #{resnet_generator_forward.17} parent=23 // pred_check
        %p128 = pneg %p71
      $region26: #{resnet_generator_forward.17} parent=23 // pred_check_branch
        %130 = sbr.rel (%p128) target = $region28
      $region27: #{resnet_generator_forward.17} parent=23 // pred_region
        %p131 = scmp.lt.s32.totalorder %s9, 1
        %s132 = scalar_select %p131, %s9, 1
        %s133 = smul.addr %s132, 16
        %s134 = smul.addr %s133, 4
        %s135 = scalar_lea.vmem %s2, %s134
      $region28: #{resnet_generator_forward.17} parent=23 // pred_fallthru
        _
    $region24: #{resnet_generator_forward.17} parent=5 // pred_fallthru
      _
    %p136 = scmp.le.s32.totalorder 1, %s9
    %p137 = scmp.lt.s32.totalorder %s9, 3
    %p138 = pnand %p136, %p137
    %p139 = pneg %p138
    // Predicated region
    $region29: #{resnet_generator_forward.17} parent=5 // pred_check
      _
    $region30: #{resnet_generator_forward.17} parent=5 // pred_check_branch
      %141 = sbr.rel (%p138) target = $region32
    $region31: #{resnet_generator_forward.17} parent=5 // pred_region
      %s142 = ssub.s32 %s9, 1
      %p143 = pneg %p30
      %p144 = pneg %p27
      %p145 = pneg %p51
      %p146 = pneg %p48
      %p147 = scmp.lt.s32.totalorder %s14, 1
      %s148 = scalar_select %p147, %s14, 1
      %s149 = smul.addr %s148, 16
      %s150 = smul.addr %s149, 4
      %s151 = scalar_lea.vmem %s2, %s150
      %p152 = pneg %p77
      %p153 = pneg %p74
      %p154 = pneg %p103
      %p155 = pneg %p100
      %p156 = scmp.lt.s32.totalorder %s14, 1
      %s157 = scalar_select %p156, %s14, 1
      %s158 = smul.addr %s157, 8
      %s159 = smul.addr %s158, 8
      %s160 = scalar_lea.vmem %s3, %s159
      %p161 = scmp.lt.s32.totalorder %s14, 1
      %s162 = scalar_select %p161, %s14, 1
      %s163 = smul.addr %s162, 16
      %s164 = smul.addr %s163, 4
      %s165 = scalar_lea.vmem %s2, %s164
      %p166 = scmp.lt.s32.totalorder %s14, 1
      %s167 = scalar_select %p166, %s14, 1
      %s168 = smul.addr %s167, 8
      %s169 = smul.addr %s168, 8
      %s170 = scalar_lea.vmem %s3, %s169
      %v172 = vld [vmem:[%s165] sm:$0xf]
      %v173 = vld [vmem:[%s165 + $0x4] sm:$0xf]
      %v174 = vld [vmem:[%s165 + $0x8] sm:$0xf]
      %v175 = vld [vmem:[%s165 + $0xc] sm:$0xf]
      %v176 = vld [vmem:[%s165 + $0x10] sm:$0xf]
      %v177 = vld [vmem:[%s165 + $0x14] sm:$0xf]
      %v178 = vld [vmem:[%s165 + $0x18] sm:$0xf]
      %v179 = vld [vmem:[%s165 + $0x1c] sm:$0xf]
      %v180 = vld [vmem:[%s165 + $0x20] sm:$0xf]
      %v181 = vld [vmem:[%s165 + $0x24] sm:$0xf]
      %v182 = vld [vmem:[%s165 + $0x28] sm:$0xf]
      %v183 = vld [vmem:[%s165 + $0x2c] sm:$0xf]
      %v184 = vld [vmem:[%s165 + $0x30] sm:$0xf]
      %v185 = vld [vmem:[%s165 + $0x34] sm:$0xf]
      %v186 = vld [vmem:[%s165 + $0x38] sm:$0xf]
      %v187 = vld [vmem:[%s165 + $0x3c] sm:$0xf]
      %v188 = vld [vmem:[%s0] sm:$0xf]
      %v189 = vld [vmem:[%s0 + $0x4] sm:$0xf]
      %v190 = vld [vmem:[%s0 + $0x8] sm:$0xf]
      %v191 = vld [vmem:[%s0 + $0xc] sm:$0xf]
      %v192 = vld [vmem:[%s0 + $0x10] sm:$0xf]
      %v193 = vld [vmem:[%s0 + $0x14] sm:$0xf]
      %v194 = vld [vmem:[%s0 + $0x18] sm:$0xf]
      %v195 = vld [vmem:[%s0 + $0x1c] sm:$0xf]
      %v196 = vld [vmem:[%s1] sm:$0xff]
      %v197 = vld [vmem:[%s1 + $0x8] sm:$0xff]
      %v198 = vld [vmem:[%s1 + $0x10] sm:$0xff]
      %v199 = vld [vmem:[%s1 + $0x18] sm:$0xff]
      %v200 = vld [vmem:[%s1 + $0x20] sm:$0xff]
      %v201 = vld [vmem:[%s1 + $0x28] sm:$0xff]
      %v202 = vld [vmem:[%s1 + $0x30] sm:$0xff]
      %v203 = vld [vmem:[%s1 + $0x38] sm:$0xff]
      %205 = vset.pattern.permute.xlu0 0
      %206 = vperm.xlu0 %205, %v196
      %v207 = vpop.permute.xlu0 %206
      %210 = vset.pattern.permute.xlu0 0
      %211 = vperm.xlu0 %210, %v197
      %v212 = vpop.permute.xlu0 %211
      %215 = vset.pattern.permute.xlu0 0
      %216 = vperm.xlu0 %215, %v198
      %v217 = vpop.permute.xlu0 %216
      %220 = vset.pattern.permute.xlu0 0
      %221 = vperm.xlu0 %220, %v199
      %v222 = vpop.permute.xlu0 %221
      %225 = vset.pattern.permute.xlu0 0
      %226 = vperm.xlu0 %225, %v200
      %v227 = vpop.permute.xlu0 %226
      %230 = vset.pattern.permute.xlu0 0
      %231 = vperm.xlu0 %230, %v201
      %v232 = vpop.permute.xlu0 %231
      %235 = vset.pattern.permute.xlu0 0
      %236 = vperm.xlu0 %235, %v202
      %v237 = vpop.permute.xlu0 %236
      %240 = vset.pattern.permute.xlu0 0
      %241 = vperm.xlu0 %240, %v203
      %v242 = vpop.permute.xlu0 %241
      %v252 = vunpack.c.l.b16 %v188
      %v253 = vunpack.c.l.b16 %v189
      %v254 = vunpack.c.l.b16 %v190
      %v255 = vunpack.c.l.b16 %v191
      %v256 = vunpack.c.l.b16 %v192
      %v257 = vunpack.c.l.b16 %v193
      %v258 = vunpack.c.l.b16 %v194
      %v259 = vunpack.c.l.b16 %v195
      %v260 = vpack.c.b16 %v253, %v252
      %v261 = vpack.c.b16 %v255, %v254
      %v262 = vpack.c.b16 %v257, %v256
      %v263 = vpack.c.b16 %v259, %v258
      %v284 = vunpack.c.l.b16 %v172
      %v285 = vunpack.c.l.b16 %v173
      %v286 = vunpack.c.l.b16 %v174
      %v287 = vunpack.c.l.b16 %v175
      %v288 = vunpack.c.l.b16 %v176
      %v289 = vunpack.c.l.b16 %v177
      %v290 = vunpack.c.l.b16 %v178
      %v291 = vunpack.c.l.b16 %v179
      %v292 = vunpack.c.l.b16 %v180
      %v293 = vunpack.c.l.b16 %v181
      %v294 = vunpack.c.l.b16 %v182
      %v295 = vunpack.c.l.b16 %v183
      %v296 = vunpack.c.l.b16 %v184
      %v297 = vunpack.c.l.b16 %v185
      %v298 = vunpack.c.l.b16 %v186
      %v299 = vunpack.c.l.b16 %v187
      %v300 = vpack.c.b16 %v285, %v284
      %v301 = vpack.c.b16 %v287, %v286
      %v302 = vpack.c.b16 %v289, %v288
      %v303 = vpack.c.b16 %v291, %v290
      %v304 = vpack.c.b16 %v293, %v292
      %v305 = vpack.c.b16 %v295, %v294
      %v306 = vpack.c.b16 %v297, %v296
      %v307 = vpack.c.b16 %v299, %v298
      %316 = vmatprep.subr.bf16.mxu0 0
      %317 = vmatpush1.bf16.msra.mxu0 %v300
      %318 = vmatprep.subr.bf16.mxu0 0
      %319 = vmatpush1.bf16.msra.mxu0 %v301
      %320 = vmatprep.subr.bf16.mxu0 0
      %321 = vmatpush1.bf16.msra.mxu0 %v302
      %322 = vmatprep.subr.bf16.mxu0 0
      %323 = vmatpush1.bf16.msra.mxu0 %v303
      %324 = vmatprep.subr.bf16.mxu0 0
      %325 = vmatpush1.bf16.msra.mxu0 %v304
      %326 = vmatprep.subr.bf16.mxu0 0
      %327 = vmatpush1.bf16.msra.mxu0 %v305
      %328 = vmatprep.subr.bf16.mxu0 0
      %329 = vmatpush1.bf16.msra.mxu0 %v306
      %330 = vmatprep.subr.bf16.mxu0 0
      %331 = vmatpush1.bf16.msra.mxu0 %v307
      %332 = vmatprep.subr.bf16.mxu0 0
      %333 = vmatpush1.bf16.msra.mxu0 0
      %334 = vmatprep.subr.bf16.mxu0 0
      %335 = vmatpush1.bf16.msra.mxu0 0
      %336 = vmatprep.subr.bf16.mxu0 0
      %337 = vmatpush1.bf16.msra.mxu0 0
      %338 = vmatprep.subr.bf16.mxu0 0
      %339 = vmatpush1.bf16.msra.mxu0 0
      %340 = vmatprep.subr.bf16.mxu0 0
      %341 = vmatpush1.bf16.msra.mxu0 0
      %342 = vmatprep.subr.bf16.mxu0 0
      %343 = vmatpush1.bf16.msra.mxu0 0
      %344 = vmatprep.subr.bf16.mxu0 0
      %345 = vmatpush1.bf16.msra.mxu0 0
      %346 = vmatprep.subr.bf16.mxu0 0
      %347 = vmatpush1.bf16.msra.mxu0 0
      %348 = vmatprep.mubr.bf16.mxu0 0
      %349 = vmatmul.mubr.bf16.gmra.mrb[0].mxu0 %v260
      %v350 = vpop.f32.mrb[0].mxu0
      %v351 = vadd.f32 %v207, %v350
      %v352 = vpop.f32.mrb[0].mxu0
      %v353 = vpop.f32.mrb[0].mxu0
      %v354 = vadd.f32 %v212, %v353
      %v355 = vpop.f32.mrb[0].mxu0
      %356 = vmatprep.mubr.bf16.mxu0 0
      %357 = vmatmul.mubr.bf16.gmra.mrb[0].mxu0 %v261
      %v358 = vpop.f32.mrb[0].mxu0
      %v359 = vadd.f32 %v217, %v358
      %v360 = vpop.f32.mrb[0].mxu0
      %v361 = vpop.f32.mrb[0].mxu0
      %v362 = vadd.f32 %v222, %v361
      %v363 = vpop.f32.mrb[0].mxu0
      %364 = vmatprep.mubr.bf16.mxu0 0
      %365 = vmatmul.mubr.bf16.gmra.mrb[0].mxu0 %v262
      %v366 = vpop.f32.mrb[0].mxu0
      %v367 = vadd.f32 %v227, %v366
      %v368 = vpop.f32.mrb[0].mxu0
      %v369 = vpop.f32.mrb[0].mxu0
      %v370 = vadd.f32 %v232, %v369
      %v371 = vpop.f32.mrb[0].mxu0
      %372 = vmatprep.mubr.bf16.mxu0 0
      %373 = vmatmul.mubr.bf16.gmra.mrb[0].mxu0 %v263
      %v374 = vpop.f32.mrb[0].mxu0
      %v375 = vadd.f32 %v237, %v374
      %v376 = vpop.f32.mrb[0].mxu0
      %v377 = vpop.f32.mrb[0].mxu0
      %v378 = vadd.f32 %v242, %v377
      %v379 = vpop.f32.mrb[0].mxu0
      %380 = vdwg.mxu0
      %vm381 = vcmask 130048
      %v382 = vsel %vm381, %v351, 0.0
      %383 = vadd.xlane.f32.xlu0 %v382
      %v384 = vpop.xlane.xlu0 %383
      %v385 = vsel %vm381, %v354, 0.0
      %386 = vadd.xlane.f32.xlu0 %v385
      %v387 = vpop.xlane.xlu0 %386
      %v388 = vsel %vm381, %v359, 0.0
      %389 = vadd.xlane.f32.xlu0 %v388
      %v390 = vpop.xlane.xlu0 %389
      %v391 = vsel %vm381, %v362, 0.0
      %392 = vadd.xlane.f32.xlu0 %v391
      %v393 = vpop.xlane.xlu0 %392
      %v394 = vsel %vm381, %v367, 0.0
      %395 = vadd.xlane.f32.xlu0 %v394
      %v396 = vpop.xlane.xlu0 %395
      %v397 = vsel %vm381, %v370, 0.0
      %398 = vadd.xlane.f32.xlu0 %v397
      %v399 = vpop.xlane.xlu0 %398
      %v400 = vsel %vm381, %v375, 0.0
      %401 = vadd.xlane.f32.xlu0 %v400
      %v402 = vpop.xlane.xlu0 %401
      %v403 = vsel %vm381, %v378, 0.0
      %404 = vadd.xlane.f32.xlu0 %v403
      %v405 = vpop.xlane.xlu0 %404
      %v406 = vmul.f32 %v351, %v351
      %v407 = vmul.f32 %v354, %v354
      %v408 = vmul.f32 %v359, %v359
      %v409 = vmul.f32 %v362, %v362
      %v410 = vmul.f32 %v367, %v367
      %v411 = vmul.f32 %v370, %v370
      %v412 = vmul.f32 %v375, %v375
      %v413 = vmul.f32 %v378, %v378
      %v414 = vsel %vm381, %v406, 0.0
      %415 = vadd.xlane.f32.xlu0 %v414
      %v416 = vpop.xlane.xlu0 %415
      %v417 = vsel %vm381, %v407, 0.0
      %418 = vadd.xlane.f32.xlu0 %v417
      %v419 = vpop.xlane.xlu0 %418
      %v420 = vsel %vm381, %v408, 0.0
      %421 = vadd.xlane.f32.xlu0 %v420
      %v422 = vpop.xlane.xlu0 %421
      %v423 = vsel %vm381, %v409, 0.0
      %424 = vadd.xlane.f32.xlu0 %v423
      %v425 = vpop.xlane.xlu0 %424
      %v426 = vsel %vm381, %v410, 0.0
      %427 = vadd.xlane.f32.xlu0 %v426
      %v428 = vpop.xlane.xlu0 %427
      %v429 = vsel %vm381, %v411, 0.0
      %430 = vadd.xlane.f32.xlu0 %v429
      %v431 = vpop.xlane.xlu0 %430
      %v432 = vsel %vm381, %v412, 0.0
      %433 = vadd.xlane.f32.xlu0 %v432
      %v434 = vpop.xlane.xlu0 %433
      %v435 = vsel %vm381, %v413, 0.0
      %436 = vadd.xlane.f32.xlu0 %v435
      %v437 = vpop.xlane.xlu0 %436
      %v438 = vadd.f32 %v384, %v390
      %v439 = vadd.f32 %v387, %v393
      %v440 = vadd.f32 %v416, %v422
      %v441 = vadd.f32 %v419, %v425
      %v442 = vadd.f32 %v438, %v396
      %v443 = vadd.f32 %v439, %v399
      %v444 = vadd.f32 %v440, %v428
      %v445 = vadd.f32 %v441, %v431
      %v446 = vadd.f32 %v442, %v402
      %v447 = vadd.f32 %v443, %v405
      %v448 = vadd.f32 %v444, %v434
      %v449 = vadd.f32 %v445, %v437
      %v450 = vrcp.pop 64.0
      %v451 = vmul.f32 %v446, %v450
      %v452 = vmul.f32 %v447, %v450
      %v453 = vmul.f32 %v448, %v450
      %v454 = vmul.f32 %v449, %v450
      %v455 = vmul.f32 %v451, %v451
      %v456 = vmul.f32 %v452, %v452
      %v457 = vsub.f32 %v453, %v455
      %v458 = vsub.f32 %v454, %v456
      %v459 = vadd.f32 %v457, 1e-05
      %v460 = vadd.f32 %v458, 1e-05
      %v461 = vrsqrt.pop %v459
      %v462 = vrsqrt.pop %v460
      %464 = vset.pattern.permute.xlu0 0
      %465 = vperm.xlu0 %464, %v451
      %v466 = vpop.permute.xlu0 %465
      %469 = vset.pattern.permute.xlu0 0
      %470 = vperm.xlu0 %469, %v452
      %v471 = vpop.permute.xlu0 %470
      %v473 = vsub.f32 %v351, %v466
      %v474 = vsub.f32 %v354, %v471
      %v475 = vsub.f32 %v359, %v466
      %v476 = vsub.f32 %v362, %v471
      %v477 = vsub.f32 %v367, %v466
      %v478 = vsub.f32 %v370, %v471
      %v479 = vsub.f32 %v375, %v466
      %v480 = vsub.f32 %v378, %v471
      %482 = vset.pattern.permute.xlu0 0
      %483 = vperm.xlu0 %482, %v461
      %v484 = vpop.permute.xlu0 %483
      %487 = vset.pattern.permute.xlu0 0
      %488 = vperm.xlu0 %487, %v462
      %v489 = vpop.permute.xlu0 %488
      %v491 = vmul.f32 %v473, %v484
      %v492 = vmul.f32 %v474, %v489
      %v493 = vmul.f32 %v475, %v484
      %v494 = vmul.f32 %v476, %v489
      %v495 = vmul.f32 %v477, %v484
      %v496 = vmul.f32 %v478, %v489
      %v497 = vmul.f32 %v479, %v484
      %v498 = vmul.f32 %v480, %v489
      %v499 = vmax.f32 %v491, 0.0
      %v500 = vmax.f32 %v492, 0.0
      %v501 = vmax.f32 %v493, 0.0
      %v502 = vmax.f32 %v494, 0.0
      %v503 = vmax.f32 %v495, 0.0
      %v504 = vmax.f32 %v496, 0.0
      %v505 = vmax.f32 %v497, 0.0
      %v506 = vmax.f32 %v498, 0.0
      %507 = vst.msk [vmem:[%s170] sm:$0xff] %vm381, %v499
      %508 = vst.msk [vmem:[%s170 + $0x8] sm:$0xff] %vm381, %v500
      %509 = vst.msk [vmem:[%s170 + $0x10] sm:$0xff] %vm381, %v501
      %510 = vst.msk [vmem:[%s170 + $0x18] sm:$0xff] %vm381, %v502
      %511 = vst.msk [vmem:[%s170 + $0x20] sm:$0xff] %vm381, %v503
      %512 = vst.msk [vmem:[%s170 + $0x28] sm:$0xff] %vm381, %v504
      %513 = vst.msk [vmem:[%s170 + $0x30] sm:$0xff] %vm381, %v505
      %514 = vst.msk [vmem:[%s170 + $0x38] sm:$0xff] %vm381, %v506
      %p515 = scmp.lt.s32.totalorder %s14, 1
      %s516 = scalar_select %p515, %s14, 1
      %s517 = smul.addr %s516, 8
      %s518 = smul.addr %s517, 8
      %s519 = scalar_lea.vmem %s3, %s518
      // Predicated region
      $region33: #{resnet_generator_forward.17} parent=31 // pred_check
        %p520 = pneg %p100
      $region34: #{resnet_generator_forward.17} parent=31 // pred_check_branch
        %522 = sbr.rel (%p520) target = $region36
      $region35: #{resnet_generator_forward.17} parent=31 // pred_region
        _
      $region36: #{resnet_generator_forward.17} parent=31 // pred_fallthru
        _
    $region32: #{resnet_generator_forward.17} parent=5 // pred_fallthru
      _
    %p523 = scmp.le.s32.totalorder 2, %s9
    // Predicated region
    $region37: #{resnet_generator_forward.17} parent=5 // pred_check
      %p524 = pneg %p523
    $region38: #{resnet_generator_forward.17} parent=5 // pred_check_branch
      %526 = sbr.rel (%p524) target = $region40
    $region39: #{resnet_generator_forward.17} parent=5 // pred_region
      %s527 = ssub.s32 %s9, 2
      // Predicated region
      $region41: #{resnet_generator_forward.17} parent=39 // pred_check
        %p528 = pneg %p106
      $region42: #{resnet_generator_forward.17} parent=39 // pred_check_branch
        %530 = sbr.rel (%p528) target = $region44
      $region43: #{resnet_generator_forward.17} parent=39 // pred_region
        %p531 = scmp.lt.s32.totalorder %s15, 1
        %s532 = scalar_select %p531, %s15, 1
        %s533 = smul.addr %s532, 8
        %s534 = smul.addr %s533, 8
        %s535 = scalar_lea.vmem %s3, %s534
      $region44: #{resnet_generator_forward.17} parent=39 // pred_fallthru
        _
    $region40: #{resnet_generator_forward.17} parent=5 // pred_fallthru
      _
  $region6: #{resnet_generator_forward.17} parent=0 // loop_footer
    %s13 = sadd.s32 1, %s9
  $region7: #{resnet_generator_forward.17} parent=0 // loop_footer_branch
    %8 = sbr.rel target = $region3
  $region8: #{resnet_generator_forward.17} parent=0 // loop_exit
    _

// kernel: tile.18
$region0: #{tile.18}
  #allocation0 [shape = 's32[1]{0}', space=sflag, size = 0x4, scoped, tag = 'scoped memory for tile.18']
  %s0 = inlined_call_operand.vmem [shape: f32[8], index: 0, kind: input, shape index: {}]
  %s1 = inlined_call_operand.vmem [shape: f32[4,8], index: 1, kind: output, shape index: {}]
  // Predicated region
  $region2: #{tile.18} parent=0 // pred_check
    _
  $region3: #{tile.18} parent=0 // pred_check_branch
    %3 = sbr.rel (0) target = $region5
  $region4: #{tile.18} parent=0 // pred_region
    _
  $region5: #{tile.18} parent=0 // pred_fallthru
    _
  %v4 = vld [vmem:[%s0] ss:$0 sm:$0xff]
  %5 = vst [vmem:[%s1] sm:$0xf] %v4

// kernel: tile.0
$region0: #{tile.0}
  %s0 = inlined_call_operand.vmem [shape: f32[4,8], index: 0, kind: input, shape index: {}]
  %s1 = inlined_call_operand.vmem [shape: f32[32,1], index: 1, kind: output, shape index: {}]
  $region1: #{tile.0} parent=0
    #allocation0 [shape = 'u8[4096]{0}', space=vmem, size = 0x1000, scoped, tag = 'scoped mem for input reshape']
    %s3 = sshllo.u32 0, 4
    %v4 = vld [vmem:[%s0] sm:%s3]
    %5 = vst [vmem:[#allocation0] sm:%s3] %v4
    %v6 = vld [vmem:[#allocation0] sm:$0xf]
    %vm7 = vcmask 7168
    %8 = vst.msk [vmem:[%s1] ss:$8 sm:$0xf] %vm7, %v6
    %v9 = vld [vmem:[#allocation0] sm:$0xf]
    %10 = vrot.lane.b32.xlu0 %v9, 127
    %v11 = vpop.permute.xlu0 %10
    %vm12 = vcmask 7168
    %s13 = scalar_lea.vmem %s1, 1
    %14 = vst.msk [vmem:[%s13] ss:$8 sm:$0xf] %vm12, %v11
    %v15 = vld [vmem:[#allocation0] sm:$0xf]
    %16 = vrot.lane.b32.xlu0 %v15, 126
    %v17 = vpop.permute.xlu0 %16
    %vm18 = vcmask 7168
    %s19 = scalar_lea.vmem %s1, 2
    %20 = vst.msk [vmem:[%s19] ss:$8 sm:$0xf] %vm18, %v17
    %v21 = vld [vmem:[#allocation0] sm:$0xf]
    %22 = vrot.lane.b32.xlu0 %v21, 125
    %v23 = vpop.permute.xlu0 %22
    %vm24 = vcmask 7168
    %s25 = scalar_lea.vmem %s1, 3
    %26 = vst.msk [vmem:[%s25] ss:$8 sm:$0xf] %vm24, %v23
    %v27 = vld [vmem:[#allocation0] sm:$0xf]
    %28 = vrot.lane.b32.xlu0 %v27, 124
    %v29 = vpop.permute.xlu0 %28
    %vm30 = vcmask 7168
    %s31 = scalar_lea.vmem %s1, 4
    %32 = vst.msk [vmem:[%s31] ss:$8 sm:$0xf] %vm30, %v29
    %v33 = vld [vmem:[#allocation0] sm:$0xf]
    %34 = vrot.lane.b32.xlu0 %v33, 123
    %v35 = vpop.permute.xlu0 %34
    %vm36 = vcmask 7168
    %s37 = scalar_lea.vmem %s1, 5
    %38 = vst.msk [vmem:[%s37] ss:$8 sm:$0xf] %vm36, %v35
    %v39 = vld [vmem:[#allocation0] sm:$0xf]
    %40 = vrot.lane.b32.xlu0 %v39, 122
    %v41 = vpop.permute.xlu0 %40
    %vm42 = vcmask 7168
    %s43 = scalar_lea.vmem %s1, 6
    %44 = vst.msk [vmem:[%s43] ss:$8 sm:$0xf] %vm42, %v41
    %v45 = vld [vmem:[#allocation0] sm:$0xf]
    %46 = vrot.lane.b32.xlu0 %v45, 121
    %v47 = vpop.permute.xlu0 %46
    %vm48 = vcmask 7168
    %s49 = scalar_lea.vmem %s1, 7
    %50 = vst.msk [vmem:[%s49] ss:$8 sm:$0xf] %vm48, %v47

// kernel: resnet_generator_forward.18
$region0: #{resnet_generator_forward.18}
  #allocation0 [shape = 'u32[]', space=smem, size = 0x4, offset = 0x4, fixed_abs, tag = 'smem constant byte address 0x4 - core index']
  #allocation1 [shape = 'u32[144,128]{1,0:T(1,128)}', space=vmem, size = 0x12000, scoped, tag = 'internal scratch']
  %s0 = inlined_call_operand.vmem [shape: bf16[32,64], index: 0, kind: input, shape index: {}]
  %s1 = inlined_call_operand.vmem [shape: f32[32,1], index: 1, kind: input, shape index: {}]
  %s2 = inlined_call_operand.vmem [shape: bf16[2,64,64], index: 2, kind: input, shape index: {}]
  %s3 = inlined_call_operand.vmem [shape: f32[2,32,64], index: 3, kind: output, shape index: {}]
  %s4 = sld [smem:[#allocation0]]
  $region45: #{resnet_generator_forward.18} parent=0
    _
  %s6 = ssub.s32 1, %s4
  %s7 = scalar_select 0, %s6, %s4
  loop: start=0, step=1, limit=4
  $region2: #{resnet_generator_forward.18} parent=0 // loop_pre_header
    _
  $region3: #{resnet_generator_forward.18} parent=0 // loop_header
    %s9 = sphi 0, %s13
    %p10 = scmp.ge.s32.totalorder %s9, 4
    %s17 = sphi 0, %s17
    %s19 = sphi 0, %s17
    %s20 = sphi 0, %s19
    %s34 = sphi 0, %s20
    %s38 = sphi 0, %s38
    %s40 = sphi 0, %s38
    %s41 = sphi 0, %s40
    %s55 = sphi 0, %s41
    %s61 = sphi 0, %s63
    %s64 = sphi 0, %s61
    %s65 = sphi 0, %s64
    %s81 = sphi 0, %s65
    %s87 = sphi 0, %s89
    %s90 = sphi 0, %s87
    %s91 = sphi 0, %s90
    %s107 = sphi 0, %s91
  $region4: #{resnet_generator_forward.18} parent=0 // loop_header_branch
    %12 = sbr.rel (%p10) target = $region8
  $region5: #{resnet_generator_forward.18} parent=0 // loop_body
    %s14 = ssub.s32 %s9, 1
    %s15 = ssub.s32 %s9, 2
    %s16 = sadd.s32 %s9, 1
    %s18 = sadd.s32 %s17, 1
    %p21 = scmp.eq.s32.totalorder %s9, 1
    %p22 = scmp.ne.s32.totalorder %s17, %s19
    %p23 = scmp.eq.s32.totalorder %s9, 0
    %p24 = por %p22, %p23
    %p25 = scmp.ne.s32.totalorder %s17, %s19
    %p26 = scmp.eq.s32.totalorder %s14, 1
    %p27 = por %p25, %p26
    %p28 = scmp.ne.s32.totalorder %s19, %s20
    %p29 = scmp.eq.s32.totalorder %s14, 0
    %p30 = por %p28, %p29
    %p31 = scmp.ne.s32.totalorder %s19, %s20
    %p32 = scmp.eq.s32.totalorder %s15, 1
    %p33 = por %p31, %p32
    %p35 = scmp.ne.s32.totalorder %s20, %s34
    %p36 = scmp.eq.s32.totalorder %s15, 0
    %p37 = por %p35, %p36
    %s39 = sadd.s32 %s38, 1
    %p42 = scmp.eq.s32.totalorder %s9, 1
    %p43 = scmp.ne.s32.totalorder %s38, %s40
    %p44 = scmp.eq.s32.totalorder %s9, 0
    %p45 = por %p43, %p44
    %p46 = scmp.ne.s32.totalorder %s38, %s40
    %p47 = scmp.eq.s32.totalorder %s14, 1
    %p48 = por %p46, %p47
    %p49 = scmp.ne.s32.totalorder %s40, %s41
    %p50 = scmp.eq.s32.totalorder %s14, 0
    %p51 = por %p49, %p50
    %p52 = scmp.ne.s32.totalorder %s40, %s41
    %p53 = scmp.eq.s32.totalorder %s15, 1
    %p54 = por %p52, %p53
    %p56 = scmp.ne.s32.totalorder %s41, %s55
    %p57 = scmp.eq.s32.totalorder %s15, 0
    %p58 = por %p56, %p57
    %s59 = ssub.s32 %s9, %s16
    %p60 = scmp.eq.s32.totalorder %s59, 0
    %s62 = sadd.s32 %s61, 1
    %s63 = scalar_select %p60, %s61, %s62
    %p66 = pneg %p60
    %p67 = scmp.eq.s32.totalorder %s9, 1
    %p68 = por %p66, %p67
    %p69 = scmp.ne.s32.totalorder %s61, %s64
    %p70 = scmp.eq.s32.totalorder %s9, 0
    %p71 = por %p69, %p70
    %p72 = scmp.ne.s32.totalorder %s61, %s64
    %p73 = scmp.eq.s32.totalorder %s14, 1
    %p74 = por %p72, %p73
    %p75 = scmp.ne.s32.totalorder %s64, %s65
    %p76 = scmp.eq.s32.totalorder %s14, 0
    %p77 = por %p75, %p76
    %p78 = scmp.ne.s32.totalorder %s64, %s65
    %p79 = scmp.eq.s32.totalorder %s15, 1
    %p80 = por %p78, %p79
    %p82 = scmp.ne.s32.totalorder %s65, %s81
    %p83 = scmp.eq.s32.totalorder %s15, 0
    %p84 = por %p82, %p83
    %s85 = ssub.s32 %s9, %s16
    %p86 = scmp.eq.s32.totalorder %s85, 0
    %s88 = sadd.s32 %s87, 1
    %s89 = scalar_select %p86, %s87, %s88
    %p92 = pneg %p86
    %p93 = scmp.eq.s32.totalorder %s9, 1
    %p94 = por %p92, %p93
    %p95 = scmp.ne.s32.totalorder %s87, %s90
    %p96 = scmp.eq.s32.totalorder %s9, 0
    %p97 = por %p95, %p96
    %p98 = scmp.ne.s32.totalorder %s87, %s90
    %p99 = scmp.eq.s32.totalorder %s14, 1
    %p100 = por %p98, %p99
    %p101 = scmp.ne.s32.totalorder %s90, %s91
    %p102 = scmp.eq.s32.totalorder %s14, 0
    %p103 = por %p101, %p102
    %p104 = scmp.ne.s32.totalorder %s90, %s91
    %p105 = scmp.eq.s32.totalorder %s15, 1
    %p106 = por %p104, %p105
    %p108 = scmp.ne.s32.totalorder %s91, %s107
    %p109 = scmp.eq.s32.totalorder %s15, 0
    %p110 = por %p108, %p109
    %p111 = scmp.le.s32.totalorder 1, %s9
    %p112 = scmp.lt.s32.totalorder %s9, 3
    %p113 = pnand %p111, %p112
    %p114 = pneg %p113
    // Predicated region
    $region9: #{resnet_generator_forward.18} parent=5 // pred_check
      _
    $region10: #{resnet_generator_forward.18} parent=5 // pred_check_branch
      %116 = sbr.rel (%p113) target = $region12
    $region11: #{resnet_generator_forward.18} parent=5 // pred_region
      %s117 = ssub.s32 %s9, 1
      // Predicated region
      $region13: #{resnet_generator_forward.18} parent=11 // pred_check
        %p118 = pneg %p30
      $region14: #{resnet_generator_forward.18} parent=11 // pred_check_branch
        %120 = sbr.rel (%p118) target = $region16
      $region15: #{resnet_generator_forward.18} parent=11 // pred_region
        _
      $region16: #{resnet_generator_forward.18} parent=11 // pred_fallthru
        _
      // Predicated region
      $region17: #{resnet_generator_forward.18} parent=11 // pred_check
        %p121 = pneg %p51
      $region18: #{resnet_generator_forward.18} parent=11 // pred_check_branch
        %123 = sbr.rel (%p121) target = $region20
      $region19: #{resnet_generator_forward.18} parent=11 // pred_region
        _
      $region20: #{resnet_generator_forward.18} parent=11 // pred_fallthru
        _
    $region12: #{resnet_generator_forward.18} parent=5 // pred_fallthru
      _
    %p124 = scmp.lt.s32.totalorder %s9, 2
    // Predicated region
    $region21: #{resnet_generator_forward.18} parent=5 // pred_check
      %p125 = pneg %p124
    $region22: #{resnet_generator_forward.18} parent=5 // pred_check_branch
      %127 = sbr.rel (%p125) target = $region24
    $region23: #{resnet_generator_forward.18} parent=5 // pred_region
      // Predicated region
      $region25: #{resnet_generator_forward.18} parent=23 // pred_check
        %p128 = pneg %p71
      $region26: #{resnet_generator_forward.18} parent=23 // pred_check_branch
        %130 = sbr.rel (%p128) target = $region28
      $region27: #{resnet_generator_forward.18} parent=23 // pred_region
        %p131 = scmp.lt.s32.totalorder %s9, 1
        %s132 = scalar_select %p131, %s9, 1
        %s133 = smul.addr %s132, 8
        %s134 = smul.addr %s133, 4
        %s135 = scalar_lea.vmem %s2, %s134
      $region28: #{resnet_generator_forward.18} parent=23 // pred_fallthru
        _
    $region24: #{resnet_generator_forward.18} parent=5 // pred_fallthru
      _
    %p136 = scmp.le.s32.totalorder 1, %s9
    %p137 = scmp.lt.s32.totalorder %s9, 3
    %p138 = pnand %p136, %p137
    %p139 = pneg %p138
    // Predicated region
    $region29: #{resnet_generator_forward.18} parent=5 // pred_check
      _
    $region30: #{resnet_generator_forward.18} parent=5 // pred_check_branch
      %141 = sbr.rel (%p138) target = $region32
    $region31: #{resnet_generator_forward.18} parent=5 // pred_region
      %s142 = ssub.s32 %s9, 1
      %p143 = pneg %p30
      %p144 = pneg %p27
      %p145 = pneg %p51
      %p146 = pneg %p48
      %p147 = scmp.lt.s32.totalorder %s14, 1
      %s148 = scalar_select %p147, %s14, 1
      %s149 = smul.addr %s148, 8
      %s150 = smul.addr %s149, 4
      %s151 = scalar_lea.vmem %s2, %s150
      %p152 = pneg %p77
      %p153 = pneg %p74
      %p154 = pneg %p103
      %p155 = pneg %p100
      %p156 = scmp.lt.s32.totalorder %s14, 1
      %s157 = scalar_select %p156, %s14, 1
      %s158 = smul.addr %s157, 4
      %s159 = smul.addr %s158, 8
      %s160 = scalar_lea.vmem %s3, %s159
      %p161 = scmp.lt.s32.totalorder %s14, 1
      %s162 = scalar_select %p161, %s14, 1
      %s163 = smul.addr %s162, 8
      %s164 = smul.addr %s163, 4
      %s165 = scalar_lea.vmem %s2, %s164
      %p166 = scmp.lt.s32.totalorder %s14, 1
      %s167 = scalar_select %p166, %s14, 1
      %s168 = smul.addr %s167, 4
      %s169 = smul.addr %s168, 8
      %s170 = scalar_lea.vmem %s3, %s169
      %v172 = vld [vmem:[%s165] sm:$0xf]
      %v173 = vld [vmem:[%s165 + $0x4] sm:$0xf]
      %v174 = vld [vmem:[%s165 + $0x8] sm:$0xf]
      %v175 = vld [vmem:[%s165 + $0xc] sm:$0xf]
      %v176 = vld [vmem:[%s165 + $0x10] sm:$0xf]
      %v177 = vld [vmem:[%s165 + $0x14] sm:$0xf]
      %v178 = vld [vmem:[%s165 + $0x18] sm:$0xf]
      %v179 = vld [vmem:[%s165 + $0x1c] sm:$0xf]
      %v180 = vld [vmem:[%s0] sm:$0xf]
      %v181 = vld [vmem:[%s0 + $0x4] sm:$0xf]
      %v182 = vld [vmem:[%s0 + $0x8] sm:$0xf]
      %v183 = vld [vmem:[%s0 + $0xc] sm:$0xf]
      %v184 = vld [vmem:[%s1] sm:$0xff]
      %v185 = vld [vmem:[%s1 + $0x8] sm:$0xff]
      %v186 = vld [vmem:[%s1 + $0x10] sm:$0xff]
      %v187 = vld [vmem:[%s1 + $0x18] sm:$0xff]
      %189 = vset.pattern.permute.xlu0 0
      %190 = vperm.xlu0 %189, %v184
      %v191 = vpop.permute.xlu0 %190
      %194 = vset.pattern.permute.xlu0 0
      %195 = vperm.xlu0 %194, %v185
      %v196 = vpop.permute.xlu0 %195
      %199 = vset.pattern.permute.xlu0 0
      %200 = vperm.xlu0 %199, %v186
      %v201 = vpop.permute.xlu0 %200
      %204 = vset.pattern.permute.xlu0 0
      %205 = vperm.xlu0 %204, %v187
      %v206 = vpop.permute.xlu0 %205
      %v212 = vunpack.c.l.b16 %v180
      %v213 = vunpack.c.l.b16 %v181
      %v214 = vunpack.c.l.b16 %v182
      %v215 = vunpack.c.l.b16 %v183
      %v216 = vpack.c.b16 %v213, %v212
      %v217 = vpack.c.b16 %v215, %v214
      %v226 = vunpack.c.l.b16 %v172
      %v227 = vunpack.c.l.b16 %v173
      %v228 = vunpack.c.l.b16 %v174
      %v229 = vunpack.c.l.b16 %v175
      %v230 = vunpack.c.l.b16 %v176
      %v231 = vunpack.c.l.b16 %v177
      %v232 = vunpack.c.l.b16 %v178
      %v233 = vunpack.c.l.b16 %v179
      %v234 = vpack.c.b16 %v227, %v226
      %v235 = vpack.c.b16 %v229, %v228
      %v236 = vpack.c.b16 %v231, %v230
      %v237 = vpack.c.b16 %v233, %v232
      %vm242 = vcmask 523264
      %v244 = vsel %vm242, %v216, 0
      %v247 = vsel %vm242, %v217, 0
      %249 = vmatprep.subr.bf16.mxu0 0
      %250 = vmatpush1.bf16.msra.mxu0 %v234
      %251 = vmatprep.subr.bf16.mxu0 0
      %252 = vmatpush1.bf16.msra.mxu0 %v235
      %253 = vmatprep.subr.bf16.mxu0 0
      %254 = vmatpush1.bf16.msra.mxu0 %v236
      %255 = vmatprep.subr.bf16.mxu0 0
      %256 = vmatpush1.bf16.msra.mxu0 %v237
      %257 = vmatprep.subr.bf16.mxu0 0
      %258 = vmatpush1.bf16.msra.mxu0 0
      %259 = vmatprep.subr.bf16.mxu0 0
      %260 = vmatpush1.bf16.msra.mxu0 0
      %261 = vmatprep.subr.bf16.mxu0 0
      %262 = vmatpush1.bf16.msra.mxu0 0
      %263 = vmatprep.subr.bf16.mxu0 0
      %264 = vmatpush1.bf16.msra.mxu0 0
      %265 = vmatprep.subr.bf16.mxu0 0
      %266 = vmatpush1.bf16.msra.mxu0 0
      %267 = vmatprep.subr.bf16.mxu0 0
      %268 = vmatpush1.bf16.msra.mxu0 0
      %269 = vmatprep.subr.bf16.mxu0 0
      %270 = vmatpush1.bf16.msra.mxu0 0
      %271 = vmatprep.subr.bf16.mxu0 0
      %272 = vmatpush1.bf16.msra.mxu0 0
      %273 = vmatprep.subr.bf16.mxu0 0
      %274 = vmatpush1.bf16.msra.mxu0 0
      %275 = vmatprep.subr.bf16.mxu0 0
      %276 = vmatpush1.bf16.msra.mxu0 0
      %277 = vmatprep.subr.bf16.mxu0 0
      %278 = vmatpush1.bf16.msra.mxu0 0
      %279 = vmatprep.subr.bf16.mxu0 0
      %280 = vmatpush1.bf16.msra.mxu0 0
      %281 = vmatprep.mubr.bf16.mxu0 0
      %282 = vmatmul.mubr.bf16.gmra.mrb[0].mxu0 %v244
      %v283 = vpop.f32.mrb[0].mxu0
      %v284 = vadd.f32 %v191, %v283
      %v285 = vpop.f32.mrb[0].mxu0
      %v286 = vpop.f32.mrb[0].mxu0
      %v287 = vadd.f32 %v196, %v286
      %v288 = vpop.f32.mrb[0].mxu0
      %289 = vmatprep.mubr.bf16.mxu0 0
      %290 = vmatmul.mubr.bf16.gmra.mrb[0].mxu0 %v247
      %v291 = vpop.f32.mrb[0].mxu0
      %v292 = vadd.f32 %v201, %v291
      %v293 = vpop.f32.mrb[0].mxu0
      %v294 = vpop.f32.mrb[0].mxu0
      %v295 = vadd.f32 %v206, %v294
      %v296 = vpop.f32.mrb[0].mxu0
      %297 = vdwg.mxu0
      %v298 = vsel %vm242, %v284, 0.0
      %299 = vadd.xlane.f32.xlu0 %v298
      %v300 = vpop.xlane.xlu0 %299
      %v301 = vsel %vm242, %v287, 0.0
      %302 = vadd.xlane.f32.xlu0 %v301
      %v303 = vpop.xlane.xlu0 %302
      %v304 = vsel %vm242, %v292, 0.0
      %305 = vadd.xlane.f32.xlu0 %v304
      %v306 = vpop.xlane.xlu0 %305
      %v307 = vsel %vm242, %v295, 0.0
      %308 = vadd.xlane.f32.xlu0 %v307
      %v309 = vpop.xlane.xlu0 %308
      %v310 = vmul.f32 %v284, %v284
      %v311 = vmul.f32 %v287, %v287
      %v312 = vmul.f32 %v292, %v292
      %v313 = vmul.f32 %v295, %v295
      %v314 = vsel %vm242, %v310, 0.0
      %315 = vadd.xlane.f32.xlu0 %v314
      %v316 = vpop.xlane.xlu0 %315
      %v317 = vsel %vm242, %v311, 0.0
      %318 = vadd.xlane.f32.xlu0 %v317
      %v319 = vpop.xlane.xlu0 %318
      %v320 = vsel %vm242, %v312, 0.0
      %321 = vadd.xlane.f32.xlu0 %v320
      %v322 = vpop.xlane.xlu0 %321
      %v323 = vsel %vm242, %v313, 0.0
      %324 = vadd.xlane.f32.xlu0 %v323
      %v325 = vpop.xlane.xlu0 %324
      %v326 = vadd.f32 %v300, %v303
      %v327 = vadd.f32 %v316, %v319
      %v328 = vadd.f32 %v326, %v306
      %v329 = vadd.f32 %v327, %v322
      %v330 = vadd.f32 %v328, %v309
      %v331 = vadd.f32 %v329, %v325
      %v332 = vrcp.pop 256.0
      %v333 = vmul.f32 %v330, %v332
      %v334 = vmul.f32 %v331, %v332
      %v335 = vmul.f32 %v333, %v333
      %v336 = vsub.f32 %v334, %v335
      %v337 = vadd.f32 %v336, 1e-05
      %v338 = vrsqrt.pop %v337
      %340 = vset.pattern.permute.xlu0 0
      %341 = vperm.xlu0 %340, %v333
      %v342 = vpop.permute.xlu0 %341
      %v344 = vsub.f32 %v284, %v342
      %v345 = vsub.f32 %v287, %v342
      %v346 = vsub.f32 %v292, %v342
      %v347 = vsub.f32 %v295, %v342
      %349 = vset.pattern.permute.xlu0 0
      %350 = vperm.xlu0 %349, %v338
      %v351 = vpop.permute.xlu0 %350
      %v353 = vmul.f32 %v344, %v351
      %v354 = vmul.f32 %v345, %v351
      %v355 = vmul.f32 %v346, %v351
      %v356 = vmul.f32 %v347, %v351
      %v357 = vmax.f32 %v353, 0.0
      %v358 = vmax.f32 %v354, 0.0
      %v359 = vmax.f32 %v355, 0.0
      %v360 = vmax.f32 %v356, 0.0
      %361 = vst.msk [vmem:[%s170] sm:$0xff] %vm242, %v357
      %362 = vst.msk [vmem:[%s170 + $0x8] sm:$0xff] %vm242, %v358
      %363 = vst.msk [vmem:[%s170 + $0x10] sm:$0xff] %vm242, %v359
      %364 = vst.msk [vmem:[%s170 + $0x18] sm:$0xff] %vm242, %v360
      %p365 = scmp.lt.s32.totalorder %s14, 1
      %s366 = scalar_select %p365, %s14, 1
      %s367 = smul.addr %s366, 4
      %s368 = smul.addr %s367, 8
      %s369 = scalar_lea.vmem %s3, %s368
      // Predicated region
      $region33: #{resnet_generator_forward.18} parent=31 // pred_check
        %p370 = pneg %p100
      $region34: #{resnet_generator_forward.18} parent=31 // pred_check_branch
        %372 = sbr.rel (%p370) target = $region36
      $region35: #{resnet_generator_forward.18} parent=31 // pred_region
        _
      $region36: #{resnet_generator_forward.18} parent=31 // pred_fallthru
        _
    $region32: #{resnet_generator_forward.18} parent=5 // pred_fallthru
      _
    %p373 = scmp.le.s32.totalorder 2, %s9
    // Predicated region
    $region37: #{resnet_generator_forward.18} parent=5 // pred_check
      %p374 = pneg %p373
    $region38: #{resnet_generator_forward.18} parent=5 // pred_check_branch
      %376 = sbr.rel (%p374) target = $region40
    $region39: #{resnet_generator_forward.18} parent=5 // pred_region
      %s377 = ssub.s32 %s9, 2
      // Predicated region
      $region41: #{resnet_generator_forward.18} parent=39 // pred_check
        %p378 = pneg %p106
      $region42: #{resnet_generator_forward.18} parent=39 // pred_check_branch
        %380 = sbr.rel (%p378) target = $region44
      $region43: #{resnet_generator_forward.18} parent=39 // pred_region
        %p381 = scmp.lt.s32.totalorder %s15, 1
        %s382 = scalar_select %p381, %s15, 1
        %s383 = smul.addr %s382, 4
        %s384 = smul.addr %s383, 8
        %s385 = scalar_lea.vmem %s3, %s384
      $region44: #{resnet_generator_forward.18} parent=39 // pred_fallthru
        _
    $region40: #{resnet_generator_forward.18} parent=5 // pred_fallthru
      _
  $region6: #{resnet_generator_forward.18} parent=0 // loop_footer
    %s13 = sadd.s32 1, %s9
  $region7: #{resnet_generator_forward.18} parent=0 // loop_footer_branch
    %8 = sbr.rel target = $region3
  $region8: #{resnet_generator_forward.18} parent=0 // loop_exit
    _

// kernel: resnet_generator_forward.19
$region0: #{resnet_generator_forward.19}
  #allocation0 [shape = 'u32[]', space=smem, size = 0x4, offset = 0x4, fixed_abs, tag = 'smem constant byte address 0x4 - core index']
  #allocation1 [shape = 'u32[144,128]{1,0:T(1,128)}', space=vmem, size = 0x12000, scoped, tag = 'internal scratch']
  #allocation2 [shape = 'f32[1,1]{1,0:T(1,128)S(1)}', space=vmem, size = 0x200, scoped, tag = 'scoped memory for resnet_generator_forward.19']
  %s0 = inlined_call_operand.vmem [shape: bf16[1,392], index: 0, kind: input, shape index: {}]
  %s1 = inlined_call_operand.<no memory space> [shape: f32[1,1], index: 1, kind: input, shape index: {}]
  %s2 = inlined_call_operand.vmem [shape: bf16[2,392,256], index: 2, kind: input, shape index: {}]
  %s3 = inlined_call_operand.vmem [shape: f32[2,1,256], index: 3, kind: output, shape index: {}]
  %s4 = sld [smem:[#allocation0]]
  $region45: #{resnet_generator_forward.19} parent=0
    _
  %s6 = ssub.s32 1, %s4
  %s7 = scalar_select 0, %s6, %s4
  %v8 = vstv %s1
  %9 = vst [vmem:[#allocation2] sm:$0x1] %v8
  loop: start=0, step=1, limit=4
  $region2: #{resnet_generator_forward.19} parent=0 // loop_pre_header
    _
  $region3: #{resnet_generator_forward.19} parent=0 // loop_header
    %s11 = sphi 0, %s15
    %p12 = scmp.ge.s32.totalorder %s11, 4
    %s19 = sphi 0, %s19
    %s21 = sphi 0, %s19
    %s22 = sphi 0, %s21
    %s36 = sphi 0, %s22
    %s40 = sphi 0, %s40
    %s42 = sphi 0, %s40
    %s43 = sphi 0, %s42
    %s57 = sphi 0, %s43
    %s63 = sphi 0, %s65
    %s66 = sphi 0, %s63
    %s67 = sphi 0, %s66
    %s83 = sphi 0, %s67
    %s89 = sphi 0, %s91
    %s92 = sphi 0, %s89
    %s93 = sphi 0, %s92
    %s109 = sphi 0, %s93
  $region4: #{resnet_generator_forward.19} parent=0 // loop_header_branch
    %14 = sbr.rel (%p12) target = $region8
  $region5: #{resnet_generator_forward.19} parent=0 // loop_body
    %s16 = ssub.s32 %s11, 1
    %s17 = ssub.s32 %s11, 2
    %s18 = sadd.s32 %s11, 1
    %s20 = sadd.s32 %s19, 1
    %p23 = scmp.eq.s32.totalorder %s11, 1
    %p24 = scmp.ne.s32.totalorder %s19, %s21
    %p25 = scmp.eq.s32.totalorder %s11, 0
    %p26 = por %p24, %p25
    %p27 = scmp.ne.s32.totalorder %s19, %s21
    %p28 = scmp.eq.s32.totalorder %s16, 1
    %p29 = por %p27, %p28
    %p30 = scmp.ne.s32.totalorder %s21, %s22
    %p31 = scmp.eq.s32.totalorder %s16, 0
    %p32 = por %p30, %p31
    %p33 = scmp.ne.s32.totalorder %s21, %s22
    %p34 = scmp.eq.s32.totalorder %s17, 1
    %p35 = por %p33, %p34
    %p37 = scmp.ne.s32.totalorder %s22, %s36
    %p38 = scmp.eq.s32.totalorder %s17, 0
    %p39 = por %p37, %p38
    %s41 = sadd.s32 %s40, 1
    %p44 = scmp.eq.s32.totalorder %s11, 1
    %p45 = scmp.ne.s32.totalorder %s40, %s42
    %p46 = scmp.eq.s32.totalorder %s11, 0
    %p47 = por %p45, %p46
    %p48 = scmp.ne.s32.totalorder %s40, %s42
    %p49 = scmp.eq.s32.totalorder %s16, 1
    %p50 = por %p48, %p49
    %p51 = scmp.ne.s32.totalorder %s42, %s43
    %p52 = scmp.eq.s32.totalorder %s16, 0
    %p53 = por %p51, %p52
    %p54 = scmp.ne.s32.totalorder %s42, %s43
    %p55 = scmp.eq.s32.totalorder %s17, 1
    %p56 = por %p54, %p55
    %p58 = scmp.ne.s32.totalorder %s43, %s57
    %p59 = scmp.eq.s32.totalorder %s17, 0
    %p60 = por %p58, %p59
    %s61 = ssub.s32 %s11, %s18
    %p62 = scmp.eq.s32.totalorder %s61, 0
    %s64 = sadd.s32 %s63, 1
    %s65 = scalar_select %p62, %s63, %s64
    %p68 = pneg %p62
    %p69 = scmp.eq.s32.totalorder %s11, 1
    %p70 = por %p68, %p69
    %p71 = scmp.ne.s32.totalorder %s63, %s66
    %p72 = scmp.eq.s32.totalorder %s11, 0
    %p73 = por %p71, %p72
    %p74 = scmp.ne.s32.totalorder %s63, %s66
    %p75 = scmp.eq.s32.totalorder %s16, 1
    %p76 = por %p74, %p75
    %p77 = scmp.ne.s32.totalorder %s66, %s67
    %p78 = scmp.eq.s32.totalorder %s16, 0
    %p79 = por %p77, %p78
    %p80 = scmp.ne.s32.totalorder %s66, %s67
    %p81 = scmp.eq.s32.totalorder %s17, 1
    %p82 = por %p80, %p81
    %p84 = scmp.ne.s32.totalorder %s67, %s83
    %p85 = scmp.eq.s32.totalorder %s17, 0
    %p86 = por %p84, %p85
    %s87 = ssub.s32 %s11, %s18
    %p88 = scmp.eq.s32.totalorder %s87, 0
    %s90 = sadd.s32 %s89, 1
    %s91 = scalar_select %p88, %s89, %s90
    %p94 = pneg %p88
    %p95 = scmp.eq.s32.totalorder %s11, 1
    %p96 = por %p94, %p95
    %p97 = scmp.ne.s32.totalorder %s89, %s92
    %p98 = scmp.eq.s32.totalorder %s11, 0
    %p99 = por %p97, %p98
    %p100 = scmp.ne.s32.totalorder %s89, %s92
    %p101 = scmp.eq.s32.totalorder %s16, 1
    %p102 = por %p100, %p101
    %p103 = scmp.ne.s32.totalorder %s92, %s93
    %p104 = scmp.eq.s32.totalorder %s16, 0
    %p105 = por %p103, %p104
    %p106 = scmp.ne.s32.totalorder %s92, %s93
    %p107 = scmp.eq.s32.totalorder %s17, 1
    %p108 = por %p106, %p107
    %p110 = scmp.ne.s32.totalorder %s93, %s109
    %p111 = scmp.eq.s32.totalorder %s17, 0
    %p112 = por %p110, %p111
    %p113 = scmp.le.s32.totalorder 1, %s11
    %p114 = scmp.lt.s32.totalorder %s11, 3
    %p115 = pnand %p113, %p114
    %p116 = pneg %p115
    // Predicated region
    $region9: #{resnet_generator_forward.19} parent=5 // pred_check
      _
    $region10: #{resnet_generator_forward.19} parent=5 // pred_check_branch
      %118 = sbr.rel (%p115) target = $region12
    $region11: #{resnet_generator_forward.19} parent=5 // pred_region
      %s119 = ssub.s32 %s11, 1
      // Predicated region
      $region13: #{resnet_generator_forward.19} parent=11 // pred_check
        %p120 = pneg %p32
      $region14: #{resnet_generator_forward.19} parent=11 // pred_check_branch
        %122 = sbr.rel (%p120) target = $region16
      $region15: #{resnet_generator_forward.19} parent=11 // pred_region
        _
      $region16: #{resnet_generator_forward.19} parent=11 // pred_fallthru
        _
      // Predicated region
      $region17: #{resnet_generator_forward.19} parent=11 // pred_check
        %p123 = pneg %p53
      $region18: #{resnet_generator_forward.19} parent=11 // pred_check_branch
        %125 = sbr.rel (%p123) target = $region20
      $region19: #{resnet_generator_forward.19} parent=11 // pred_region
        _
      $region20: #{resnet_generator_forward.19} parent=11 // pred_fallthru
        _
    $region12: #{resnet_generator_forward.19} parent=5 // pred_fallthru
      _
    %p126 = scmp.lt.s32.totalorder %s11, 2
    // Predicated region
    $region21: #{resnet_generator_forward.19} parent=5 // pred_check
      %p127 = pneg %p126
    $region22: #{resnet_generator_forward.19} parent=5 // pred_check_branch
      %129 = sbr.rel (%p127) target = $region24
    $region23: #{resnet_generator_forward.19} parent=5 // pred_region
      // Predicated region
      $region25: #{resnet_generator_forward.19} parent=23 // pred_check
        %p130 = pneg %p73
      $region26: #{resnet_generator_forward.19} parent=23 // pred_check_branch
        %132 = sbr.rel (%p130) target = $region28
      $region27: #{resnet_generator_forward.19} parent=23 // pred_region
        %p133 = scmp.lt.s32.totalorder %s11, 1
        %s134 = scalar_select %p133, %s11, 1
        %s135 = smul.addr %s134, 98
        %s136 = smul.addr %s135, 4
        %s137 = scalar_lea.vmem %s2, %s136
      $region28: #{resnet_generator_forward.19} parent=23 // pred_fallthru
        _
    $region24: #{resnet_generator_forward.19} parent=5 // pred_fallthru
      _
    %p138 = scmp.le.s32.totalorder 1, %s11
    %p139 = scmp.lt.s32.totalorder %s11, 3
    %p140 = pnand %p138, %p139
    %p141 = pneg %p140
    // Predicated region
    $region29: #{resnet_generator_forward.19} parent=5 // pred_check
      _
    $region30: #{resnet_generator_forward.19} parent=5 // pred_check_branch
      %143 = sbr.rel (%p140) target = $region32
    $region31: #{resnet_generator_forward.19} parent=5 // pred_region
      %s144 = ssub.s32 %s11, 1
      %p145 = pneg %p32
      %p146 = pneg %p29
      %p147 = pneg %p53
      %p148 = pneg %p50
      %p149 = scmp.lt.s32.totalorder %s16, 1
      %s150 = scalar_select %p149, %s16, 1
      %s151 = smul.addr %s150, 98
      %s152 = smul.addr %s151, 4
      %s153 = scalar_lea.vmem %s2, %s152
      %p154 = pneg %p79
      %p155 = pneg %p76
      %p156 = pneg %p105
      %p157 = pneg %p102
      %p158 = scmp.lt.s32.totalorder %s16, 1
      %s159 = scalar_select %p158, %s16, 1
      %s160 = smul.addr %s159, 2
      %s161 = scalar_lea.vmem %s3, %s160
      %p162 = scmp.lt.s32.totalorder %s16, 1
      %s163 = scalar_select %p162, %s16, 1
      %s164 = smul.addr %s163, 98
      %s165 = smul.addr %s164, 4
      %s166 = scalar_lea.vmem %s2, %s165
      %p167 = scmp.lt.s32.totalorder %s16, 1
      %s168 = scalar_select %p167, %s16, 1
      %s169 = smul.addr %s168, 2
      %s170 = scalar_lea.vmem %s3, %s169
      %v172 = vld [vmem:[%s166] sm:$0xff]
      %v173 = vld [vmem:[%s166 + $0x8] sm:$0xff]
      %v174 = vld [vmem:[%s166 + $0x10] sm:$0xff]
      %v175 = vld [vmem:[%s166 + $0x18] sm:$0xff]
      %v176 = vld [vmem:[%s166 + $0x20] sm:$0xff]
      %v177 = vld [vmem:[%s166 + $0x28] sm:$0xff]
      %v178 = vld [vmem:[%s166 + $0x30] sm:$0xff]
      %v179 = vld [vmem:[%s166 + $0x38] sm:$0xff]
      %v180 = vld [vmem:[%s166 + $0x40] sm:$0xff]
      %v181 = vld [vmem:[%s166 + $0x48] sm:$0xff]
      %v182 = vld [vmem:[%s166 + $0x50] sm:$0xff]
      %v183 = vld [vmem:[%s166 + $0x58] sm:$0xff]
      %v184 = vld [vmem:[%s166 + $0x60] sm:$0xff]
      %v185 = vld [vmem:[%s166 + $0x68] sm:$0xff]
      %v186 = vld [vmem:[%s166 + $0x70] sm:$0xff]
      %v187 = vld [vmem:[%s166 + $0x78] sm:$0xff]
      %v188 = vld [vmem:[%s166 + $0x80] sm:$0xff]
      %v189 = vld [vmem:[%s166 + $0x88] sm:$0xff]
      %v190 = vld [vmem:[%s166 + $0x90] sm:$0xff]
      %v191 = vld [vmem:[%s166 + $0x98] sm:$0xff]
      %v192 = vld [vmem:[%s166 + $0xa0] sm:$0xff]
      %v193 = vld [vmem:[%s166 + $0xa8] sm:$0xff]
      %v194 = vld [vmem:[%s166 + $0xb0] sm:$0xff]
      %v195 = vld [vmem:[%s166 + $0xb8] sm:$0xff]
      %v196 = vld [vmem:[%s166 + $0xc0] sm:$0xff]
      %v197 = vld [vmem:[%s166 + $0xc8] sm:$0xff]
      %v198 = vld [vmem:[%s166 + $0xd0] sm:$0xff]
      %v199 = vld [vmem:[%s166 + $0xd8] sm:$0xff]
      %v200 = vld [vmem:[%s166 + $0xe0] sm:$0xff]
      %v201 = vld [vmem:[%s166 + $0xe8] sm:$0xff]
      %v202 = vld [vmem:[%s166 + $0xf0] sm:$0xff]
      %v203 = vld [vmem:[%s166 + $0xf8] sm:$0xff]
      %v204 = vld [vmem:[%s166 + $0x100] sm:$0xff]
      %v205 = vld [vmem:[%s166 + $0x108] sm:$0xff]
      %v206 = vld [vmem:[%s166 + $0x110] sm:$0xff]
      %v207 = vld [vmem:[%s166 + $0x118] sm:$0xff]
      %v208 = vld [vmem:[%s166 + $0x120] sm:$0xff]
      %v209 = vld [vmem:[%s166 + $0x128] sm:$0xff]
      %v210 = vld [vmem:[%s166 + $0x130] sm:$0xff]
      %v211 = vld [vmem:[%s166 + $0x138] sm:$0xff]
      %v212 = vld [vmem:[%s166 + $0x140] sm:$0xff]
      %v213 = vld [vmem:[%s166 + $0x148] sm:$0xff]
      %v214 = vld [vmem:[%s166 + $0x150] sm:$0xff]
      %v215 = vld [vmem:[%s166 + $0x158] sm:$0xff]
      %v216 = vld [vmem:[%s166 + $0x160] sm:$0xff]
      %v217 = vld [vmem:[%s166 + $0x168] sm:$0xff]
      %v218 = vld [vmem:[%s166 + $0x170] sm:$0xff]
      %v219 = vld [vmem:[%s166 + $0x178] sm:$0xff]
      %v220 = vld [vmem:[%s166 + $0x180] sm:$0xff]
      %v221 = vld [vmem:[%s0] sm:$0xf]
      %v222 = vld [vmem:[#allocation2] sm:$0x1]
      %224 = vset.pattern.permute.xlu0 0
      %225 = vperm.xlu0 %224, %v222
      %v226 = vpop.permute.xlu0 %225
      %v228 = vlaneseq
      %v229 = vshrl.u32 %v228, 7
      %v230 = vsub.s32 0, %v229
      %v231 = vrot.slane %v226, %v230
      %v234 = vunpack.c.l.s4 1966171168
      %v235 = vunpack.c.0.s8 %v234
      %v236 = vlaneseq
      %v237 = vshrl.u32 %v236, 7
      %v238 = vsub.s32 %v235, %v237
      %v239 = vrot.slane %v221, %v238
      %v240 = vcombine.high %v239, %v239
      %v242 = vunpack.c.l.s4 1966171168
      %v243 = vunpack.c.0.s8 %v242
      %v244 = vlaneseq
      %v245 = vshrl.u32 %v244, 7
      %v246 = vsub.s32 %v243, %v245
      %v247 = vrot.slane %v239, %v246
      %v249 = vunpack.c.l.s4 1966171168
      %v250 = vunpack.c.0.s8 %v249
      %v251 = vlaneseq
      %v252 = vshrl.u32 %v251, 7
      %v253 = vsub.s32 %v250, %v252
      %v254 = vrot.slane %v240, %v253
      %v255 = vcombine.high %v247, %v247
      %v256 = vcombine.high %v254, %v254
      %v309 = vunpack.c.l.b16 %v172
      %v310 = vunpack.c.h.b16 %v172
      %v311 = vunpack.c.l.b16 %v173
      %v312 = vunpack.c.h.b16 %v173
      %v313 = vunpack.c.l.b16 %v174
      %v314 = vunpack.c.h.b16 %v174
      %v315 = vunpack.c.l.b16 %v175
      %v316 = vunpack.c.h.b16 %v175
      %v317 = vunpack.c.l.b16 %v176
      %v318 = vunpack.c.h.b16 %v176
      %v319 = vunpack.c.l.b16 %v177
      %v320 = vunpack.c.h.b16 %v177
      %v321 = vunpack.c.l.b16 %v178
      %v322 = vunpack.c.h.b16 %v178
      %v323 = vunpack.c.l.b16 %v179
      %v324 = vunpack.c.h.b16 %v179
      %v325 = vunpack.c.l.b16 %v180
      %v326 = vunpack.c.h.b16 %v180
      %v327 = vunpack.c.l.b16 %v181
      %v328 = vunpack.c.h.b16 %v181
      %v329 = vunpack.c.l.b16 %v182
      %v330 = vunpack.c.h.b16 %v182
      %v331 = vunpack.c.l.b16 %v183
      %v332 = vunpack.c.h.b16 %v183
      %v333 = vunpack.c.l.b16 %v184
      %v334 = vunpack.c.h.b16 %v184
      %v335 = vunpack.c.l.b16 %v185
      %v336 = vunpack.c.h.b16 %v185
      %v337 = vunpack.c.l.b16 %v186
      %v338 = vunpack.c.h.b16 %v186
      %v339 = vunpack.c.l.b16 %v187
      %v340 = vunpack.c.h.b16 %v187
      %v341 = vunpack.c.l.b16 %v188
      %v342 = vunpack.c.h.b16 %v188
      %v343 = vunpack.c.l.b16 %v189
      %v344 = vunpack.c.h.b16 %v189
      %v345 = vunpack.c.l.b16 %v190
      %v346 = vunpack.c.h.b16 %v190
      %v347 = vunpack.c.l.b16 %v191
      %v348 = vunpack.c.h.b16 %v191
      %v349 = vunpack.c.l.b16 %v192
      %v350 = vunpack.c.h.b16 %v192
      %v351 = vunpack.c.l.b16 %v193
      %v352 = vunpack.c.h.b16 %v193
      %v353 = vunpack.c.l.b16 %v194
      %v354 = vunpack.c.h.b16 %v194
      %v355 = vunpack.c.l.b16 %v195
      %v356 = vunpack.c.h.b16 %v195
      %v357 = vunpack.c.l.b16 %v196
      %v358 = vunpack.c.h.b16 %v196
      %v359 = vunpack.c.l.b16 %v197
      %v360 = vunpack.c.h.b16 %v197
      %v361 = vunpack.c.l.b16 %v198
      %v362 = vunpack.c.h.b16 %v198
      %v363 = vunpack.c.l.b16 %v199
      %v364 = vunpack.c.h.b16 %v199
      %v365 = vunpack.c.l.b16 %v200
      %v366 = vunpack.c.h.b16 %v200
      %v367 = vunpack.c.l.b16 %v201
      %v368 = vunpack.c.h.b16 %v201
      %v369 = vunpack.c.l.b16 %v202
      %v370 = vunpack.c.h.b16 %v202
      %v371 = vunpack.c.l.b16 %v203
      %v372 = vunpack.c.h.b16 %v203
      %v373 = vunpack.c.l.b16 %v204
      %v374 = vunpack.c.h.b16 %v204
      %v375 = vunpack.c.l.b16 %v205
      %v376 = vunpack.c.h.b16 %v205
      %v377 = vunpack.c.l.b16 %v206
      %v378 = vunpack.c.h.b16 %v206
      %v379 = vunpack.c.l.b16 %v207
      %v380 = vunpack.c.h.b16 %v207
      %v381 = vunpack.c.l.b16 %v208
      %v382 = vunpack.c.h.b16 %v208
      %v383 = vunpack.c.l.b16 %v209
      %v384 = vunpack.c.h.b16 %v209
      %v385 = vunpack.c.l.b16 %v210
      %v386 = vunpack.c.h.b16 %v210
      %v387 = vunpack.c.l.b16 %v211
      %v388 = vunpack.c.h.b16 %v211
      %v389 = vunpack.c.l.b16 %v212
      %v390 = vunpack.c.h.b16 %v212
      %v391 = vunpack.c.l.b16 %v213
      %v392 = vunpack.c.h.b16 %v213
      %v393 = vunpack.c.l.b16 %v214
      %v394 = vunpack.c.h.b16 %v214
      %v395 = vunpack.c.l.b16 %v215
      %v396 = vunpack.c.h.b16 %v215
      %v397 = vunpack.c.l.b16 %v216
      %v398 = vunpack.c.h.b16 %v216
      %v399 = vunpack.c.l.b16 %v217
      %v400 = vunpack.c.h.b16 %v217
      %v401 = vunpack.c.l.b16 %v218
      %v402 = vunpack.c.h.b16 %v218
      %v403 = vunpack.c.l.b16 %v219
      %v404 = vunpack.c.h.b16 %v219
      %v405 = vunpack.c.l.b16 %v220
      %v406 = vunpack.c.h.b16 %v220
      %v407 = vpack.c.b16 %v311, %v309
      %v408 = vpack.c.b16 %v312, %v310
      %v409 = vpack.c.b16 %v315, %v313
      %v410 = vpack.c.b16 %v316, %v314
      %v411 = vpack.c.b16 %v319, %v317
      %v412 = vpack.c.b16 %v320, %v318
      %v413 = vpack.c.b16 %v323, %v321
      %v414 = vpack.c.b16 %v324, %v322
      %v415 = vpack.c.b16 %v327, %v325
      %v416 = vpack.c.b16 %v328, %v326
      %v417 = vpack.c.b16 %v331, %v329
      %v418 = vpack.c.b16 %v332, %v330
      %v419 = vpack.c.b16 %v335, %v333
      %v420 = vpack.c.b16 %v336, %v334
      %v421 = vpack.c.b16 %v339, %v337
      %v422 = vpack.c.b16 %v340, %v338
      %v423 = vpack.c.b16 %v343, %v341
      %v424 = vpack.c.b16 %v344, %v342
      %v425 = vpack.c.b16 %v347, %v345
      %v426 = vpack.c.b16 %v348, %v346
      %v427 = vpack.c.b16 %v351, %v349
      %v428 = vpack.c.b16 %v352, %v350
      %v429 = vpack.c.b16 %v355, %v353
      %v430 = vpack.c.b16 %v356, %v354
      %v431 = vpack.c.b16 %v359, %v357
      %v432 = vpack.c.b16 %v360, %v358
      %v433 = vpack.c.b16 %v363, %v361
      %v434 = vpack.c.b16 %v364, %v362
      %v435 = vpack.c.b16 %v367, %v365
      %v436 = vpack.c.b16 %v368, %v366
      %v437 = vpack.c.b16 %v371, %v369
      %v438 = vpack.c.b16 %v372, %v370
      %v439 = vpack.c.b16 %v375, %v373
      %v440 = vpack.c.b16 %v376, %v374
      %v441 = vpack.c.b16 %v379, %v377
      %v442 = vpack.c.b16 %v380, %v378
      %v443 = vpack.c.b16 %v383, %v381
      %v444 = vpack.c.b16 %v384, %v382
      %v445 = vpack.c.b16 %v387, %v385
      %v446 = vpack.c.b16 %v388, %v386
      %v447 = vpack.c.b16 %v391, %v389
      %v448 = vpack.c.b16 %v392, %v390
      %v449 = vpack.c.b16 %v395, %v393
      %v450 = vpack.c.b16 %v396, %v394
      %v451 = vpack.c.b16 %v399, %v397
      %v452 = vpack.c.b16 %v400, %v398
      %v453 = vpack.c.b16 %v403, %v401
      %v454 = vpack.c.b16 %v404, %v402
      %v455 = vpack.c.b16 %v405, %v405
      %v456 = vpack.c.b16 %v406, %v406
      %vm505 = vcmask 64512
      %v507 = vsel %vm505, %v256, 0
      %vm509 = vcmask 1043456
      %v511 = vsel %vm509, %v455, 0
      %v514 = vsel %vm509, %v456, 0
      %516 = vmatprep.subr.bf16.mxu0 %v408
      %517 = vmatpush1.bf16.msra.mxu0 %v407
      %518 = vmatprep.subr.bf16.mxu0 %v410
      %519 = vmatpush1.bf16.msra.mxu0 %v409
      %520 = vmatprep.subr.bf16.mxu0 %v412
      %521 = vmatpush1.bf16.msra.mxu0 %v411
      %522 = vmatprep.subr.bf16.mxu0 %v414
      %523 = vmatpush1.bf16.msra.mxu0 %v413
      %524 = vmatprep.subr.bf16.mxu0 %v416
      %525 = vmatpush1.bf16.msra.mxu0 %v415
      %526 = vmatprep.subr.bf16.mxu0 %v418
      %527 = vmatpush1.bf16.msra.mxu0 %v417
      %528 = vmatprep.subr.bf16.mxu0 %v420
      %529 = vmatpush1.bf16.msra.mxu0 %v419
      %530 = vmatprep.subr.bf16.mxu0 %v422
      %531 = vmatpush1.bf16.msra.mxu0 %v421
      %532 = vmatprep.subr.bf16.mxu0 %v424
      %533 = vmatpush1.bf16.msra.mxu0 %v423
      %534 = vmatprep.subr.bf16.mxu0 %v426
      %535 = vmatpush1.bf16.msra.mxu0 %v425
      %536 = vmatprep.subr.bf16.mxu0 %v428
      %537 = vmatpush1.bf16.msra.mxu0 %v427
      %538 = vmatprep.subr.bf16.mxu0 %v430
      %539 = vmatpush1.bf16.msra.mxu0 %v429
      %540 = vmatprep.subr.bf16.mxu0 %v432
      %541 = vmatpush1.bf16.msra.mxu0 %v431
      %542 = vmatprep.subr.bf16.mxu0 %v434
      %543 = vmatpush1.bf16.msra.mxu0 %v433
      %544 = vmatprep.subr.bf16.mxu0 %v436
      %545 = vmatpush1.bf16.msra.mxu0 %v435
      %546 = vmatprep.subr.bf16.mxu0 %v438
      %547 = vmatpush1.bf16.msra.mxu0 %v437
      %548 = vmatprep.mubr.bf16.mxu0 %v254
      %549 = vmatmul.mubr.bf16.gmra.mrb[0].mxu0 %v247
      %v550 = vpop.f32.mrb[0].mxu0
      %v551 = vadd.f32 %v231, %v550
      %v552 = vpop.f32.mrb[0].mxu0
      %v553 = vadd.f32 %v231, %v552
      %v554 = vpop.f32.mrb[0].mxu0
      %v555 = vpop.f32.mrb[0].mxu0
      %556 = vdwg.mxu0
      %557 = vmatprep.subr.bf16.mxu0 %v440
      %558 = vmatpush1.bf16.msra.mxu0 %v439
      %559 = vmatprep.subr.bf16.mxu0 %v442
      %560 = vmatpush1.bf16.msra.mxu0 %v441
      %561 = vmatprep.subr.bf16.mxu0 %v444
      %562 = vmatpush1.bf16.msra.mxu0 %v443
      %563 = vmatprep.subr.bf16.mxu0 %v446
      %564 = vmatpush1.bf16.msra.mxu0 %v445
      %565 = vmatprep.subr.bf16.mxu0 %v448
      %566 = vmatpush1.bf16.msra.mxu0 %v447
      %567 = vmatprep.subr.bf16.mxu0 %v450
      %568 = vmatpush1.bf16.msra.mxu0 %v449
      %569 = vmatprep.subr.bf16.mxu0 %v452
      %570 = vmatpush1.bf16.msra.mxu0 %v451
      %571 = vmatprep.subr.bf16.mxu0 %v454
      %572 = vmatpush1.bf16.msra.mxu0 %v453
      %573 = vmatprep.subr.bf16.mxu0 %v514
      %574 = vmatpush1.bf16.msra.mxu0 %v511
      %575 = vmatprep.subr.bf16.mxu0 0
      %576 = vmatpush1.bf16.msra.mxu0 0
      %577 = vmatprep.subr.bf16.mxu0 0
      %578 = vmatpush1.bf16.msra.mxu0 0
      %579 = vmatprep.subr.bf16.mxu0 0
      %580 = vmatpush1.bf16.msra.mxu0 0
      %581 = vmatprep.subr.bf16.mxu0 0
      %582 = vmatpush1.bf16.msra.mxu0 0
      %583 = vmatprep.subr.bf16.mxu0 0
      %584 = vmatpush1.bf16.msra.mxu0 0
      %585 = vmatprep.subr.bf16.mxu0 0
      %586 = vmatpush1.bf16.msra.mxu0 0
      %587 = vmatprep.subr.bf16.mxu0 0
      %588 = vmatpush1.bf16.msra.mxu0 0
      %589 = vmatprep.mubr.bf16.mxu0 %v507
      %590 = vmatmul.mubr.bf16.gmra.mrb[0].mxu0 %v255
      %v591 = vpop.f32.mrb[0].mxu0
      %v592 = vadd.f32 %v551, %v591
      %v593 = vpop.f32.mrb[0].mxu0
      %v594 = vadd.f32 %v553, %v593
      %v595 = vpop.f32.mrb[0].mxu0
      %v596 = vpop.f32.mrb[0].mxu0
      %597 = vdwg.mxu0
      %v598 = vtanh.pop %v592
      %v599 = vtanh.pop %v594
      %v602 = vcombine.low %v598, %v599
      %v604 = vunpack.c.l.s4 1966171168
      %v605 = vunpack.c.0.s8 %v604
      %v606 = vlaneseq
      %v607 = vshrl.u32 %v606, 7
      %v608 = vsub.s32 %v605, %v607
      %v609 = vrot.slane %v602, %v608
      %v611 = vunpack.c.l.s4 1966171168
      %v612 = vunpack.c.0.s8 %v611
      %v613 = vlaneseq
      %v614 = vshrl.u32 %v613, 7
      %v615 = vsub.s32 %v612, %v614
      %v616 = vrot.slane %v609, %v615
      %v618 = vlaneseq
      %vm619 = vcmp.ge.s32.totalorder %v618, 0
      %vm620 = vcmp.lt.s32.totalorder %v618, 256
      %vm621 = vmand %vm619, %vm620
      %622 = vst.msk [vmem:[%s170] sm:$0x3] %vm621, %v616
      %p623 = scmp.lt.s32.totalorder %s16, 1
      %s624 = scalar_select %p623, %s16, 1
      %s625 = smul.addr %s624, 2
      %s626 = scalar_lea.vmem %s3, %s625
      // Predicated region
      $region33: #{resnet_generator_forward.19} parent=31 // pred_check
        %p627 = pneg %p102
      $region34: #{resnet_generator_forward.19} parent=31 // pred_check_branch
        %629 = sbr.rel (%p627) target = $region36
      $region35: #{resnet_generator_forward.19} parent=31 // pred_region
        _
      $region36: #{resnet_generator_forward.19} parent=31 // pred_fallthru
        _
    $region32: #{resnet_generator_forward.19} parent=5 // pred_fallthru
      _
    %p630 = scmp.le.s32.totalorder 2, %s11
    // Predicated region
    $region37: #{resnet_generator_forward.19} parent=5 // pred_check
      %p631 = pneg %p630
    $region38: #{resnet_generator_forward.19} parent=5 // pred_check_branch
      %633 = sbr.rel (%p631) target = $region40
    $region39: #{resnet_generator_forward.19} parent=5 // pred_region
      %s634 = ssub.s32 %s11, 2
      // Predicated region
      $region41: #{resnet_generator_forward.19} parent=39 // pred_check
        %p635 = pneg %p108
      $region42: #{resnet_generator_forward.19} parent=39 // pred_check_branch
        %637 = sbr.rel (%p635) target = $region44
      $region43: #{resnet_generator_forward.19} parent=39 // pred_region
        %p638 = scmp.lt.s32.totalorder %s17, 1
        %s639 = scalar_select %p638, %s17, 1
        %s640 = smul.addr %s639, 2
        %s641 = scalar_lea.vmem %s3, %s640
      $region44: #{resnet_generator_forward.19} parent=39 // pred_fallthru
        _
    $region40: #{resnet_generator_forward.19} parent=5 // pred_fallthru
      _
  $region6: #{resnet_generator_forward.19} parent=0 // loop_footer
    %s15 = sadd.s32 1, %s11
  $region7: #{resnet_generator_forward.19} parent=0 // loop_footer_branch
    %10 = sbr.rel target = $region3
  $region8: #{resnet_generator_forward.19} parent=0 // loop_exit
    _

</llo_original>
